<compile_context>
chip_gen: v5e
topology: v5e:2x2
jax: 0.10.0
libtpu: 0.0.40
codegen_flags: <defaults>
</compile_context>

<pallas_src>
import functools

import jax
import jax.numpy as jnp
from jax.experimental import pallas as pl
from jax.experimental.pallas import tpu as pltpu

EXPANSION = 4
BN_EPS = 1e-5


def _round_up(x, m):
    return ((x + m - 1) // m) * m


# ---------------------------------------------------------------------------
# Fused bottleneck kernel: one grid step == one sample, everything in VMEM.
# ---------------------------------------------------------------------------

def _bottleneck_kernel(x_ref, w1_ref, b1_ref, w2_ref, b2_ref, w3_ref, b3_ref,
                       o_ref, buf_ref, cols_ref, *, H, W, C1, use_im2col):
    HW = H * W
    OFF = _round_up(W + 1, 8)        # >= W+1 zero margin rows, sublane-aligned
    strip_len = HW + 2 * W

    x2d = x_ref[0]                                               # (HW, Cin) f32

    # ---- stage 1: 1x1 conv (BN scale folded into w1) + bias + ReLU ---------
    y1 = jnp.dot(x2d.astype(jnp.bfloat16), w1_ref[...],
                 preferred_element_type=jnp.float32)
    y1 = jnp.maximum(y1 + b1_ref[...], 0.0)                      # (HW, C1) f32

    # ---- stage 2: 3x3 conv, stride 1, pad 1 --------------------------------
    # Zero-margined, row-flattened copy of y1.  The >=W+1 zero rows on either
    # side implement the top/bottom zero padding; left/right padding columns
    # are handled by masking the dx-shifted strips below.
    buf_ref[...] = jnp.zeros_like(buf_ref)
    buf_ref[OFF:OFF + HW, :] = y1

    col = jax.lax.broadcasted_iota(jnp.int32, (strip_len, 1), 0) % W
    taps = [None] * 9
    for dx in range(3):
        # One (possibly sublane-unaligned) strip load per dx tap column; the
        # three dy taps are aligned (multiple-of-W) slices of that strip.
        start = OFF - W + (dx - 1)
        strip = buf_ref[start:start + strip_len, :]
        if dx == 0:        # reads input column x-1 -> invalid at x == 0
            strip = jnp.where(col != 0, strip, jnp.zeros_like(strip))
        elif dx == 2:      # reads input column x+1 -> invalid at x == W-1
            strip = jnp.where(col != W - 1, strip, jnp.zeros_like(strip))
        for dy in range(3):
            taps[dy * 3 + dx] = strip[dy * W:dy * W + HW, :]

    if use_im2col:
        # Pack the 9 taps into an im2col scratch and do ONE matmul, K = 9*C1.
        for t in range(9):
            cols_ref[:, t * C1:(t + 1) * C1] = taps[t].astype(jnp.bfloat16)
        y2 = jnp.dot(cols_ref[...], w2_ref[...],
                     preferred_element_type=jnp.float32)
    else:
        # Fallback for lane-unaligned C1: 9 accumulated K=C1 matmuls.
        y2 = jnp.zeros((HW, C1), jnp.float32)
        for t in range(9):
            y2 = y2 + jnp.dot(taps[t].astype(jnp.bfloat16),
                              w2_ref[t * C1:(t + 1) * C1, :],
                              preferred_element_type=jnp.float32)
    y2 = jnp.maximum(y2 + b2_ref[...], 0.0)                      # (HW, C1) f32

    # ---- stage 3: 1x1 conv + bias + residual add + ReLU --------------------
    y3 = jnp.dot(y2.astype(jnp.bfloat16), w3_ref[...],
                 preferred_element_type=jnp.float32)
    y3 = jnp.maximum(y3 + b3_ref[...] + x2d, 0.0)                # (HW, C3) f32
    o_ref[0] = y3.astype(o_ref.dtype)


# ---------------------------------------------------------------------------
# Host-side weight preparation (BN folding + bf16 packing) and wrapper
# ---------------------------------------------------------------------------

def _fold_bn(params, prefix):
    scale = params[f"{prefix}_gamma"] / jnp.sqrt(params[f"{prefix}_var"] + BN_EPS)
    bias = params[f"{prefix}_beta"] - params[f"{prefix}_mean"] * scale
    return scale, bias


def _fold_and_pack(params):
    """Fold BN scale into the conv weights (bf16 for the MXU); biases stay f32."""
    s1, b1 = _fold_bn(params, "bn1")
    s2, b2 = _fold_bn(params, "bn2")
    s3, b3 = _fold_bn(params, "bn3")
    w1 = (params["w1"] * s1[None, :]).astype(jnp.bfloat16)            # (Cin, C1)
    w2 = (params["w2"] * s2[None, None, :])                           # (9, C1, C1)
    w2 = w2.reshape(-1, w2.shape[-1]).astype(jnp.bfloat16)            # (9*C1, C1)
    w3 = (params["w3"] * s3[None, :]).astype(jnp.bfloat16)            # (C1, C3)
    return (w1, b1.reshape(1, -1).astype(jnp.float32),
            w2, b2.reshape(1, -1).astype(jnp.float32),
            w3, b3.reshape(1, -1).astype(jnp.float32))


def bottleneck_forward(x_nchw, params):
    N, Cin, H, W = x_nchw.shape
    x = jnp.transpose(x_nchw, (0, 2, 3, 1)).astype(jnp.float32)
    x = x.reshape(N, H * W, Cin)                       # rows x channels (lane-dense)

    w1, b1, w2, b2, w3, b3 = _fold_and_pack(params)
    C1, C3 = w1.shape[1], w3.shape[1]
    assert C3 == Cin, "no-downsample path requires inplanes == out_planes*4"
    # TODO(synk): stride>1 / downsample branch of Bottleneck not implemented.

    HW = H * W
    OFF = _round_up(W + 1, 8)
    buf_rows = _round_up(OFF + HW + W + 1, 8)
    use_im2col = (C1 % 128 == 0)
    cols_shape = (HW, 9 * C1) if use_im2col else (8, 128)   # dummy when unused

    kernel = functools.partial(_bottleneck_kernel, H=H, W=W, C1=C1,
                               use_im2col=use_im2col)

    flops = 2 * N * HW * (Cin * C1 + 9 * C1 * C1 + C1 * C3)
    bytes_accessed = (N * HW * Cin * 4 + N * HW * C3 * 4
                      + (w1.size + w2.size + w3.size) * 2
                      + (b1.size + b2.size + b3.size) * 4)

    out = pl.pallas_call(
        kernel,
        grid=(N,),
        in_specs=[
            pl.BlockSpec((1, HW, Cin), lambda n: (n, 0, 0)),   # per-sample activations
            pl.BlockSpec((Cin, C1), lambda n: (0, 0)),         # weights: fetched once
            pl.BlockSpec((1, C1), lambda n: (0, 0)),
            pl.BlockSpec((9 * C1, C1), lambda n: (0, 0)),
            pl.BlockSpec((1, C1), lambda n: (0, 0)),
            pl.BlockSpec((C1, C3), lambda n: (0, 0)),
            pl.BlockSpec((1, C3), lambda n: (0, 0)),
        ],
        out_specs=pl.BlockSpec((1, HW, C3), lambda n: (n, 0, 0)),
        out_shape=jax.ShapeDtypeStruct((N, HW, C3), jnp.float32),
        scratch_shapes=[
            pltpu.VMEM((buf_rows, C1), jnp.float32),    # zero-margined stage-1 output
            pltpu.VMEM(cols_shape, jnp.bfloat16),       # im2col patch (K = 9*C1)
        ],
        compiler_params=pltpu.CompilerParams(
            dimension_semantics=("parallel",),          # shard samples over cores
            vmem_limit_bytes=48 * 1024 * 1024,          # leaves headroom on v7x 64MiB
        ),
        cost_estimate=pl.CostEstimate(flops=flops, transcendentals=0,
                                      bytes_accessed=bytes_accessed),
    )(x, w1, b1, w2, b2, w3, b3)

    # TODO(synk): for very large per-sample H*W, add a second (row-band) grid
    # axis with a 1-row halo so each block stays within a v7x-sized VMEM budget.
    return jnp.transpose(out.reshape(N, H, W, C3), (0, 3, 1, 2))   # back to NCHW


# ---------------------------------------------------------------------------
# Pure-JAX reference with identical folded-BN / bf16-operand semantics
# ---------------------------------------------------------------------------

def bottleneck_reference(x_nchw, params):
    N, Cin, H, W = x_nchw.shape
    x = jnp.transpose(x_nchw, (0, 2, 3, 1)).astype(jnp.float32)
    w1, b1, w2, b2, w3, b3 = _fold_and_pack(params)
    C1, C3 = w1.shape[1], w3.shape[1]

    xf = x.reshape(N * H * W, Cin)
    y1 = jax.lax.dot(xf.astype(jnp.bfloat16), w1,
                     preferred_element_type=jnp.float32)
    y1 = jnp.maximum(y1 + b1, 0.0).astype(jnp.bfloat16)

    yp = jnp.pad(y1.reshape(N, H, W, C1), ((0, 0), (1, 1), (1, 1), (0, 0)))
    cols = jnp.concatenate(
        [yp[:, dy:dy + H, dx:dx + W, :] for dy in range(3) for dx in range(3)],
        axis=-1).reshape(N * H * W, 9 * C1)
    y2 = jax.lax.dot(cols, w2, preferred_element_type=jnp.float32)
    y2 = jnp.maximum(y2 + b2, 0.0).astype(jnp.bfloat16)

    y3 = jax.lax.dot(y2, w3, preferred_element_type=jnp.float32)
    y3 = jnp.maximum(y3 + b3 + xf, 0.0)
    return jnp.transpose(y3.reshape(N, H, W, C3), (0, 3, 1, 2))


# ---------------------------------------------------------------------------
# Deterministic parameter init
# ---------------------------------------------------------------------------

def init_params(key, inplanes, out_planes):
    c1 = out_planes
    c3 = out_planes * EXPANSION
    ks = jax.random.split(key, 12)
    w_scale = 0.05
    return {
        # conv weights in kernel-friendly layouts: (Cin, Cout) and (9, Cin, Cout)
        "w1": jax.random.normal(ks[0], (inplanes, c1), jnp.float32) * w_scale,
        "w2": jax.random.normal(ks[1], (9, c1, c1), jnp.float32) * w_scale,
        "w3": jax.random.normal(ks[2], (c1, c3), jnp.float32) * w_scale,
        # BatchNorm (inference-mode running stats)
        "bn1_gamma": 1.0 + 0.1 * jax.random.normal(ks[3], (c1,), jnp.float32),
        "bn1_beta": 0.1 * jax.random.normal(ks[4], (c1,), jnp.float32),
        "bn1_mean": 0.1 * jax.random.normal(ks[5], (c1,), jnp.float32),
        "bn1_var": jnp.abs(jax.random.normal(ks[6], (c1,), jnp.float32)) + 0.5,
        "bn2_gamma": 1.0 + 0.1 * jax.random.normal(ks[7], (c1,), jnp.float32),
        "bn2_beta": 0.1 * jax.random.normal(ks[8], (c1,), jnp.float32),
        "bn2_mean": 0.1 * jax.random.normal(ks[9], (c1,), jnp.float32),
        "bn2_var": jnp.abs(jax.random.normal(ks[10], (c1,), jnp.float32)) + 0.5,
        "bn3_gamma": jnp.linspace(0.9, 1.1, c3, dtype=jnp.float32),
        "bn3_beta": jnp.linspace(-0.05, 0.05, c3, dtype=jnp.float32),
        "bn3_mean": jnp.linspace(-0.1, 0.1, c3, dtype=jnp.float32),
        "bn3_var": jnp.linspace(0.5, 1.5, c3, dtype=jnp.float32),
    }


if __name__ == "__main__":
    key = jax.random.PRNGKey(0)
    k_x, k_p = jax.random.split(key)

    # Small but lane-dense shapes matching a ResNet "layer2"-style bottleneck:
    # inplanes = out_planes * 4 so the identity path needs no downsample.
    N, H, W = 2, 16, 16
    out_planes = 128                        # C1 (multiple of 128 -> im2col path)
    inplanes = out_planes * EXPANSION       # 512 = C3 = Cin

    x = jax.random.normal(k_x, (N, inplanes, H, W), jnp.float32)
    params = init_params(k_p, inplanes, out_planes)

    fwd = jax.jit(bottleneck_forward)
    out = jax.block_until_ready(fwd(x, params))
    ref = jax.block_until_ready(bottleneck_reference(x, params))

    assert out.shape == (N, inplanes, H, W)
    max_err = float(jnp.max(jnp.abs(out - ref)))
    assert jnp.allclose(out, ref, atol=1e-2, rtol=1e-2), \
        f"mismatch vs reference (max abs err = {max_err})"
    print("KERNEL_OK")
</pallas_src>

<mosaic_0001>
module attributes {stable_mosaic.version = 11 : i64} {
  func.func @_bottleneck_kernel(%arg0: i32, %arg1: memref<1x256x512xf32, #tpu.memory_space<vmem>>, %arg2: memref<512x128xbf16, #tpu.memory_space<vmem>>, %arg3: memref<1x128xf32, #tpu.memory_space<vmem>>, %arg4: memref<1152x128xbf16, #tpu.memory_space<vmem>>, %arg5: memref<1x128xf32, #tpu.memory_space<vmem>>, %arg6: memref<128x512xbf16, #tpu.memory_space<vmem>>, %arg7: memref<1x512xf32, #tpu.memory_space<vmem>>, %arg8: memref<1x256x512xf32, #tpu.memory_space<vmem>>, %arg9: memref<304x128xf32, #tpu.memory_space<vmem>>, %arg10: memref<256x1152xbf16, #tpu.memory_space<vmem>>) attributes {dimension_semantics = [#tpu.dimension_semantics<parallel>], iteration_bounds = array<i64: 2>, scalar_prefetch = 0 : i64, scratch_operands = 2 : i64, tpu.core_type = #tpu.core_type<tc>, window_params = [{transform_indices = @transform_0, window_bounds = array<i64: 1, 256, 512>}, {pipeline_mode = #tpu.pipeline_mode<synchronous>, transform_indices = @transform_1, window_bounds = array<i64: 512, 128>}, {pipeline_mode = #tpu.pipeline_mode<synchronous>, transform_indices = @transform_2, window_bounds = array<i64: 1, 128>}, {pipeline_mode = #tpu.pipeline_mode<synchronous>, transform_indices = @transform_3, window_bounds = array<i64: 1152, 128>}, {pipeline_mode = #tpu.pipeline_mode<synchronous>, transform_indices = @transform_4, window_bounds = array<i64: 1, 128>}, {pipeline_mode = #tpu.pipeline_mode<synchronous>, transform_indices = @transform_5, window_bounds = array<i64: 128, 512>}, {pipeline_mode = #tpu.pipeline_mode<synchronous>, transform_indices = @transform_6, window_bounds = array<i64: 1, 512>}, {transform_indices = @transform_7, window_bounds = array<i64: 1, 256, 512>}]} {
    %c0 = arith.constant 0 : index
    %c0_0 = arith.constant 0 : index
    %c0_1 = arith.constant 0 : index
    %0 = vector.load %arg1[%c0, %c0_0, %c0_1] : memref<1x256x512xf32, #tpu.memory_space<vmem>>, vector<1x256x512xf32>
    %1 = vector.shape_cast %0 : vector<1x256x512xf32> to vector<256x512xf32>
    %2 = arith.truncf %1 : vector<256x512xf32> to vector<256x512xbf16>
    %c0_2 = arith.constant 0 : index
    %c0_3 = arith.constant 0 : index
    %3 = vector.load %arg2[%c0_2, %c0_3] : memref<512x128xbf16, #tpu.memory_space<vmem>>, vector<512x128xbf16>
    %cst = arith.constant dense<0.000000e+00> : vector<256x128xf32>
    %4 = tpu.matmul %2, %3, %cst {dimension_numbers = #tpu.dot_dimension_numbers<[1], [0], [0], [1], [0, 0, 1, 1], [], []>} : vector<256x512xbf16>, vector<512x128xbf16>, vector<256x128xf32> -> vector<256x128xf32>
    %c0_4 = arith.constant 0 : index
    %c0_5 = arith.constant 0 : index
    %5 = vector.load %arg3[%c0_4, %c0_5] : memref<1x128xf32, #tpu.memory_space<vmem>>, vector<1x128xf32>
    %6 = vector.broadcast %5 : vector<1x128xf32> to vector<256x128xf32>
    %7 = arith.addf %4, %6 : vector<256x128xf32>
    %cst_6 = arith.constant 0.000000e+00 : f32
    %8 = vector.broadcast %cst_6 : f32 to vector<256x128xf32>
    %9 = arith.maximumf %7, %8 : vector<256x128xf32>
    %cst_7 = arith.constant 0.000000e+00 : f32
    %10 = vector.broadcast %cst_7 : f32 to vector<304x128xf32>
    %c0_8 = arith.constant 0 : index
    %c0_9 = arith.constant 0 : index
    %11 = vector.load %arg9[%c0_8, %c0_9] : memref<304x128xf32, #tpu.memory_space<vmem>>, vector<304x128xf32>
    tpu.vector_store %arg9[%c0_8, %c0_9], %10 {strides = array<i32>} : memref<304x128xf32, #tpu.memory_space<vmem>>, vector<304x128xf32>,
    %c24 = arith.constant 24 : index
    %c0_10 = arith.constant 0 : index
    %12 = vector.load %arg9[%c24, %c0_10] : memref<304x128xf32, #tpu.memory_space<vmem>>, vector<256x128xf32>
    tpu.vector_store %arg9[%c24, %c0_10], %9 {strides = array<i32>} : memref<304x128xf32, #tpu.memory_space<vmem>>, vector<256x128xf32>,
    %13 = tpu.iota {dimensions = array<i32: 0>} : vector<288x1xi32>
    %c16_i32 = arith.constant 16 : i32
    %c0_i32 = arith.constant 0 : i32
    %14 = arith.cmpi eq, %c16_i32, %c0_i32 : i32
    %c1_i32 = arith.constant 1 : i32
    %15 = arith.select %14, %c1_i32, %c16_i32 : i32
    %16 = vector.broadcast %15 : i32 to vector<288x1xi32>
    %17 = arith.remsi %13, %16 : vector<288x1xi32>
    %c0_i32_11 = arith.constant 0 : i32
    %18 = vector.broadcast %c0_i32_11 : i32 to vector<288x1xi32>
    %19 = arith.cmpi ne, %17, %18 : vector<288x1xi32>
    %c0_i32_12 = arith.constant 0 : i32
    %20 = vector.broadcast %c0_i32_12 : i32 to vector<288x1xi32>
    %21 = arith.cmpi slt, %17, %20 : vector<288x1xi32>
    %c0_i32_13 = arith.constant 0 : i32
    %22 = arith.cmpi slt, %15, %c0_i32_13 : i32
    %23 = vector.broadcast %22 : i1 to vector<288x1xi1>
    %24 = vector.broadcast %23 : vector<288x1xi1> to vector<288x1xi1>
    %25 = arith.xori %21, %24 : vector<288x1xi1>
    %26 = arith.andi %25, %19 : vector<288x1xi1>
    %27 = vector.broadcast %15 : i32 to vector<288x1xi32>
    %28 = arith.addi %17, %27 : vector<288x1xi32>
    %29 = arith.select %26, %28, %17 : vector<288x1xi1>, vector<288x1xi32>
    %c7 = arith.constant 7 : index
    %c0_14 = arith.constant 0 : index
    %30 = vector.load %arg9[%c7, %c0_14] : memref<304x128xf32, #tpu.memory_space<vmem>>, vector<288x128xf32>
    %c0_i32_15 = arith.constant 0 : i32
    %31 = vector.broadcast %c0_i32_15 : i32 to vector<288x1xi32>
    %32 = arith.cmpi ne, %29, %31 : vector<288x1xi32>
    %cst_16 = arith.constant 0.000000e+00 : f32
    %33 = vector.broadcast %cst_16 : f32 to vector<288x128xf32>
    %34 = vector.shape_cast %32 : vector<288x1xi1> to vector<288x1xi1>
    %35 = vector.broadcast %34 : vector<288x1xi1> to vector<288x128xi1>
    %36 = arith.select %35, %30, %33 : vector<288x128xi1>, vector<288x128xf32>
    %37 = vector.extract_strided_slice %36 {offsets = [0, 0], sizes = [256, 128], strides = [1, 1]} : vector<288x128xf32> to vector<256x128xf32>
    %38 = vector.extract_strided_slice %36 {offsets = [16, 0], sizes = [256, 128], strides = [1, 1]} : vector<288x128xf32> to vector<256x128xf32>
    %39 = vector.extract_strided_slice %36 {offsets = [32, 0], sizes = [256, 128], strides = [1, 1]} : vector<288x128xf32> to vector<256x128xf32>
    %c8 = arith.constant 8 : index
    %c0_17 = arith.constant 0 : index
    %40 = vector.load %arg9[%c8, %c0_17] : memref<304x128xf32, #tpu.memory_space<vmem>>, vector<288x128xf32>
    %41 = vector.extract_strided_slice %40 {offsets = [0, 0], sizes = [256, 128], strides = [1, 1]} : vector<288x128xf32> to vector<256x128xf32>
    %42 = vector.extract_strided_slice %40 {offsets = [16, 0], sizes = [256, 128], strides = [1, 1]} : vector<288x128xf32> to vector<256x128xf32>
    %43 = vector.extract_strided_slice %40 {offsets = [32, 0], sizes = [256, 128], strides = [1, 1]} : vector<288x128xf32> to vector<256x128xf32>
    %c9 = arith.constant 9 : index
    %c0_18 = arith.constant 0 : index
    %44 = vector.load %arg9[%c9, %c0_18] : memref<304x128xf32, #tpu.memory_space<vmem>>, vector<288x128xf32>
    %c15_i32 = arith.constant 15 : i32
    %45 = vector.broadcast %c15_i32 : i32 to vector<288x1xi32>
    %46 = arith.cmpi ne, %29, %45 : vector<288x1xi32>
    %cst_19 = arith.constant 0.000000e+00 : f32
    %47 = vector.broadcast %cst_19 : f32 to vector<288x128xf32>
    %48 = vector.shape_cast %46 : vector<288x1xi1> to vector<288x1xi1>
    %49 = vector.broadcast %48 : vector<288x1xi1> to vector<288x128xi1>
    %50 = arith.select %49, %44, %47 : vector<288x128xi1>, vector<288x128xf32>
    %51 = vector.extract_strided_slice %50 {offsets = [0, 0], sizes = [256, 128], strides = [1, 1]} : vector<288x128xf32> to vector<256x128xf32>
    %52 = vector.extract_strided_slice %50 {offsets = [16, 0], sizes = [256, 128], strides = [1, 1]} : vector<288x128xf32> to vector<256x128xf32>
    %53 = vector.extract_strided_slice %50 {offsets = [32, 0], sizes = [256, 128], strides = [1, 1]} : vector<288x128xf32> to vector<256x128xf32>
    %54 = arith.truncf %37 : vector<256x128xf32> to vector<256x128xbf16>
    %c0_20 = arith.constant 0 : index
    %c0_21 = arith.constant 0 : index
    %55 = vector.load %arg10[%c0_20, %c0_21] : memref<256x1152xbf16, #tpu.memory_space<vmem>>, vector<256x128xbf16>
    tpu.vector_store %arg10[%c0_20, %c0_21], %54 {strides = array<i32>} : memref<256x1152xbf16, #tpu.memory_space<vmem>>, vector<256x128xbf16>,
    %56 = arith.truncf %41 : vector<256x128xf32> to vector<256x128xbf16>
    %c0_22 = arith.constant 0 : index
    %c128 = arith.constant 128 : index
    %57 = vector.load %arg10[%c0_22, %c128] : memref<256x1152xbf16, #tpu.memory_space<vmem>>, vector<256x128xbf16>
    tpu.vector_store %arg10[%c0_22, %c128], %56 {strides = array<i32>} : memref<256x1152xbf16, #tpu.memory_space<vmem>>, vector<256x128xbf16>,
    %58 = arith.truncf %51 : vector<256x128xf32> to vector<256x128xbf16>
    %c0_23 = arith.constant 0 : index
    %c256 = arith.constant 256 : index
    %59 = vector.load %arg10[%c0_23, %c256] : memref<256x1152xbf16, #tpu.memory_space<vmem>>, vector<256x128xbf16>
    tpu.vector_store %arg10[%c0_23, %c256], %58 {strides = array<i32>} : memref<256x1152xbf16, #tpu.memory_space<vmem>>, vector<256x128xbf16>,
    %60 = arith.truncf %38 : vector<256x128xf32> to vector<256x128xbf16>
    %c0_24 = arith.constant 0 : index
    %c384 = arith.constant 384 : index
    %61 = vector.load %arg10[%c0_24, %c384] : memref<256x1152xbf16, #tpu.memory_space<vmem>>, vector<256x128xbf16>
    tpu.vector_store %arg10[%c0_24, %c384], %60 {strides = array<i32>} : memref<256x1152xbf16, #tpu.memory_space<vmem>>, vector<256x128xbf16>,
    %62 = arith.truncf %42 : vector<256x128xf32> to vector<256x128xbf16>
    %c0_25 = arith.constant 0 : index
    %c512 = arith.constant 512 : index
    %63 = vector.load %arg10[%c0_25, %c512] : memref<256x1152xbf16, #tpu.memory_space<vmem>>, vector<256x128xbf16>
    tpu.vector_store %arg10[%c0_25, %c512], %62 {strides = array<i32>} : memref<256x1152xbf16, #tpu.memory_space<vmem>>, vector<256x128xbf16>,
    %64 = arith.truncf %52 : vector<256x128xf32> to vector<256x128xbf16>
    %c0_26 = arith.constant 0 : index
    %c640 = arith.constant 640 : index
    %65 = vector.load %arg10[%c0_26, %c640] : memref<256x1152xbf16, #tpu.memory_space<vmem>>, vector<256x128xbf16>
    tpu.vector_store %arg10[%c0_26, %c640], %64 {strides = array<i32>} : memref<256x1152xbf16, #tpu.memory_space<vmem>>, vector<256x128xbf16>,
    %66 = arith.truncf %39 : vector<256x128xf32> to vector<256x128xbf16>
    %c0_27 = arith.constant 0 : index
    %c768 = arith.constant 768 : index
    %67 = vector.load %arg10[%c0_27, %c768] : memref<256x1152xbf16, #tpu.memory_space<vmem>>, vector<256x128xbf16>
    tpu.vector_store %arg10[%c0_27, %c768], %66 {strides = array<i32>} : memref<256x1152xbf16, #tpu.memory_space<vmem>>, vector<256x128xbf16>,
    %68 = arith.truncf %43 : vector<256x128xf32> to vector<256x128xbf16>
    %c0_28 = arith.constant 0 : index
    %c896 = arith.constant 896 : index
    %69 = vector.load %arg10[%c0_28, %c896] : memref<256x1152xbf16, #tpu.memory_space<vmem>>, vector<256x128xbf16>
    tpu.vector_store %arg10[%c0_28, %c896], %68 {strides = array<i32>} : memref<256x1152xbf16, #tpu.memory_space<vmem>>, vector<256x128xbf16>,
    %70 = arith.truncf %53 : vector<256x128xf32> to vector<256x128xbf16>
    %c0_29 = arith.constant 0 : index
    %c1024 = arith.constant 1024 : index
    %71 = vector.load %arg10[%c0_29, %c1024] : memref<256x1152xbf16, #tpu.memory_space<vmem>>, vector<256x128xbf16>
    tpu.vector_store %arg10[%c0_29, %c1024], %70 {strides = array<i32>} : memref<256x1152xbf16, #tpu.memory_space<vmem>>, vector<256x128xbf16>,
    %c0_30 = arith.constant 0 : index
    %c0_31 = arith.constant 0 : index
    %72 = vector.load %arg10[%c0_30, %c0_31] : memref<256x1152xbf16, #tpu.memory_space<vmem>>, vector<256x1152xbf16>
    %c0_32 = arith.constant 0 : index
    %c0_33 = arith.constant 0 : index
    %73 = vector.load %arg4[%c0_32, %c0_33] : memref<1152x128xbf16, #tpu.memory_space<vmem>>, vector<1152x128xbf16>
    %cst_34 = arith.constant dense<0.000000e+00> : vector<256x128xf32>
    %74 = tpu.matmul %72, %73, %cst_34 {dimension_numbers = #tpu.dot_dimension_numbers<[1], [0], [0], [1], [0, 0, 1, 1], [], []>} : vector<256x1152xbf16>, vector<1152x128xbf16>, vector<256x128xf32> -> vector<256x128xf32>
    %c0_35 = arith.constant 0 : index
    %c0_36 = arith.constant 0 : index
    %75 = vector.load %arg5[%c0_35, %c0_36] : memref<1x128xf32, #tpu.memory_space<vmem>>, vector<1x128xf32>
    %76 = vector.broadcast %75 : vector<1x128xf32> to vector<256x128xf32>
    %77 = arith.addf %74, %76 : vector<256x128xf32>
    %cst_37 = arith.constant 0.000000e+00 : f32
    %78 = vector.broadcast %cst_37 : f32 to vector<256x128xf32>
    %79 = arith.maximumf %77, %78 : vector<256x128xf32>
    %80 = arith.truncf %79 : vector<256x128xf32> to vector<256x128xbf16>
    %c0_38 = arith.constant 0 : index
    %c0_39 = arith.constant 0 : index
    %81 = vector.load %arg6[%c0_38, %c0_39] : memref<128x512xbf16, #tpu.memory_space<vmem>>, vector<128x512xbf16>
    %cst_40 = arith.constant dense<0.000000e+00> : vector<256x512xf32>
    %82 = tpu.matmul %80, %81, %cst_40 {dimension_numbers = #tpu.dot_dimension_numbers<[1], [0], [0], [1], [0, 0, 1, 1], [], []>} : vector<256x128xbf16>, vector<128x512xbf16>, vector<256x512xf32> -> vector<256x512xf32>
    %c0_41 = arith.constant 0 : index
    %c0_42 = arith.constant 0 : index
    %83 = vector.load %arg7[%c0_41, %c0_42] : memref<1x512xf32, #tpu.memory_space<vmem>>, vector<1x512xf32>
    %84 = vector.broadcast %83 : vector<1x512xf32> to vector<256x512xf32>
    %85 = arith.addf %82, %84 : vector<256x512xf32>
    %86 = arith.addf %85, %1 : vector<256x512xf32>
    %cst_43 = arith.constant 0.000000e+00 : f32
    %87 = vector.broadcast %cst_43 : f32 to vector<256x512xf32>
    %88 = arith.maximumf %86, %87 : vector<256x512xf32>
    %c0_44 = arith.constant 0 : index
    %c0_45 = arith.constant 0 : index
    %c0_46 = arith.constant 0 : index
    %89 = vector.load %arg8[%c0_44, %c0_45, %c0_46] : memref<1x256x512xf32, #tpu.memory_space<vmem>>, vector<1x256x512xf32>
    %90 = vector.shape_cast %89 : vector<1x256x512xf32> to vector<256x512xf32>
    %91 = vector.shape_cast %88 : vector<256x512xf32> to vector<1x256x512xf32>
    tpu.vector_store %arg8[%c0_44, %c0_45, %c0_46], %91 {strides = array<i32>} : memref<1x256x512xf32, #tpu.memory_space<vmem>>, vector<1x256x512xf32>,
    return
  }
  func.func @transform_0(%arg0: i32) -> (i32, i32, i32) {
    %c0_i32 = arith.constant 0 : i32
    %c0_i32_0 = arith.constant 0 : i32
    %c0_i32_1 = arith.constant 0 : i32
    return %arg0, %c0_i32, %c0_i32_0 : i32, i32, i32
  }
  func.func @transform_1(%arg0: i32) -> (i32, i32) {
    %c0_i32 = arith.constant 0 : i32
    %c0_i32_0 = arith.constant 0 : i32
    %c0_i32_1 = arith.constant 0 : i32
    return %c0_i32, %c0_i32_0 : i32, i32
  }
  func.func @transform_2(%arg0: i32) -> (i32, i32) {
    %c0_i32 = arith.constant 0 : i32
    %c0_i32_0 = arith.constant 0 : i32
    %c0_i32_1 = arith.constant 0 : i32
    return %c0_i32, %c0_i32_0 : i32, i32
  }
  func.func @transform_3(%arg0: i32) -> (i32, i32) {
    %c0_i32 = arith.constant 0 : i32
    %c0_i32_0 = arith.constant 0 : i32
    %c0_i32_1 = arith.constant 0 : i32
    return %c0_i32, %c0_i32_0 : i32, i32
  }
  func.func @transform_4(%arg0: i32) -> (i32, i32) {
    %c0_i32 = arith.constant 0 : i32
    %c0_i32_0 = arith.constant 0 : i32
    %c0_i32_1 = arith.constant 0 : i32
    return %c0_i32, %c0_i32_0 : i32, i32
  }
  func.func @transform_5(%arg0: i32) -> (i32, i32) {
    %c0_i32 = arith.constant 0 : i32
    %c0_i32_0 = arith.constant 0 : i32
    %c0_i32_1 = arith.constant 0 : i32
    return %c0_i32, %c0_i32_0 : i32, i32
  }
  func.func @transform_6(%arg0: i32) -> (i32, i32) {
    %c0_i32 = arith.constant 0 : i32
    %c0_i32_0 = arith.constant 0 : i32
    %c0_i32_1 = arith.constant 0 : i32
    return %c0_i32, %c0_i32_0 : i32, i32
  }
  func.func @transform_7(%arg0: i32) -> (i32, i32, i32) {
    %c0_i32 = arith.constant 0 : i32
    %c0_i32_0 = arith.constant 0 : i32
    %c0_i32_1 = arith.constant 0 : i32
    return %arg0, %c0_i32, %c0_i32_0 : i32, i32, i32
  }
}

</mosaic_0001>

<llo_original>
// kernel: bottleneck_forward.1
$region0: #{bottleneck_forward.1}
  #allocation0 [shape = 'u32[]', space=smem, size = 0x4, offset = 0x4, fixed_abs, tag = 'smem constant byte address 0x4 - core index']
  #allocation1 [shape = 'u32[72,128]{1,0:T(1,128)}', space=vmem, size = 0x9000, scoped, tag = 'internal scratch']
  #allocation2 [shape = 'f32[304,128]{1,0:T(8,128)}', space=vmem, size = 0x26000, scoped, tag = 'scratch operand']
  #allocation3 [shape = 'bf16[256,1152]{1,0:T(8,128)(2,1)}', space=vmem, size = 0x90000, scoped, tag = 'scratch operand']
  %s0 = inlined_call_operand.vmem [shape: f32[2,256,512], index: 0, kind: input, shape index: {}]
  %s1 = inlined_call_operand.vmem [shape: bf16[512,128], index: 1, kind: input, shape index: {}]
  %s2 = inlined_call_operand.vmem [shape: f32[1,128], index: 2, kind: input, shape index: {}]
  %s3 = inlined_call_operand.vmem [shape: bf16[1152,128], index: 3, kind: input, shape index: {}]
  %s4 = inlined_call_operand.vmem [shape: f32[1,128], index: 4, kind: input, shape index: {}]
  %s5 = inlined_call_operand.vmem [shape: bf16[128,512], index: 5, kind: input, shape index: {}]
  %s6 = inlined_call_operand.vmem [shape: f32[1,512], index: 6, kind: input, shape index: {}]
  %s7 = inlined_call_operand.hbm [shape: f32[2,256,512], index: 7, kind: output, shape index: {}]
  %s8 = sld [smem:[#allocation0]]
  $region61: #{bottleneck_forward.1} parent=0
    _
  %s10 = ssub.s32 1, %s8
  %s11 = scalar_select 0, %s10, %s8
  $region1: #{bottleneck_forward.1} parent=0
    #allocation4 [shape = 'u8[1048576]{0}', space=vmem, size = 0x100000, scoped, tag = 'output window, operand 0']
    #allocation5 [shape = 's32[2]{0}', space=sflag, size = 0x8, scoped, tag = 'scoped memory for bottleneck_forward.1']
    %12 = vsyncpa [#allocation5], 0
    %s13 = scalar_lea.sflag [#allocation5], 1
    %14 = vsyncpa %s13, 0
    loop: start=0, step=1, limit=4
    $region2: #{bottleneck_forward.1} parent=1 // loop_pre_header
      _
    $region3: #{bottleneck_forward.1} parent=1 // loop_header
      %s16 = sphi 0, %s20
      %p17 = scmp.ge.s32.totalorder %s16, 4
      %s26 = sphi 0, %s28
      %s29 = sphi 0, %s26
      %s30 = sphi 0, %s29
      %s46 = sphi 0, %s30
      %s50 = sphi 0, %s50
      %s52 = sphi 0, %s50
      %s53 = sphi 0, %s52
      %s67 = sphi 0, %s53
      %s71 = sphi 0, %s71
      %s73 = sphi 0, %s71
      %s74 = sphi 0, %s73
      %s88 = sphi 0, %s74
      %s92 = sphi 0, %s92
      %s94 = sphi 0, %s92
      %s95 = sphi 0, %s94
      %s109 = sphi 0, %s95
      %s113 = sphi 0, %s113
      %s115 = sphi 0, %s113
      %s116 = sphi 0, %s115
      %s130 = sphi 0, %s116
      %s134 = sphi 0, %s134
      %s136 = sphi 0, %s134
      %s137 = sphi 0, %s136
      %s151 = sphi 0, %s137
      %s155 = sphi 0, %s155
      %s157 = sphi 0, %s155
      %s158 = sphi 0, %s157
      %s172 = sphi 0, %s158
      %s178 = sphi 0, %s180
      %s181 = sphi 0, %s178
      %s182 = sphi 0, %s181
      %s198 = sphi 0, %s182
    $region4: #{bottleneck_forward.1} parent=1 // loop_header_branch
      %19 = sbr.rel (%p17) target = $region8
    $region5: #{bottleneck_forward.1} parent=1 // loop_body
      %s21 = ssub.s32 %s16, 1
      %s22 = ssub.s32 %s16, 2
      %s23 = sadd.s32 %s16, 1
      %s24 = ssub.s32 %s16, %s23
      %p25 = scmp.eq.s32.totalorder %s24, 0
      %s27 = sadd.s32 %s26, 1
      %s28 = scalar_select %p25, %s26, %s27
      %p31 = pneg %p25
      %p32 = scmp.eq.s32.totalorder %s16, 1
      %p33 = por %p31, %p32
      %p34 = scmp.ne.s32.totalorder %s26, %s29
      %p35 = scmp.eq.s32.totalorder %s16, 0
      %p36 = por %p34, %p35
      %p37 = scmp.ne.s32.totalorder %s26, %s29
      %p38 = scmp.eq.s32.totalorder %s21, 1
      %p39 = por %p37, %p38
      %p40 = scmp.ne.s32.totalorder %s29, %s30
      %p41 = scmp.eq.s32.totalorder %s21, 0
      %p42 = por %p40, %p41
      %p43 = scmp.ne.s32.totalorder %s29, %s30
      %p44 = scmp.eq.s32.totalorder %s22, 1
      %p45 = por %p43, %p44
      %p47 = scmp.ne.s32.totalorder %s30, %s46
      %p48 = scmp.eq.s32.totalorder %s22, 0
      %p49 = por %p47, %p48
      %s51 = sadd.s32 %s50, 1
      %p54 = scmp.eq.s32.totalorder %s16, 1
      %p55 = scmp.ne.s32.totalorder %s50, %s52
      %p56 = scmp.eq.s32.totalorder %s16, 0
      %p57 = por %p55, %p56
      %p58 = scmp.ne.s32.totalorder %s50, %s52
      %p59 = scmp.eq.s32.totalorder %s21, 1
      %p60 = por %p58, %p59
      %p61 = scmp.ne.s32.totalorder %s52, %s53
      %p62 = scmp.eq.s32.totalorder %s21, 0
      %p63 = por %p61, %p62
      %p64 = scmp.ne.s32.totalorder %s52, %s53
      %p65 = scmp.eq.s32.totalorder %s22, 1
      %p66 = por %p64, %p65
      %p68 = scmp.ne.s32.totalorder %s53, %s67
      %p69 = scmp.eq.s32.totalorder %s22, 0
      %p70 = por %p68, %p69
      %s72 = sadd.s32 %s71, 1
      %p75 = scmp.eq.s32.totalorder %s16, 1
      %p76 = scmp.ne.s32.totalorder %s71, %s73
      %p77 = scmp.eq.s32.totalorder %s16, 0
      %p78 = por %p76, %p77
      %p79 = scmp.ne.s32.totalorder %s71, %s73
      %p80 = scmp.eq.s32.totalorder %s21, 1
      %p81 = por %p79, %p80
      %p82 = scmp.ne.s32.totalorder %s73, %s74
      %p83 = scmp.eq.s32.totalorder %s21, 0
      %p84 = por %p82, %p83
      %p85 = scmp.ne.s32.totalorder %s73, %s74
      %p86 = scmp.eq.s32.totalorder %s22, 1
      %p87 = por %p85, %p86
      %p89 = scmp.ne.s32.totalorder %s74, %s88
      %p90 = scmp.eq.s32.totalorder %s22, 0
      %p91 = por %p89, %p90
      %s93 = sadd.s32 %s92, 1
      %p96 = scmp.eq.s32.totalorder %s16, 1
      %p97 = scmp.ne.s32.totalorder %s92, %s94
      %p98 = scmp.eq.s32.totalorder %s16, 0
      %p99 = por %p97, %p98
      %p100 = scmp.ne.s32.totalorder %s92, %s94
      %p101 = scmp.eq.s32.totalorder %s21, 1
      %p102 = por %p100, %p101
      %p103 = scmp.ne.s32.totalorder %s94, %s95
      %p104 = scmp.eq.s32.totalorder %s21, 0
      %p105 = por %p103, %p104
      %p106 = scmp.ne.s32.totalorder %s94, %s95
      %p107 = scmp.eq.s32.totalorder %s22, 1
      %p108 = por %p106, %p107
      %p110 = scmp.ne.s32.totalorder %s95, %s109
      %p111 = scmp.eq.s32.totalorder %s22, 0
      %p112 = por %p110, %p111
      %s114 = sadd.s32 %s113, 1
      %p117 = scmp.eq.s32.totalorder %s16, 1
      %p118 = scmp.ne.s32.totalorder %s113, %s115
      %p119 = scmp.eq.s32.totalorder %s16, 0
      %p120 = por %p118, %p119
      %p121 = scmp.ne.s32.totalorder %s113, %s115
      %p122 = scmp.eq.s32.totalorder %s21, 1
      %p123 = por %p121, %p122
      %p124 = scmp.ne.s32.totalorder %s115, %s116
      %p125 = scmp.eq.s32.totalorder %s21, 0
      %p126 = por %p124, %p125
      %p127 = scmp.ne.s32.totalorder %s115, %s116
      %p128 = scmp.eq.s32.totalorder %s22, 1
      %p129 = por %p127, %p128
      %p131 = scmp.ne.s32.totalorder %s116, %s130
      %p132 = scmp.eq.s32.totalorder %s22, 0
      %p133 = por %p131, %p132
      %s135 = sadd.s32 %s134, 1
      %p138 = scmp.eq.s32.totalorder %s16, 1
      %p139 = scmp.ne.s32.totalorder %s134, %s136
      %p140 = scmp.eq.s32.totalorder %s16, 0
      %p141 = por %p139, %p140
      %p142 = scmp.ne.s32.totalorder %s134, %s136
      %p143 = scmp.eq.s32.totalorder %s21, 1
      %p144 = por %p142, %p143
      %p145 = scmp.ne.s32.totalorder %s136, %s137
      %p146 = scmp.eq.s32.totalorder %s21, 0
      %p147 = por %p145, %p146
      %p148 = scmp.ne.s32.totalorder %s136, %s137
      %p149 = scmp.eq.s32.totalorder %s22, 1
      %p150 = por %p148, %p149
      %p152 = scmp.ne.s32.totalorder %s137, %s151
      %p153 = scmp.eq.s32.totalorder %s22, 0
      %p154 = por %p152, %p153
      %s156 = sadd.s32 %s155, 1
      %p159 = scmp.eq.s32.totalorder %s16, 1
      %p160 = scmp.ne.s32.totalorder %s155, %s157
      %p161 = scmp.eq.s32.totalorder %s16, 0
      %p162 = por %p160, %p161
      %p163 = scmp.ne.s32.totalorder %s155, %s157
      %p164 = scmp.eq.s32.totalorder %s21, 1
      %p165 = por %p163, %p164
      %p166 = scmp.ne.s32.totalorder %s157, %s158
      %p167 = scmp.eq.s32.totalorder %s21, 0
      %p168 = por %p166, %p167
      %p169 = scmp.ne.s32.totalorder %s157, %s158
      %p170 = scmp.eq.s32.totalorder %s22, 1
      %p171 = por %p169, %p170
      %p173 = scmp.ne.s32.totalorder %s158, %s172
      %p174 = scmp.eq.s32.totalorder %s22, 0
      %p175 = por %p173, %p174
      %s176 = ssub.s32 %s16, %s23
      %p177 = scmp.eq.s32.totalorder %s176, 0
      %s179 = sadd.s32 %s178, 1
      %s180 = scalar_select %p177, %s178, %s179
      %p183 = pneg %p177
      %p184 = scmp.eq.s32.totalorder %s16, 1
      %p185 = por %p183, %p184
      %p186 = scmp.ne.s32.totalorder %s178, %s181
      %p187 = scmp.eq.s32.totalorder %s16, 0
      %p188 = por %p186, %p187
      %p189 = scmp.ne.s32.totalorder %s178, %s181
      %p190 = scmp.eq.s32.totalorder %s21, 1
      %p191 = por %p189, %p190
      %p192 = scmp.ne.s32.totalorder %s181, %s182
      %p193 = scmp.eq.s32.totalorder %s21, 0
      %p194 = por %p192, %p193
      %p195 = scmp.ne.s32.totalorder %s181, %s182
      %p196 = scmp.eq.s32.totalorder %s22, 1
      %p197 = por %p195, %p196
      %p199 = scmp.ne.s32.totalorder %s182, %s198
      %p200 = scmp.eq.s32.totalorder %s22, 0
      %p201 = por %p199, %p200
      %p202 = scmp.le.s32.totalorder 1, %s16
      %p203 = scmp.lt.s32.totalorder %s16, 3
      %p204 = pnand %p202, %p203
      %p205 = pneg %p204
      // Predicated region
      $region9: #{bottleneck_forward.1} parent=5 // pred_check
        _
      $region10: #{bottleneck_forward.1} parent=5 // pred_check_branch
        %207 = sbr.rel (%p204) target = $region12
      $region11: #{bottleneck_forward.1} parent=5 // pred_region
        %s208 = ssub.s32 %s16, 1
        // Predicated region
        $region13: #{bottleneck_forward.1} parent=11 // pred_check
          %p209 = pneg %p63
        $region14: #{bottleneck_forward.1} parent=11 // pred_check_branch
          %211 = sbr.rel (%p209) target = $region16
        $region15: #{bottleneck_forward.1} parent=11 // pred_region
          _
        $region16: #{bottleneck_forward.1} parent=11 // pred_fallthru
          _
        // Predicated region
        $region17: #{bottleneck_forward.1} parent=11 // pred_check
          %p212 = pneg %p84
        $region18: #{bottleneck_forward.1} parent=11 // pred_check_branch
          %214 = sbr.rel (%p212) target = $region20
        $region19: #{bottleneck_forward.1} parent=11 // pred_region
          _
        $region20: #{bottleneck_forward.1} parent=11 // pred_fallthru
          _
        // Predicated region
        $region21: #{bottleneck_forward.1} parent=11 // pred_check
          %p215 = pneg %p105
        $region22: #{bottleneck_forward.1} parent=11 // pred_check_branch
          %217 = sbr.rel (%p215) target = $region24
        $region23: #{bottleneck_forward.1} parent=11 // pred_region
          _
        $region24: #{bottleneck_forward.1} parent=11 // pred_fallthru
          _
        // Predicated region
        $region25: #{bottleneck_forward.1} parent=11 // pred_check
          %p218 = pneg %p126
        $region26: #{bottleneck_forward.1} parent=11 // pred_check_branch
          %220 = sbr.rel (%p218) target = $region28
        $region27: #{bottleneck_forward.1} parent=11 // pred_region
          _
        $region28: #{bottleneck_forward.1} parent=11 // pred_fallthru
          _
        // Predicated region
        $region29: #{bottleneck_forward.1} parent=11 // pred_check
          %p221 = pneg %p147
        $region30: #{bottleneck_forward.1} parent=11 // pred_check_branch
          %223 = sbr.rel (%p221) target = $region32
        $region31: #{bottleneck_forward.1} parent=11 // pred_region
          _
        $region32: #{bottleneck_forward.1} parent=11 // pred_fallthru
          _
        // Predicated region
        $region33: #{bottleneck_forward.1} parent=11 // pred_check
          %p224 = pneg %p168
        $region34: #{bottleneck_forward.1} parent=11 // pred_check_branch
          %226 = sbr.rel (%p224) target = $region36
        $region35: #{bottleneck_forward.1} parent=11 // pred_region
          _
        $region36: #{bottleneck_forward.1} parent=11 // pred_fallthru
          _
      $region12: #{bottleneck_forward.1} parent=5 // pred_fallthru
        _
      %p227 = scmp.lt.s32.totalorder %s16, 2
      // Predicated region
      $region37: #{bottleneck_forward.1} parent=5 // pred_check
        %p228 = pneg %p227
      $region38: #{bottleneck_forward.1} parent=5 // pred_check_branch
        %230 = sbr.rel (%p228) target = $region40
      $region39: #{bottleneck_forward.1} parent=5 // pred_region
        // Predicated region
        $region41: #{bottleneck_forward.1} parent=39 // pred_check
          %p231 = pneg %p36
        $region42: #{bottleneck_forward.1} parent=39 // pred_check_branch
          %233 = sbr.rel (%p231) target = $region44
        $region43: #{bottleneck_forward.1} parent=39 // pred_region
          %p234 = scmp.lt.s32.totalorder %s16, 1
          %s235 = scalar_select %p234, %s16, 1
          %s236 = smul.addr %s235, 128
          %s237 = smul.addr %s236, 8
          %s238 = scalar_lea.vmem %s0, %s237
        $region44: #{bottleneck_forward.1} parent=39 // pred_fallthru
          _
      $region40: #{bottleneck_forward.1} parent=5 // pred_fallthru
        _
      %p239 = scmp.le.s32.totalorder 1, %s16
      %p240 = scmp.lt.s32.totalorder %s16, 3
      %p241 = pnand %p239, %p240
      %p242 = pneg %p241
      // Predicated region
      $region45: #{bottleneck_forward.1} parent=5 // pred_check
        _
      $region46: #{bottleneck_forward.1} parent=5 // pred_check_branch
        %244 = sbr.rel (%p241) target = $region48
      $region47: #{bottleneck_forward.1} parent=5 // pred_region
        %s245 = ssub.s32 %s16, 1
        %p246 = scmp.lt.s32.totalorder %s21, 1
        %s247 = scalar_select %p246, %s21, 1
        %s248 = smul.addr %s247, 128
        %s249 = smul.addr %s248, 8
        %s250 = scalar_lea.vmem %s0, %s249
        %p251 = pneg %p42
        %p252 = pneg %p39
        %p253 = pneg %p63
        %p254 = pneg %p60
        %p255 = pneg %p84
        %p256 = pneg %p81
        %p257 = pneg %p105
        %p258 = pneg %p102
        %p259 = pneg %p126
        %p260 = pneg %p123
        %p261 = pneg %p147
        %p262 = pneg %p144
        %p263 = pneg %p168
        %p264 = pneg %p165
        %p265 = pneg %p194
        %p266 = pneg %p191
        %s267 = sand.u32 %s181, 1
        %s268 = scalar_lea.sflag [#allocation5], %s267
        %s269 = sand.u32 %s181, 1
        %s270 = smul.addr %s269, 1024
        %s271 = scalar_lea.vmem [#allocation4], %s270
        %p272 = scmp.lt.s32.totalorder %s21, 1
        %s273 = scalar_select %p272, %s21, 1
        %s274 = smul.addr %s273, 128
        %s275 = smul.addr %s274, 8
        %s276 = scalar_lea.vmem %s0, %s275
        %v277 = vld [vmem:[%s276] sm:$0xff]
        %v278 = vld [vmem:[%s276 + $0x8] sm:$0xff]
        %v279 = vld [vmem:[%s276 + $0x10] sm:$0xff]
        %v280 = vld [vmem:[%s276 + $0x18] sm:$0xff]
        %v281 = vld [vmem:[%s276 + $0x20] sm:$0xff]
        %v282 = vld [vmem:[%s276 + $0x28] sm:$0xff]
        %v283 = vld [vmem:[%s276 + $0x30] sm:$0xff]
        %v284 = vld [vmem:[%s276 + $0x38] sm:$0xff]
        %v285 = vld [vmem:[%s276 + $0x40] sm:$0xff]
        %v286 = vld [vmem:[%s276 + $0x48] sm:$0xff]
        %v287 = vld [vmem:[%s276 + $0x50] sm:$0xff]
        %v288 = vld [vmem:[%s276 + $0x58] sm:$0xff]
        %v289 = vld [vmem:[%s276 + $0x60] sm:$0xff]
        %v290 = vld [vmem:[%s276 + $0x68] sm:$0xff]
        %v291 = vld [vmem:[%s276 + $0x70] sm:$0xff]
        %v292 = vld [vmem:[%s276 + $0x78] sm:$0xff]
        %v293 = vld [vmem:[%s276 + $0x80] sm:$0xff]
        %v294 = vld [vmem:[%s276 + $0x88] sm:$0xff]
        %v295 = vld [vmem:[%s276 + $0x90] sm:$0xff]
        %v296 = vld [vmem:[%s276 + $0x98] sm:$0xff]
        %v297 = vld [vmem:[%s276 + $0xa0] sm:$0xff]
        %v298 = vld [vmem:[%s276 + $0xa8] sm:$0xff]
        %v299 = vld [vmem:[%s276 + $0xb0] sm:$0xff]
        %v300 = vld [vmem:[%s276 + $0xb8] sm:$0xff]
        %v301 = vld [vmem:[%s276 + $0xc0] sm:$0xff]
        %v302 = vld [vmem:[%s276 + $0xc8] sm:$0xff]
        %v303 = vld [vmem:[%s276 + $0xd0] sm:$0xff]
        %v304 = vld [vmem:[%s276 + $0xd8] sm:$0xff]
        %v305 = vld [vmem:[%s276 + $0xe0] sm:$0xff]
        %v306 = vld [vmem:[%s276 + $0xe8] sm:$0xff]
        %v307 = vld [vmem:[%s276 + $0xf0] sm:$0xff]
        %v308 = vld [vmem:[%s276 + $0xf8] sm:$0xff]
        %v309 = vld [vmem:[%s276 + $0x100] sm:$0xff]
        %v310 = vld [vmem:[%s276 + $0x108] sm:$0xff]
        %v311 = vld [vmem:[%s276 + $0x110] sm:$0xff]
        %v312 = vld [vmem:[%s276 + $0x118] sm:$0xff]
        %v313 = vld [vmem:[%s276 + $0x120] sm:$0xff]
        %v314 = vld [vmem:[%s276 + $0x128] sm:$0xff]
        %v315 = vld [vmem:[%s276 + $0x130] sm:$0xff]
        %v316 = vld [vmem:[%s276 + $0x138] sm:$0xff]
        %v317 = vld [vmem:[%s276 + $0x140] sm:$0xff]
        %v318 = vld [vmem:[%s276 + $0x148] sm:$0xff]
        %v319 = vld [vmem:[%s276 + $0x150] sm:$0xff]
        %v320 = vld [vmem:[%s276 + $0x158] sm:$0xff]
        %v321 = vld [vmem:[%s276 + $0x160] sm:$0xff]
        %v322 = vld [vmem:[%s276 + $0x168] sm:$0xff]
        %v323 = vld [vmem:[%s276 + $0x170] sm:$0xff]
        %v324 = vld [vmem:[%s276 + $0x178] sm:$0xff]
        %v325 = vld [vmem:[%s276 + $0x180] sm:$0xff]
        %v326 = vld [vmem:[%s276 + $0x188] sm:$0xff]
        %v327 = vld [vmem:[%s276 + $0x190] sm:$0xff]
        %v328 = vld [vmem:[%s276 + $0x198] sm:$0xff]
        %v329 = vld [vmem:[%s276 + $0x1a0] sm:$0xff]
        %v330 = vld [vmem:[%s276 + $0x1a8] sm:$0xff]
        %v331 = vld [vmem:[%s276 + $0x1b0] sm:$0xff]
        %v332 = vld [vmem:[%s276 + $0x1b8] sm:$0xff]
        %v333 = vld [vmem:[%s276 + $0x1c0] sm:$0xff]
        %v334 = vld [vmem:[%s276 + $0x1c8] sm:$0xff]
        %v335 = vld [vmem:[%s276 + $0x1d0] sm:$0xff]
        %v336 = vld [vmem:[%s276 + $0x1d8] sm:$0xff]
        %v337 = vld [vmem:[%s276 + $0x1e0] sm:$0xff]
        %v338 = vld [vmem:[%s276 + $0x1e8] sm:$0xff]
        %v339 = vld [vmem:[%s276 + $0x1f0] sm:$0xff]
        %v340 = vld [vmem:[%s276 + $0x1f8] sm:$0xff]
        %v341 = vld [vmem:[%s276 + $0x200] sm:$0xff]
        %v342 = vld [vmem:[%s276 + $0x208] sm:$0xff]
        %v343 = vld [vmem:[%s276 + $0x210] sm:$0xff]
        %v344 = vld [vmem:[%s276 + $0x218] sm:$0xff]
        %v345 = vld [vmem:[%s276 + $0x220] sm:$0xff]
        %v346 = vld [vmem:[%s276 + $0x228] sm:$0xff]
        %v347 = vld [vmem:[%s276 + $0x230] sm:$0xff]
        %v348 = vld [vmem:[%s276 + $0x238] sm:$0xff]
        %v349 = vld [vmem:[%s276 + $0x240] sm:$0xff]
        %v350 = vld [vmem:[%s276 + $0x248] sm:$0xff]
        %v351 = vld [vmem:[%s276 + $0x250] sm:$0xff]
        %v352 = vld [vmem:[%s276 + $0x258] sm:$0xff]
        %v353 = vld [vmem:[%s276 + $0x260] sm:$0xff]
        %v354 = vld [vmem:[%s276 + $0x268] sm:$0xff]
        %v355 = vld [vmem:[%s276 + $0x270] sm:$0xff]
        %v356 = vld [vmem:[%s276 + $0x278] sm:$0xff]
        %v357 = vld [vmem:[%s276 + $0x280] sm:$0xff]
        %v358 = vld [vmem:[%s276 + $0x288] sm:$0xff]
        %v359 = vld [vmem:[%s276 + $0x290] sm:$0xff]
        %v360 = vld [vmem:[%s276 + $0x298] sm:$0xff]
        %v361 = vld [vmem:[%s276 + $0x2a0] sm:$0xff]
        %v362 = vld [vmem:[%s276 + $0x2a8] sm:$0xff]
        %v363 = vld [vmem:[%s276 + $0x2b0] sm:$0xff]
        %v364 = vld [vmem:[%s276 + $0x2b8] sm:$0xff]
        %v365 = vld [vmem:[%s276 + $0x2c0] sm:$0xff]
        %v366 = vld [vmem:[%s276 + $0x2c8] sm:$0xff]
        %v367 = vld [vmem:[%s276 + $0x2d0] sm:$0xff]
        %v368 = vld [vmem:[%s276 + $0x2d8] sm:$0xff]
        %v369 = vld [vmem:[%s276 + $0x2e0] sm:$0xff]
        %v370 = vld [vmem:[%s276 + $0x2e8] sm:$0xff]
        %v371 = vld [vmem:[%s276 + $0x2f0] sm:$0xff]
        %v372 = vld [vmem:[%s276 + $0x2f8] sm:$0xff]
        %v373 = vld [vmem:[%s276 + $0x300] sm:$0xff]
        %v374 = vld [vmem:[%s276 + $0x308] sm:$0xff]
        %v375 = vld [vmem:[%s276 + $0x310] sm:$0xff]
        %v376 = vld [vmem:[%s276 + $0x318] sm:$0xff]
        %v377 = vld [vmem:[%s276 + $0x320] sm:$0xff]
        %v378 = vld [vmem:[%s276 + $0x328] sm:$0xff]
        %v379 = vld [vmem:[%s276 + $0x330] sm:$0xff]
        %v380 = vld [vmem:[%s276 + $0x338] sm:$0xff]
        %v381 = vld [vmem:[%s276 + $0x340] sm:$0xff]
        %v382 = vld [vmem:[%s276 + $0x348] sm:$0xff]
        %v383 = vld [vmem:[%s276 + $0x350] sm:$0xff]
        %v384 = vld [vmem:[%s276 + $0x358] sm:$0xff]
        %v385 = vld [vmem:[%s276 + $0x360] sm:$0xff]
        %v386 = vld [vmem:[%s276 + $0x368] sm:$0xff]
        %v387 = vld [vmem:[%s276 + $0x370] sm:$0xff]
        %v388 = vld [vmem:[%s276 + $0x378] sm:$0xff]
        %v389 = vld [vmem:[%s276 + $0x380] sm:$0xff]
        %v390 = vld [vmem:[%s276 + $0x388] sm:$0xff]
        %v391 = vld [vmem:[%s276 + $0x390] sm:$0xff]
        %v392 = vld [vmem:[%s276 + $0x398] sm:$0xff]
        %v393 = vld [vmem:[%s276 + $0x3a0] sm:$0xff]
        %v394 = vld [vmem:[%s276 + $0x3a8] sm:$0xff]
        %v395 = vld [vmem:[%s276 + $0x3b0] sm:$0xff]
        %v396 = vld [vmem:[%s276 + $0x3b8] sm:$0xff]
        %v397 = vld [vmem:[%s276 + $0x3c0] sm:$0xff]
        %v398 = vld [vmem:[%s276 + $0x3c8] sm:$0xff]
        %v399 = vld [vmem:[%s276 + $0x3d0] sm:$0xff]
        %v400 = vld [vmem:[%s276 + $0x3d8] sm:$0xff]
        %v401 = vld [vmem:[%s276 + $0x3e0] sm:$0xff]
        %v402 = vld [vmem:[%s276 + $0x3e8] sm:$0xff]
        %v403 = vld [vmem:[%s276 + $0x3f0] sm:$0xff]
        %v404 = vld [vmem:[%s276 + $0x3f8] sm:$0xff]
        %v405 = vpack.c.bf16 %v281, %v277
        %v406 = vpack.c.bf16 %v282, %v278
        %v407 = vpack.c.bf16 %v283, %v279
        %v408 = vpack.c.bf16 %v284, %v280
        %v409 = vpack.c.bf16 %v289, %v285
        %v410 = vpack.c.bf16 %v290, %v286
        %v411 = vpack.c.bf16 %v291, %v287
        %v412 = vpack.c.bf16 %v292, %v288
        %v413 = vpack.c.bf16 %v297, %v293
        %v414 = vpack.c.bf16 %v298, %v294
        %v415 = vpack.c.bf16 %v299, %v295
        %v416 = vpack.c.bf16 %v300, %v296
        %v417 = vpack.c.bf16 %v305, %v301
        %v418 = vpack.c.bf16 %v306, %v302
        %v419 = vpack.c.bf16 %v307, %v303
        %v420 = vpack.c.bf16 %v308, %v304
        %v421 = vpack.c.bf16 %v313, %v309
        %v422 = vpack.c.bf16 %v314, %v310
        %v423 = vpack.c.bf16 %v315, %v311
        %v424 = vpack.c.bf16 %v316, %v312
        %v425 = vpack.c.bf16 %v321, %v317
        %v426 = vpack.c.bf16 %v322, %v318
        %v427 = vpack.c.bf16 %v323, %v319
        %v428 = vpack.c.bf16 %v324, %v320
        %v429 = vpack.c.bf16 %v329, %v325
        %v430 = vpack.c.bf16 %v330, %v326
        %v431 = vpack.c.bf16 %v331, %v327
        %v432 = vpack.c.bf16 %v332, %v328
        %v433 = vpack.c.bf16 %v337, %v333
        %v434 = vpack.c.bf16 %v338, %v334
        %v435 = vpack.c.bf16 %v339, %v335
        %v436 = vpack.c.bf16 %v340, %v336
        %v437 = vpack.c.bf16 %v345, %v341
        %v438 = vpack.c.bf16 %v346, %v342
        %v439 = vpack.c.bf16 %v347, %v343
        %v440 = vpack.c.bf16 %v348, %v344
        %v441 = vpack.c.bf16 %v353, %v349
        %v442 = vpack.c.bf16 %v354, %v350
        %v443 = vpack.c.bf16 %v355, %v351
        %v444 = vpack.c.bf16 %v356, %v352
        %v445 = vpack.c.bf16 %v361, %v357
        %v446 = vpack.c.bf16 %v362, %v358
        %v447 = vpack.c.bf16 %v363, %v359
        %v448 = vpack.c.bf16 %v364, %v360
        %v449 = vpack.c.bf16 %v369, %v365
        %v450 = vpack.c.bf16 %v370, %v366
        %v451 = vpack.c.bf16 %v371, %v367
        %v452 = vpack.c.bf16 %v372, %v368
        %v453 = vpack.c.bf16 %v377, %v373
        %v454 = vpack.c.bf16 %v378, %v374
        %v455 = vpack.c.bf16 %v379, %v375
        %v456 = vpack.c.bf16 %v380, %v376
        %v457 = vpack.c.bf16 %v385, %v381
        %v458 = vpack.c.bf16 %v386, %v382
        %v459 = vpack.c.bf16 %v387, %v383
        %v460 = vpack.c.bf16 %v388, %v384
        %v461 = vpack.c.bf16 %v393, %v389
        %v462 = vpack.c.bf16 %v394, %v390
        %v463 = vpack.c.bf16 %v395, %v391
        %v464 = vpack.c.bf16 %v396, %v392
        %v465 = vpack.c.bf16 %v401, %v397
        %v466 = vpack.c.bf16 %v402, %v398
        %v467 = vpack.c.bf16 %v403, %v399
        %v468 = vpack.c.bf16 %v404, %v400
        %v469 = vld [vmem:[%s1] sm:$0xf]
        %v470 = vld [vmem:[%s1 + $0x4] sm:$0xf]
        %v471 = vld [vmem:[%s1 + $0x8] sm:$0xf]
        %v472 = vld [vmem:[%s1 + $0xc] sm:$0xf]
        %v473 = vld [vmem:[%s1 + $0x10] sm:$0xf]
        %v474 = vld [vmem:[%s1 + $0x14] sm:$0xf]
        %v475 = vld [vmem:[%s1 + $0x18] sm:$0xf]
        %v476 = vld [vmem:[%s1 + $0x1c] sm:$0xf]
        %v477 = vld [vmem:[%s1 + $0x20] sm:$0xf]
        %v478 = vld [vmem:[%s1 + $0x24] sm:$0xf]
        %v479 = vld [vmem:[%s1 + $0x28] sm:$0xf]
        %v480 = vld [vmem:[%s1 + $0x2c] sm:$0xf]
        %v481 = vld [vmem:[%s1 + $0x30] sm:$0xf]
        %v482 = vld [vmem:[%s1 + $0x34] sm:$0xf]
        %v483 = vld [vmem:[%s1 + $0x38] sm:$0xf]
        %v484 = vld [vmem:[%s1 + $0x3c] sm:$0xf]
        %v485 = vld [vmem:[%s1 + $0x40] sm:$0xf]
        %v486 = vld [vmem:[%s1 + $0x44] sm:$0xf]
        %v487 = vld [vmem:[%s1 + $0x48] sm:$0xf]
        %v488 = vld [vmem:[%s1 + $0x4c] sm:$0xf]
        %v489 = vld [vmem:[%s1 + $0x50] sm:$0xf]
        %v490 = vld [vmem:[%s1 + $0x54] sm:$0xf]
        %v491 = vld [vmem:[%s1 + $0x58] sm:$0xf]
        %v492 = vld [vmem:[%s1 + $0x5c] sm:$0xf]
        %v493 = vld [vmem:[%s1 + $0x60] sm:$0xf]
        %v494 = vld [vmem:[%s1 + $0x64] sm:$0xf]
        %v495 = vld [vmem:[%s1 + $0x68] sm:$0xf]
        %v496 = vld [vmem:[%s1 + $0x6c] sm:$0xf]
        %v497 = vld [vmem:[%s1 + $0x70] sm:$0xf]
        %v498 = vld [vmem:[%s1 + $0x74] sm:$0xf]
        %v499 = vld [vmem:[%s1 + $0x78] sm:$0xf]
        %v500 = vld [vmem:[%s1 + $0x7c] sm:$0xf]
        %v501 = vld [vmem:[%s1 + $0x80] sm:$0xf]
        %v502 = vld [vmem:[%s1 + $0x84] sm:$0xf]
        %v503 = vld [vmem:[%s1 + $0x88] sm:$0xf]
        %v504 = vld [vmem:[%s1 + $0x8c] sm:$0xf]
        %v505 = vld [vmem:[%s1 + $0x90] sm:$0xf]
        %v506 = vld [vmem:[%s1 + $0x94] sm:$0xf]
        %v507 = vld [vmem:[%s1 + $0x98] sm:$0xf]
        %v508 = vld [vmem:[%s1 + $0x9c] sm:$0xf]
        %v509 = vld [vmem:[%s1 + $0xa0] sm:$0xf]
        %v510 = vld [vmem:[%s1 + $0xa4] sm:$0xf]
        %v511 = vld [vmem:[%s1 + $0xa8] sm:$0xf]
        %v512 = vld [vmem:[%s1 + $0xac] sm:$0xf]
        %v513 = vld [vmem:[%s1 + $0xb0] sm:$0xf]
        %v514 = vld [vmem:[%s1 + $0xb4] sm:$0xf]
        %v515 = vld [vmem:[%s1 + $0xb8] sm:$0xf]
        %v516 = vld [vmem:[%s1 + $0xbc] sm:$0xf]
        %v517 = vld [vmem:[%s1 + $0xc0] sm:$0xf]
        %v518 = vld [vmem:[%s1 + $0xc4] sm:$0xf]
        %v519 = vld [vmem:[%s1 + $0xc8] sm:$0xf]
        %v520 = vld [vmem:[%s1 + $0xcc] sm:$0xf]
        %v521 = vld [vmem:[%s1 + $0xd0] sm:$0xf]
        %v522 = vld [vmem:[%s1 + $0xd4] sm:$0xf]
        %v523 = vld [vmem:[%s1 + $0xd8] sm:$0xf]
        %v524 = vld [vmem:[%s1 + $0xdc] sm:$0xf]
        %v525 = vld [vmem:[%s1 + $0xe0] sm:$0xf]
        %v526 = vld [vmem:[%s1 + $0xe4] sm:$0xf]
        %v527 = vld [vmem:[%s1 + $0xe8] sm:$0xf]
        %v528 = vld [vmem:[%s1 + $0xec] sm:$0xf]
        %v529 = vld [vmem:[%s1 + $0xf0] sm:$0xf]
        %v530 = vld [vmem:[%s1 + $0xf4] sm:$0xf]
        %v531 = vld [vmem:[%s1 + $0xf8] sm:$0xf]
        %v532 = vld [vmem:[%s1 + $0xfc] sm:$0xf]
        %v533 = vld [vmem:[%s2] sm:$0x1]
        %v535 = vperm.slane %v533, 0
        %v601 = vunpack.c.l.b16 %v469
        %v602 = vunpack.c.l.b16 %v470
        %v603 = vunpack.c.l.b16 %v471
        %v604 = vunpack.c.l.b16 %v472
        %v605 = vunpack.c.l.b16 %v473
        %v606 = vunpack.c.l.b16 %v474
        %v607 = vunpack.c.l.b16 %v475
        %v608 = vunpack.c.l.b16 %v476
        %v609 = vunpack.c.l.b16 %v477
        %v610 = vunpack.c.l.b16 %v478
        %v611 = vunpack.c.l.b16 %v479
        %v612 = vunpack.c.l.b16 %v480
        %v613 = vunpack.c.l.b16 %v481
        %v614 = vunpack.c.l.b16 %v482
        %v615 = vunpack.c.l.b16 %v483
        %v616 = vunpack.c.l.b16 %v484
        %v617 = vunpack.c.l.b16 %v485
        %v618 = vunpack.c.l.b16 %v486
        %v619 = vunpack.c.l.b16 %v487
        %v620 = vunpack.c.l.b16 %v488
        %v621 = vunpack.c.l.b16 %v489
        %v622 = vunpack.c.l.b16 %v490
        %v623 = vunpack.c.l.b16 %v491
        %v624 = vunpack.c.l.b16 %v492
        %v625 = vunpack.c.l.b16 %v493
        %v626 = vunpack.c.l.b16 %v494
        %v627 = vunpack.c.l.b16 %v495
        %v628 = vunpack.c.l.b16 %v496
        %v629 = vunpack.c.l.b16 %v497
        %v630 = vunpack.c.l.b16 %v498
        %v631 = vunpack.c.l.b16 %v499
        %v632 = vunpack.c.l.b16 %v500
        %v633 = vunpack.c.l.b16 %v501
        %v634 = vunpack.c.l.b16 %v502
        %v635 = vunpack.c.l.b16 %v503
        %v636 = vunpack.c.l.b16 %v504
        %v637 = vunpack.c.l.b16 %v505
        %v638 = vunpack.c.l.b16 %v506
        %v639 = vunpack.c.l.b16 %v507
        %v640 = vunpack.c.l.b16 %v508
        %v641 = vunpack.c.l.b16 %v509
        %v642 = vunpack.c.l.b16 %v510
        %v643 = vunpack.c.l.b16 %v511
        %v644 = vunpack.c.l.b16 %v512
        %v645 = vunpack.c.l.b16 %v513
        %v646 = vunpack.c.l.b16 %v514
        %v647 = vunpack.c.l.b16 %v515
        %v648 = vunpack.c.l.b16 %v516
        %v649 = vunpack.c.l.b16 %v517
        %v650 = vunpack.c.l.b16 %v518
        %v651 = vunpack.c.l.b16 %v519
        %v652 = vunpack.c.l.b16 %v520
        %v653 = vunpack.c.l.b16 %v521
        %v654 = vunpack.c.l.b16 %v522
        %v655 = vunpack.c.l.b16 %v523
        %v656 = vunpack.c.l.b16 %v524
        %v657 = vunpack.c.l.b16 %v525
        %v658 = vunpack.c.l.b16 %v526
        %v659 = vunpack.c.l.b16 %v527
        %v660 = vunpack.c.l.b16 %v528
        %v661 = vunpack.c.l.b16 %v529
        %v662 = vunpack.c.l.b16 %v530
        %v663 = vunpack.c.l.b16 %v531
        %v664 = vunpack.c.l.b16 %v532
        %v665 = vpack.c.b16 %v602, %v601
        %v666 = vpack.c.b16 %v604, %v603
        %v667 = vpack.c.b16 %v606, %v605
        %v668 = vpack.c.b16 %v608, %v607
        %v669 = vpack.c.b16 %v610, %v609
        %v670 = vpack.c.b16 %v612, %v611
        %v671 = vpack.c.b16 %v614, %v613
        %v672 = vpack.c.b16 %v616, %v615
        %v673 = vpack.c.b16 %v618, %v617
        %v674 = vpack.c.b16 %v620, %v619
        %v675 = vpack.c.b16 %v622, %v621
        %v676 = vpack.c.b16 %v624, %v623
        %v677 = vpack.c.b16 %v626, %v625
        %v678 = vpack.c.b16 %v628, %v627
        %v679 = vpack.c.b16 %v630, %v629
        %v680 = vpack.c.b16 %v632, %v631
        %v681 = vpack.c.b16 %v634, %v633
        %v682 = vpack.c.b16 %v636, %v635
        %v683 = vpack.c.b16 %v638, %v637
        %v684 = vpack.c.b16 %v640, %v639
        %v685 = vpack.c.b16 %v642, %v641
        %v686 = vpack.c.b16 %v644, %v643
        %v687 = vpack.c.b16 %v646, %v645
        %v688 = vpack.c.b16 %v648, %v647
        %v689 = vpack.c.b16 %v650, %v649
        %v690 = vpack.c.b16 %v652, %v651
        %v691 = vpack.c.b16 %v654, %v653
        %v692 = vpack.c.b16 %v656, %v655
        %v693 = vpack.c.b16 %v658, %v657
        %v694 = vpack.c.b16 %v660, %v659
        %v695 = vpack.c.b16 %v662, %v661
        %v696 = vpack.c.b16 %v664, %v663
        %729 = vmatpush.bf16.msra.mxu0 %v672
        %730 = vmatpush.bf16.msra.mxu0 %v671
        %731 = vmatpush.bf16.msra.mxu0 %v670
        %732 = vmatpush.bf16.msra.mxu0 %v669
        %733 = vmatpush.bf16.msra.mxu0 %v668
        %734 = vmatpush.bf16.msra.mxu0 %v667
        %735 = vmatpush.bf16.msra.mxu0 %v666
        %736 = vmatpush.bf16.msra.mxu0 %v665
        %737 = vmatmul.bf16.gmra.mxu0 %v405
        %v738 = vpop.f32.mrf.mxu0
        %v739 = vadd.f32 %v535, %v738
        %v740 = vpop.f32.mrf.mxu0
        %v741 = vadd.f32 %v535, %v740
        %742 = vmatmul.bf16.gmra.mxu0 %v409
        %v743 = vpop.f32.mrf.mxu0
        %v744 = vadd.f32 %v535, %v743
        %v745 = vpop.f32.mrf.mxu0
        %v746 = vadd.f32 %v535, %v745
        %747 = vmatmul.bf16.gmra.mxu0 %v413
        %v748 = vpop.f32.mrf.mxu0
        %v749 = vadd.f32 %v535, %v748
        %v750 = vpop.f32.mrf.mxu0
        %v751 = vadd.f32 %v535, %v750
        %752 = vmatmul.bf16.gmra.mxu0 %v417
        %v753 = vpop.f32.mrf.mxu0
        %v754 = vadd.f32 %v535, %v753
        %v755 = vpop.f32.mrf.mxu0
        %v756 = vadd.f32 %v535, %v755
        %757 = vmatmul.bf16.gmra.mxu0 %v421
        %v758 = vpop.f32.mrf.mxu0
        %v759 = vadd.f32 %v535, %v758
        %v760 = vpop.f32.mrf.mxu0
        %v761 = vadd.f32 %v535, %v760
        %762 = vmatmul.bf16.gmra.mxu0 %v425
        %v763 = vpop.f32.mrf.mxu0
        %v764 = vadd.f32 %v535, %v763
        %v765 = vpop.f32.mrf.mxu0
        %v766 = vadd.f32 %v535, %v765
        %767 = vmatmul.bf16.gmra.mxu0 %v429
        %v768 = vpop.f32.mrf.mxu0
        %v769 = vadd.f32 %v535, %v768
        %v770 = vpop.f32.mrf.mxu0
        %v771 = vadd.f32 %v535, %v770
        %772 = vmatmul.bf16.gmra.mxu0 %v433
        %v773 = vpop.f32.mrf.mxu0
        %v774 = vadd.f32 %v535, %v773
        %v775 = vpop.f32.mrf.mxu0
        %v776 = vadd.f32 %v535, %v775
        %777 = vmatmul.bf16.gmra.mxu0 %v437
        %v778 = vpop.f32.mrf.mxu0
        %v779 = vadd.f32 %v535, %v778
        %v780 = vpop.f32.mrf.mxu0
        %v781 = vadd.f32 %v535, %v780
        %782 = vmatmul.bf16.gmra.mxu0 %v441
        %v783 = vpop.f32.mrf.mxu0
        %v784 = vadd.f32 %v535, %v783
        %v785 = vpop.f32.mrf.mxu0
        %v786 = vadd.f32 %v535, %v785
        %787 = vmatmul.bf16.gmra.mxu0 %v445
        %v788 = vpop.f32.mrf.mxu0
        %v789 = vadd.f32 %v535, %v788
        %v790 = vpop.f32.mrf.mxu0
        %v791 = vadd.f32 %v535, %v790
        %792 = vmatmul.bf16.gmra.mxu0 %v449
        %v793 = vpop.f32.mrf.mxu0
        %v794 = vadd.f32 %v535, %v793
        %v795 = vpop.f32.mrf.mxu0
        %v796 = vadd.f32 %v535, %v795
        %797 = vmatmul.bf16.gmra.mxu0 %v453
        %v798 = vpop.f32.mrf.mxu0
        %v799 = vadd.f32 %v535, %v798
        %v800 = vpop.f32.mrf.mxu0
        %v801 = vadd.f32 %v535, %v800
        %802 = vmatmul.bf16.gmra.mxu0 %v457
        %v803 = vpop.f32.mrf.mxu0
        %v804 = vadd.f32 %v535, %v803
        %v805 = vpop.f32.mrf.mxu0
        %v806 = vadd.f32 %v535, %v805
        %807 = vmatmul.bf16.gmra.mxu0 %v461
        %v808 = vpop.f32.mrf.mxu0
        %v809 = vadd.f32 %v535, %v808
        %v810 = vpop.f32.mrf.mxu0
        %v811 = vadd.f32 %v535, %v810
        %812 = vmatmul.bf16.gmra.mxu0 %v465
        %v813 = vpop.f32.mrf.mxu0
        %v814 = vadd.f32 %v535, %v813
        %v815 = vpop.f32.mrf.mxu0
        %v816 = vadd.f32 %v535, %v815
        %817 = vdwg.mxu0
        %818 = vmatpush.bf16.msra.mxu0 %v680
        %819 = vmatpush.bf16.msra.mxu0 %v679
        %820 = vmatpush.bf16.msra.mxu0 %v678
        %821 = vmatpush.bf16.msra.mxu0 %v677
        %822 = vmatpush.bf16.msra.mxu0 %v676
        %823 = vmatpush.bf16.msra.mxu0 %v675
        %824 = vmatpush.bf16.msra.mxu0 %v674
        %825 = vmatpush.bf16.msra.mxu0 %v673
        %826 = vmatmul.bf16.gmra.mxu0 %v406
        %v827 = vpop.f32.mrf.mxu0
        %v828 = vadd.f32 %v739, %v827
        %v829 = vpop.f32.mrf.mxu0
        %v830 = vadd.f32 %v741, %v829
        %831 = vmatmul.bf16.gmra.mxu0 %v410
        %v832 = vpop.f32.mrf.mxu0
        %v833 = vadd.f32 %v744, %v832
        %v834 = vpop.f32.mrf.mxu0
        %v835 = vadd.f32 %v746, %v834
        %836 = vmatmul.bf16.gmra.mxu0 %v414
        %v837 = vpop.f32.mrf.mxu0
        %v838 = vadd.f32 %v749, %v837
        %v839 = vpop.f32.mrf.mxu0
        %v840 = vadd.f32 %v751, %v839
        %841 = vmatmul.bf16.gmra.mxu0 %v418
        %v842 = vpop.f32.mrf.mxu0
        %v843 = vadd.f32 %v754, %v842
        %v844 = vpop.f32.mrf.mxu0
        %v845 = vadd.f32 %v756, %v844
        %846 = vmatmul.bf16.gmra.mxu0 %v422
        %v847 = vpop.f32.mrf.mxu0
        %v848 = vadd.f32 %v759, %v847
        %v849 = vpop.f32.mrf.mxu0
        %v850 = vadd.f32 %v761, %v849
        %851 = vmatmul.bf16.gmra.mxu0 %v426
        %v852 = vpop.f32.mrf.mxu0
        %v853 = vadd.f32 %v764, %v852
        %v854 = vpop.f32.mrf.mxu0
        %v855 = vadd.f32 %v766, %v854
        %856 = vmatmul.bf16.gmra.mxu0 %v430
        %v857 = vpop.f32.mrf.mxu0
        %v858 = vadd.f32 %v769, %v857
        %v859 = vpop.f32.mrf.mxu0
        %v860 = vadd.f32 %v771, %v859
        %861 = vmatmul.bf16.gmra.mxu0 %v434
        %v862 = vpop.f32.mrf.mxu0
        %v863 = vadd.f32 %v774, %v862
        %v864 = vpop.f32.mrf.mxu0
        %v865 = vadd.f32 %v776, %v864
        %866 = vmatmul.bf16.gmra.mxu0 %v438
        %v867 = vpop.f32.mrf.mxu0
        %v868 = vadd.f32 %v779, %v867
        %v869 = vpop.f32.mrf.mxu0
        %v870 = vadd.f32 %v781, %v869
        %871 = vmatmul.bf16.gmra.mxu0 %v442
        %v872 = vpop.f32.mrf.mxu0
        %v873 = vadd.f32 %v784, %v872
        %v874 = vpop.f32.mrf.mxu0
        %v875 = vadd.f32 %v786, %v874
        %876 = vmatmul.bf16.gmra.mxu0 %v446
        %v877 = vpop.f32.mrf.mxu0
        %v878 = vadd.f32 %v789, %v877
        %v879 = vpop.f32.mrf.mxu0
        %v880 = vadd.f32 %v791, %v879
        %881 = vmatmul.bf16.gmra.mxu0 %v450
        %v882 = vpop.f32.mrf.mxu0
        %v883 = vadd.f32 %v794, %v882
        %v884 = vpop.f32.mrf.mxu0
        %v885 = vadd.f32 %v796, %v884
        %886 = vmatmul.bf16.gmra.mxu0 %v454
        %v887 = vpop.f32.mrf.mxu0
        %v888 = vadd.f32 %v799, %v887
        %v889 = vpop.f32.mrf.mxu0
        %v890 = vadd.f32 %v801, %v889
        %891 = vmatmul.bf16.gmra.mxu0 %v458
        %v892 = vpop.f32.mrf.mxu0
        %v893 = vadd.f32 %v804, %v892
        %v894 = vpop.f32.mrf.mxu0
        %v895 = vadd.f32 %v806, %v894
        %896 = vmatmul.bf16.gmra.mxu0 %v462
        %v897 = vpop.f32.mrf.mxu0
        %v898 = vadd.f32 %v809, %v897
        %v899 = vpop.f32.mrf.mxu0
        %v900 = vadd.f32 %v811, %v899
        %901 = vmatmul.bf16.gmra.mxu0 %v466
        %v902 = vpop.f32.mrf.mxu0
        %v903 = vadd.f32 %v814, %v902
        %v904 = vpop.f32.mrf.mxu0
        %v905 = vadd.f32 %v816, %v904
        %906 = vdwg.mxu0
        %907 = vmatpush.bf16.msra.mxu0 %v688
        %908 = vmatpush.bf16.msra.mxu0 %v687
        %909 = vmatpush.bf16.msra.mxu0 %v686
        %910 = vmatpush.bf16.msra.mxu0 %v685
        %911 = vmatpush.bf16.msra.mxu0 %v684
        %912 = vmatpush.bf16.msra.mxu0 %v683
        %913 = vmatpush.bf16.msra.mxu0 %v682
        %914 = vmatpush.bf16.msra.mxu0 %v681
        %915 = vmatmul.bf16.gmra.mxu0 %v407
        %v916 = vpop.f32.mrf.mxu0
        %v917 = vadd.f32 %v828, %v916
        %v918 = vpop.f32.mrf.mxu0
        %v919 = vadd.f32 %v830, %v918
        %920 = vmatmul.bf16.gmra.mxu0 %v411
        %v921 = vpop.f32.mrf.mxu0
        %v922 = vadd.f32 %v833, %v921
        %v923 = vpop.f32.mrf.mxu0
        %v924 = vadd.f32 %v835, %v923
        %925 = vmatmul.bf16.gmra.mxu0 %v415
        %v926 = vpop.f32.mrf.mxu0
        %v927 = vadd.f32 %v838, %v926
        %v928 = vpop.f32.mrf.mxu0
        %v929 = vadd.f32 %v840, %v928
        %930 = vmatmul.bf16.gmra.mxu0 %v419
        %v931 = vpop.f32.mrf.mxu0
        %v932 = vadd.f32 %v843, %v931
        %v933 = vpop.f32.mrf.mxu0
        %v934 = vadd.f32 %v845, %v933
        %935 = vmatmul.bf16.gmra.mxu0 %v423
        %v936 = vpop.f32.mrf.mxu0
        %v937 = vadd.f32 %v848, %v936
        %v938 = vpop.f32.mrf.mxu0
        %v939 = vadd.f32 %v850, %v938
        %940 = vmatmul.bf16.gmra.mxu0 %v427
        %v941 = vpop.f32.mrf.mxu0
        %v942 = vadd.f32 %v853, %v941
        %v943 = vpop.f32.mrf.mxu0
        %v944 = vadd.f32 %v855, %v943
        %945 = vmatmul.bf16.gmra.mxu0 %v431
        %v946 = vpop.f32.mrf.mxu0
        %v947 = vadd.f32 %v858, %v946
        %v948 = vpop.f32.mrf.mxu0
        %v949 = vadd.f32 %v860, %v948
        %950 = vmatmul.bf16.gmra.mxu0 %v435
        %v951 = vpop.f32.mrf.mxu0
        %v952 = vadd.f32 %v863, %v951
        %v953 = vpop.f32.mrf.mxu0
        %v954 = vadd.f32 %v865, %v953
        %955 = vmatmul.bf16.gmra.mxu0 %v439
        %v956 = vpop.f32.mrf.mxu0
        %v957 = vadd.f32 %v868, %v956
        %v958 = vpop.f32.mrf.mxu0
        %v959 = vadd.f32 %v870, %v958
        %960 = vmatmul.bf16.gmra.mxu0 %v443
        %v961 = vpop.f32.mrf.mxu0
        %v962 = vadd.f32 %v873, %v961
        %v963 = vpop.f32.mrf.mxu0
        %v964 = vadd.f32 %v875, %v963
        %965 = vmatmul.bf16.gmra.mxu0 %v447
        %v966 = vpop.f32.mrf.mxu0
        %v967 = vadd.f32 %v878, %v966
        %v968 = vpop.f32.mrf.mxu0
        %v969 = vadd.f32 %v880, %v968
        %970 = vmatmul.bf16.gmra.mxu0 %v451
        %v971 = vpop.f32.mrf.mxu0
        %v972 = vadd.f32 %v883, %v971
        %v973 = vpop.f32.mrf.mxu0
        %v974 = vadd.f32 %v885, %v973
        %975 = vmatmul.bf16.gmra.mxu0 %v455
        %v976 = vpop.f32.mrf.mxu0
        %v977 = vadd.f32 %v888, %v976
        %v978 = vpop.f32.mrf.mxu0
        %v979 = vadd.f32 %v890, %v978
        %980 = vmatmul.bf16.gmra.mxu0 %v459
        %v981 = vpop.f32.mrf.mxu0
        %v982 = vadd.f32 %v893, %v981
        %v983 = vpop.f32.mrf.mxu0
        %v984 = vadd.f32 %v895, %v983
        %985 = vmatmul.bf16.gmra.mxu0 %v463
        %v986 = vpop.f32.mrf.mxu0
        %v987 = vadd.f32 %v898, %v986
        %v988 = vpop.f32.mrf.mxu0
        %v989 = vadd.f32 %v900, %v988
        %990 = vmatmul.bf16.gmra.mxu0 %v467
        %v991 = vpop.f32.mrf.mxu0
        %v992 = vadd.f32 %v903, %v991
        %v993 = vpop.f32.mrf.mxu0
        %v994 = vadd.f32 %v905, %v993
        %995 = vdwg.mxu0
        %996 = vmatpush.bf16.msra.mxu0 %v696
        %997 = vmatpush.bf16.msra.mxu0 %v695
        %998 = vmatpush.bf16.msra.mxu0 %v694
        %999 = vmatpush.bf16.msra.mxu0 %v693
        %1000 = vmatpush.bf16.msra.mxu0 %v692
        %1001 = vmatpush.bf16.msra.mxu0 %v691
        %1002 = vmatpush.bf16.msra.mxu0 %v690
        %1003 = vmatpush.bf16.msra.mxu0 %v689
        %1004 = vmatmul.bf16.gmra.mxu0 %v408
        %v1005 = vpop.f32.mrf.mxu0
        %v1006 = vadd.f32 %v917, %v1005
        %v1007 = vpop.f32.mrf.mxu0
        %v1008 = vadd.f32 %v919, %v1007
        %1009 = vmatmul.bf16.gmra.mxu0 %v412
        %v1010 = vpop.f32.mrf.mxu0
        %v1011 = vadd.f32 %v922, %v1010
        %v1012 = vpop.f32.mrf.mxu0
        %v1013 = vadd.f32 %v924, %v1012
        %1014 = vmatmul.bf16.gmra.mxu0 %v416
        %v1015 = vpop.f32.mrf.mxu0
        %v1016 = vadd.f32 %v927, %v1015
        %v1017 = vpop.f32.mrf.mxu0
        %v1018 = vadd.f32 %v929, %v1017
        %1019 = vmatmul.bf16.gmra.mxu0 %v420
        %v1020 = vpop.f32.mrf.mxu0
        %v1021 = vadd.f32 %v932, %v1020
        %v1022 = vpop.f32.mrf.mxu0
        %v1023 = vadd.f32 %v934, %v1022
        %1024 = vmatmul.bf16.gmra.mxu0 %v424
        %v1025 = vpop.f32.mrf.mxu0
        %v1026 = vadd.f32 %v937, %v1025
        %v1027 = vpop.f32.mrf.mxu0
        %v1028 = vadd.f32 %v939, %v1027
        %1029 = vmatmul.bf16.gmra.mxu0 %v428
        %v1030 = vpop.f32.mrf.mxu0
        %v1031 = vadd.f32 %v942, %v1030
        %v1032 = vpop.f32.mrf.mxu0
        %v1033 = vadd.f32 %v944, %v1032
        %1034 = vmatmul.bf16.gmra.mxu0 %v432
        %v1035 = vpop.f32.mrf.mxu0
        %v1036 = vadd.f32 %v947, %v1035
        %v1037 = vpop.f32.mrf.mxu0
        %v1038 = vadd.f32 %v949, %v1037
        %1039 = vmatmul.bf16.gmra.mxu0 %v436
        %v1040 = vpop.f32.mrf.mxu0
        %v1041 = vadd.f32 %v952, %v1040
        %v1042 = vpop.f32.mrf.mxu0
        %v1043 = vadd.f32 %v954, %v1042
        %1044 = vmatmul.bf16.gmra.mxu0 %v440
        %v1045 = vpop.f32.mrf.mxu0
        %v1046 = vadd.f32 %v957, %v1045
        %v1047 = vpop.f32.mrf.mxu0
        %v1048 = vadd.f32 %v959, %v1047
        %1049 = vmatmul.bf16.gmra.mxu0 %v444
        %v1050 = vpop.f32.mrf.mxu0
        %v1051 = vadd.f32 %v962, %v1050
        %v1052 = vpop.f32.mrf.mxu0
        %v1053 = vadd.f32 %v964, %v1052
        %1054 = vmatmul.bf16.gmra.mxu0 %v448
        %v1055 = vpop.f32.mrf.mxu0
        %v1056 = vadd.f32 %v967, %v1055
        %v1057 = vpop.f32.mrf.mxu0
        %v1058 = vadd.f32 %v969, %v1057
        %1059 = vmatmul.bf16.gmra.mxu0 %v452
        %v1060 = vpop.f32.mrf.mxu0
        %v1061 = vadd.f32 %v972, %v1060
        %v1062 = vpop.f32.mrf.mxu0
        %v1063 = vadd.f32 %v974, %v1062
        %1064 = vmatmul.bf16.gmra.mxu0 %v456
        %v1065 = vpop.f32.mrf.mxu0
        %v1066 = vadd.f32 %v977, %v1065
        %v1067 = vpop.f32.mrf.mxu0
        %v1068 = vadd.f32 %v979, %v1067
        %1069 = vmatmul.bf16.gmra.mxu0 %v460
        %v1070 = vpop.f32.mrf.mxu0
        %v1071 = vadd.f32 %v982, %v1070
        %v1072 = vpop.f32.mrf.mxu0
        %v1073 = vadd.f32 %v984, %v1072
        %1074 = vmatmul.bf16.gmra.mxu0 %v464
        %v1075 = vpop.f32.mrf.mxu0
        %v1076 = vadd.f32 %v987, %v1075
        %v1077 = vpop.f32.mrf.mxu0
        %v1078 = vadd.f32 %v989, %v1077
        %1079 = vmatmul.bf16.gmra.mxu0 %v468
        %v1080 = vpop.f32.mrf.mxu0
        %v1081 = vadd.f32 %v992, %v1080
        %v1082 = vpop.f32.mrf.mxu0
        %v1083 = vadd.f32 %v994, %v1082
        %1084 = vdwg.mxu0
        %v1085 = vmax.f32 %v1006, 0.0
        %v1086 = vmax.f32 %v1008, 0.0
        %v1087 = vmax.f32 %v1011, 0.0
        %v1088 = vmax.f32 %v1013, 0.0
        %v1089 = vmax.f32 %v1016, 0.0
        %v1090 = vmax.f32 %v1018, 0.0
        %v1091 = vmax.f32 %v1021, 0.0
        %v1092 = vmax.f32 %v1023, 0.0
        %v1093 = vmax.f32 %v1026, 0.0
        %v1094 = vmax.f32 %v1028, 0.0
        %v1095 = vmax.f32 %v1031, 0.0
        %v1096 = vmax.f32 %v1033, 0.0
        %v1097 = vmax.f32 %v1036, 0.0
        %v1098 = vmax.f32 %v1038, 0.0
        %v1099 = vmax.f32 %v1041, 0.0
        %v1100 = vmax.f32 %v1043, 0.0
        %v1101 = vmax.f32 %v1046, 0.0
        %v1102 = vmax.f32 %v1048, 0.0
        %v1103 = vmax.f32 %v1051, 0.0
        %v1104 = vmax.f32 %v1053, 0.0
        %v1105 = vmax.f32 %v1056, 0.0
        %v1106 = vmax.f32 %v1058, 0.0
        %v1107 = vmax.f32 %v1061, 0.0
        %v1108 = vmax.f32 %v1063, 0.0
        %v1109 = vmax.f32 %v1066, 0.0
        %v1110 = vmax.f32 %v1068, 0.0
        %v1111 = vmax.f32 %v1071, 0.0
        %v1112 = vmax.f32 %v1073, 0.0
        %v1113 = vmax.f32 %v1076, 0.0
        %v1114 = vmax.f32 %v1078, 0.0
        %v1115 = vmax.f32 %v1081, 0.0
        %v1116 = vmax.f32 %v1083, 0.0
        %1117 = vst [vmem:[#allocation2] sm:$0xff] 0.0
        %1118 = vst [vmem:[#allocation2 + $0x8] sm:$0xff] 0.0
        %1119 = vst [vmem:[#allocation2 + $0x10] sm:$0xff] 0.0
        %1120 = vst [vmem:[#allocation2 + $0x18] sm:$0xff] 0.0
        %1121 = vst [vmem:[#allocation2 + $0x20] sm:$0xff] 0.0
        %1122 = vst [vmem:[#allocation2 + $0x28] sm:$0xff] 0.0
        %1123 = vst [vmem:[#allocation2 + $0x30] sm:$0xff] 0.0
        %1124 = vst [vmem:[#allocation2 + $0x38] sm:$0xff] 0.0
        %1125 = vst [vmem:[#allocation2 + $0x40] sm:$0xff] 0.0
        %1126 = vst [vmem:[#allocation2 + $0x48] sm:$0xff] 0.0
        %1127 = vst [vmem:[#allocation2 + $0x50] sm:$0xff] 0.0
        %1128 = vst [vmem:[#allocation2 + $0x58] sm:$0xff] 0.0
        %1129 = vst [vmem:[#allocation2 + $0x60] sm:$0xff] 0.0
        %1130 = vst [vmem:[#allocation2 + $0x68] sm:$0xff] 0.0
        %1131 = vst [vmem:[#allocation2 + $0x70] sm:$0xff] 0.0
        %1132 = vst [vmem:[#allocation2 + $0x78] sm:$0xff] 0.0
        %1133 = vst [vmem:[#allocation2 + $0x80] sm:$0xff] 0.0
        %1134 = vst [vmem:[#allocation2 + $0x88] sm:$0xff] 0.0
        %1135 = vst [vmem:[#allocation2 + $0x90] sm:$0xff] 0.0
        %1136 = vst [vmem:[#allocation2 + $0x98] sm:$0xff] 0.0
        %1137 = vst [vmem:[#allocation2 + $0xa0] sm:$0xff] 0.0
        %1138 = vst [vmem:[#allocation2 + $0xa8] sm:$0xff] 0.0
        %1139 = vst [vmem:[#allocation2 + $0xb0] sm:$0xff] 0.0
        %1140 = vst [vmem:[#allocation2 + $0xb8] sm:$0xff] 0.0
        %1141 = vst [vmem:[#allocation2 + $0xc0] sm:$0xff] 0.0
        %1142 = vst [vmem:[#allocation2 + $0xc8] sm:$0xff] 0.0
        %1143 = vst [vmem:[#allocation2 + $0xd0] sm:$0xff] 0.0
        %1144 = vst [vmem:[#allocation2 + $0xd8] sm:$0xff] 0.0
        %1145 = vst [vmem:[#allocation2 + $0xe0] sm:$0xff] 0.0
        %1146 = vst [vmem:[#allocation2 + $0xe8] sm:$0xff] 0.0
        %1147 = vst [vmem:[#allocation2 + $0xf0] sm:$0xff] 0.0
        %1148 = vst [vmem:[#allocation2 + $0xf8] sm:$0xff] 0.0
        %1149 = vst [vmem:[#allocation2 + $0x100] sm:$0xff] 0.0
        %1150 = vst [vmem:[#allocation2 + $0x108] sm:$0xff] 0.0
        %1151 = vst [vmem:[#allocation2 + $0x110] sm:$0xff] 0.0
        %1152 = vst [vmem:[#allocation2 + $0x118] sm:$0xff] 0.0
        %1153 = vst [vmem:[#allocation2 + $0x120] sm:$0xff] 0.0
        %1154 = vst [vmem:[#allocation2 + $0x128] sm:$0xff] 0.0
        %1155 = vst [vmem:[#allocation2 + $0x18] sm:$0xff] %v1085
        %1156 = vst [vmem:[#allocation2 + $0x20] sm:$0xff] %v1086
        %1157 = vst [vmem:[#allocation2 + $0x28] sm:$0xff] %v1087
        %1158 = vst [vmem:[#allocation2 + $0x30] sm:$0xff] %v1088
        %1159 = vst [vmem:[#allocation2 + $0x38] sm:$0xff] %v1089
        %1160 = vst [vmem:[#allocation2 + $0x40] sm:$0xff] %v1090
        %1161 = vst [vmem:[#allocation2 + $0x48] sm:$0xff] %v1091
        %1162 = vst [vmem:[#allocation2 + $0x50] sm:$0xff] %v1092
        %1163 = vst [vmem:[#allocation2 + $0x58] sm:$0xff] %v1093
        %1164 = vst [vmem:[#allocation2 + $0x60] sm:$0xff] %v1094
        %1165 = vst [vmem:[#allocation2 + $0x68] sm:$0xff] %v1095
        %1166 = vst [vmem:[#allocation2 + $0x70] sm:$0xff] %v1096
        %1167 = vst [vmem:[#allocation2 + $0x78] sm:$0xff] %v1097
        %1168 = vst [vmem:[#allocation2 + $0x80] sm:$0xff] %v1098
        %1169 = vst [vmem:[#allocation2 + $0x88] sm:$0xff] %v1099
        %1170 = vst [vmem:[#allocation2 + $0x90] sm:$0xff] %v1100
        %1171 = vst [vmem:[#allocation2 + $0x98] sm:$0xff] %v1101
        %1172 = vst [vmem:[#allocation2 + $0xa0] sm:$0xff] %v1102
        %1173 = vst [vmem:[#allocation2 + $0xa8] sm:$0xff] %v1103
        %1174 = vst [vmem:[#allocation2 + $0xb0] sm:$0xff] %v1104
        %1175 = vst [vmem:[#allocation2 + $0xb8] sm:$0xff] %v1105
        %1176 = vst [vmem:[#allocation2 + $0xc0] sm:$0xff] %v1106
        %1177 = vst [vmem:[#allocation2 + $0xc8] sm:$0xff] %v1107
        %1178 = vst [vmem:[#allocation2 + $0xd0] sm:$0xff] %v1108
        %1179 = vst [vmem:[#allocation2 + $0xd8] sm:$0xff] %v1109
        %1180 = vst [vmem:[#allocation2 + $0xe0] sm:$0xff] %v1110
        %1181 = vst [vmem:[#allocation2 + $0xe8] sm:$0xff] %v1111
        %1182 = vst [vmem:[#allocation2 + $0xf0] sm:$0xff] %v1112
        %1183 = vst [vmem:[#allocation2 + $0xf8] sm:$0xff] %v1113
        %1184 = vst [vmem:[#allocation2 + $0x100] sm:$0xff] %v1114
        %1185 = vst [vmem:[#allocation2 + $0x108] sm:$0xff] %v1115
        %1186 = vst [vmem:[#allocation2 + $0x110] sm:$0xff] %v1116
        %v1187 = vlaneseq
        %v1188 = vshrl.u32 %v1187, 7
        %v1189 = vadd.s32 %v1188, 8
        %v1190 = vadd.s32 %v1188, 16
        %v1191 = vadd.s32 %v1188, 24
        %v1192 = vadd.s32 %v1188, 32
        %v1193 = vadd.s32 %v1188, 40
        %v1194 = vadd.s32 %v1188, 48
        %v1195 = vadd.s32 %v1188, 56
        %v1196 = vadd.s32 %v1188, 64
        %v1197 = vadd.s32 %v1188, 72
        %v1198 = vadd.s32 %v1188, 80
        %v1199 = vadd.s32 %v1188, 88
        %v1200 = vadd.s32 %v1188, 96
        %v1201 = vadd.s32 %v1188, 104
        %v1202 = vadd.s32 %v1188, 112
        %v1203 = vadd.s32 %v1188, 120
        %v1204 = vadd.s32 %v1188, 128
        %v1205 = vadd.s32 %v1188, 136
        %v1206 = vadd.s32 %v1188, 144
        %v1207 = vadd.s32 %v1188, 152
        %v1208 = vadd.s32 %v1188, 160
        %v1209 = vadd.s32 %v1188, 168
        %v1210 = vadd.s32 %v1188, 176
        %v1211 = vadd.s32 %v1188, 184
        %v1212 = vadd.s32 %v1188, 192
        %v1213 = vadd.s32 %v1188, 200
        %v1214 = vadd.s32 %v1188, 208
        %v1215 = vadd.s32 %v1188, 216
        %v1216 = vadd.s32 %v1188, 224
        %v1217 = vadd.s32 %v1188, 232
        %v1218 = vadd.s32 %v1188, 240
        %v1219 = vadd.s32 %v1188, 248
        %v1220 = vadd.s32 %v1188, 256
        %v1221 = vadd.s32 %v1188, 264
        %v1222 = vadd.s32 %v1188, 272
        %v1223 = vadd.s32 %v1188, 280
        %vm1224 = vcmp.lt.s32.totalorder %v1188, 0
        %v1225 = vsub.s32 0, %v1188
        %v1226 = vsel %vm1224, %v1225, %v1188
        %v1227 = vshrl.u32 %v1226, 4
        %v1228 = vand.u32 %v1226, 15
        %v1229 = vsub.s32 0, %v1228
        %v1230 = vsel %vm1224, %v1229, %v1228
        %vm1231 = vcmp.lt.s32.totalorder %v1189, 0
        %v1232 = vsub.s32 0, %v1189
        %v1233 = vsel %vm1231, %v1232, %v1189
        %v1234 = vshrl.u32 %v1233, 4
        %v1235 = vand.u32 %v1233, 15
        %v1236 = vsub.s32 0, %v1235
        %v1237 = vsel %vm1231, %v1236, %v1235
        %vm1238 = vcmp.lt.s32.totalorder %v1190, 0
        %v1239 = vsub.s32 0, %v1190
        %v1240 = vsel %vm1238, %v1239, %v1190
        %v1241 = vshrl.u32 %v1240, 4
        %v1242 = vand.u32 %v1240, 15
        %v1243 = vsub.s32 0, %v1242
        %v1244 = vsel %vm1238, %v1243, %v1242
        %vm1245 = vcmp.lt.s32.totalorder %v1191, 0
        %v1246 = vsub.s32 0, %v1191
        %v1247 = vsel %vm1245, %v1246, %v1191
        %v1248 = vshrl.u32 %v1247, 4
        %v1249 = vand.u32 %v1247, 15
        %v1250 = vsub.s32 0, %v1249
        %v1251 = vsel %vm1245, %v1250, %v1249
        %vm1252 = vcmp.lt.s32.totalorder %v1192, 0
        %v1253 = vsub.s32 0, %v1192
        %v1254 = vsel %vm1252, %v1253, %v1192
        %v1255 = vshrl.u32 %v1254, 4
        %v1256 = vand.u32 %v1254, 15
        %v1257 = vsub.s32 0, %v1256
        %v1258 = vsel %vm1252, %v1257, %v1256
        %vm1259 = vcmp.lt.s32.totalorder %v1193, 0
        %v1260 = vsub.s32 0, %v1193
        %v1261 = vsel %vm1259, %v1260, %v1193
        %v1262 = vshrl.u32 %v1261, 4
        %v1263 = vand.u32 %v1261, 15
        %v1264 = vsub.s32 0, %v1263
        %v1265 = vsel %vm1259, %v1264, %v1263
        %vm1266 = vcmp.lt.s32.totalorder %v1194, 0
        %v1267 = vsub.s32 0, %v1194
        %v1268 = vsel %vm1266, %v1267, %v1194
        %v1269 = vshrl.u32 %v1268, 4
        %v1270 = vand.u32 %v1268, 15
        %v1271 = vsub.s32 0, %v1270
        %v1272 = vsel %vm1266, %v1271, %v1270
        %vm1273 = vcmp.lt.s32.totalorder %v1195, 0
        %v1274 = vsub.s32 0, %v1195
        %v1275 = vsel %vm1273, %v1274, %v1195
        %v1276 = vshrl.u32 %v1275, 4
        %v1277 = vand.u32 %v1275, 15
        %v1278 = vsub.s32 0, %v1277
        %v1279 = vsel %vm1273, %v1278, %v1277
        %vm1280 = vcmp.lt.s32.totalorder %v1196, 0
        %v1281 = vsub.s32 0, %v1196
        %v1282 = vsel %vm1280, %v1281, %v1196
        %v1283 = vshrl.u32 %v1282, 4
        %v1284 = vand.u32 %v1282, 15
        %v1285 = vsub.s32 0, %v1284
        %v1286 = vsel %vm1280, %v1285, %v1284
        %vm1287 = vcmp.lt.s32.totalorder %v1197, 0
        %v1288 = vsub.s32 0, %v1197
        %v1289 = vsel %vm1287, %v1288, %v1197
        %v1290 = vshrl.u32 %v1289, 4
        %v1291 = vand.u32 %v1289, 15
        %v1292 = vsub.s32 0, %v1291
        %v1293 = vsel %vm1287, %v1292, %v1291
        %vm1294 = vcmp.lt.s32.totalorder %v1198, 0
        %v1295 = vsub.s32 0, %v1198
        %v1296 = vsel %vm1294, %v1295, %v1198
        %v1297 = vshrl.u32 %v1296, 4
        %v1298 = vand.u32 %v1296, 15
        %v1299 = vsub.s32 0, %v1298
        %v1300 = vsel %vm1294, %v1299, %v1298
        %vm1301 = vcmp.lt.s32.totalorder %v1199, 0
        %v1302 = vsub.s32 0, %v1199
        %v1303 = vsel %vm1301, %v1302, %v1199
        %v1304 = vshrl.u32 %v1303, 4
        %v1305 = vand.u32 %v1303, 15
        %v1306 = vsub.s32 0, %v1305
        %v1307 = vsel %vm1301, %v1306, %v1305
        %vm1308 = vcmp.lt.s32.totalorder %v1200, 0
        %v1309 = vsub.s32 0, %v1200
        %v1310 = vsel %vm1308, %v1309, %v1200
        %v1311 = vshrl.u32 %v1310, 4
        %v1312 = vand.u32 %v1310, 15
        %v1313 = vsub.s32 0, %v1312
        %v1314 = vsel %vm1308, %v1313, %v1312
        %vm1315 = vcmp.lt.s32.totalorder %v1201, 0
        %v1316 = vsub.s32 0, %v1201
        %v1317 = vsel %vm1315, %v1316, %v1201
        %v1318 = vshrl.u32 %v1317, 4
        %v1319 = vand.u32 %v1317, 15
        %v1320 = vsub.s32 0, %v1319
        %v1321 = vsel %vm1315, %v1320, %v1319
        %vm1322 = vcmp.lt.s32.totalorder %v1202, 0
        %v1323 = vsub.s32 0, %v1202
        %v1324 = vsel %vm1322, %v1323, %v1202
        %v1325 = vshrl.u32 %v1324, 4
        %v1326 = vand.u32 %v1324, 15
        %v1327 = vsub.s32 0, %v1326
        %v1328 = vsel %vm1322, %v1327, %v1326
        %vm1329 = vcmp.lt.s32.totalorder %v1203, 0
        %v1330 = vsub.s32 0, %v1203
        %v1331 = vsel %vm1329, %v1330, %v1203
        %v1332 = vshrl.u32 %v1331, 4
        %v1333 = vand.u32 %v1331, 15
        %v1334 = vsub.s32 0, %v1333
        %v1335 = vsel %vm1329, %v1334, %v1333
        %vm1336 = vcmp.lt.s32.totalorder %v1204, 0
        %v1337 = vsub.s32 0, %v1204
        %v1338 = vsel %vm1336, %v1337, %v1204
        %v1339 = vshrl.u32 %v1338, 4
        %v1340 = vand.u32 %v1338, 15
        %v1341 = vsub.s32 0, %v1340
        %v1342 = vsel %vm1336, %v1341, %v1340
        %vm1343 = vcmp.lt.s32.totalorder %v1205, 0
        %v1344 = vsub.s32 0, %v1205
        %v1345 = vsel %vm1343, %v1344, %v1205
        %v1346 = vshrl.u32 %v1345, 4
        %v1347 = vand.u32 %v1345, 15
        %v1348 = vsub.s32 0, %v1347
        %v1349 = vsel %vm1343, %v1348, %v1347
        %vm1350 = vcmp.lt.s32.totalorder %v1206, 0
        %v1351 = vsub.s32 0, %v1206
        %v1352 = vsel %vm1350, %v1351, %v1206
        %v1353 = vshrl.u32 %v1352, 4
        %v1354 = vand.u32 %v1352, 15
        %v1355 = vsub.s32 0, %v1354
        %v1356 = vsel %vm1350, %v1355, %v1354
        %vm1357 = vcmp.lt.s32.totalorder %v1207, 0
        %v1358 = vsub.s32 0, %v1207
        %v1359 = vsel %vm1357, %v1358, %v1207
        %v1360 = vshrl.u32 %v1359, 4
        %v1361 = vand.u32 %v1359, 15
        %v1362 = vsub.s32 0, %v1361
        %v1363 = vsel %vm1357, %v1362, %v1361
        %vm1364 = vcmp.lt.s32.totalorder %v1208, 0
        %v1365 = vsub.s32 0, %v1208
        %v1366 = vsel %vm1364, %v1365, %v1208
        %v1367 = vshrl.u32 %v1366, 4
        %v1368 = vand.u32 %v1366, 15
        %v1369 = vsub.s32 0, %v1368
        %v1370 = vsel %vm1364, %v1369, %v1368
        %vm1371 = vcmp.lt.s32.totalorder %v1209, 0
        %v1372 = vsub.s32 0, %v1209
        %v1373 = vsel %vm1371, %v1372, %v1209
        %v1374 = vshrl.u32 %v1373, 4
        %v1375 = vand.u32 %v1373, 15
        %v1376 = vsub.s32 0, %v1375
        %v1377 = vsel %vm1371, %v1376, %v1375
        %vm1378 = vcmp.lt.s32.totalorder %v1210, 0
        %v1379 = vsub.s32 0, %v1210
        %v1380 = vsel %vm1378, %v1379, %v1210
        %v1381 = vshrl.u32 %v1380, 4
        %v1382 = vand.u32 %v1380, 15
        %v1383 = vsub.s32 0, %v1382
        %v1384 = vsel %vm1378, %v1383, %v1382
        %vm1385 = vcmp.lt.s32.totalorder %v1211, 0
        %v1386 = vsub.s32 0, %v1211
        %v1387 = vsel %vm1385, %v1386, %v1211
        %v1388 = vshrl.u32 %v1387, 4
        %v1389 = vand.u32 %v1387, 15
        %v1390 = vsub.s32 0, %v1389
        %v1391 = vsel %vm1385, %v1390, %v1389
        %vm1392 = vcmp.lt.s32.totalorder %v1212, 0
        %v1393 = vsub.s32 0, %v1212
        %v1394 = vsel %vm1392, %v1393, %v1212
        %v1395 = vshrl.u32 %v1394, 4
        %v1396 = vand.u32 %v1394, 15
        %v1397 = vsub.s32 0, %v1396
        %v1398 = vsel %vm1392, %v1397, %v1396
        %vm1399 = vcmp.lt.s32.totalorder %v1213, 0
        %v1400 = vsub.s32 0, %v1213
        %v1401 = vsel %vm1399, %v1400, %v1213
        %v1402 = vshrl.u32 %v1401, 4
        %v1403 = vand.u32 %v1401, 15
        %v1404 = vsub.s32 0, %v1403
        %v1405 = vsel %vm1399, %v1404, %v1403
        %vm1406 = vcmp.lt.s32.totalorder %v1214, 0
        %v1407 = vsub.s32 0, %v1214
        %v1408 = vsel %vm1406, %v1407, %v1214
        %v1409 = vshrl.u32 %v1408, 4
        %v1410 = vand.u32 %v1408, 15
        %v1411 = vsub.s32 0, %v1410
        %v1412 = vsel %vm1406, %v1411, %v1410
        %vm1413 = vcmp.lt.s32.totalorder %v1215, 0
        %v1414 = vsub.s32 0, %v1215
        %v1415 = vsel %vm1413, %v1414, %v1215
        %v1416 = vshrl.u32 %v1415, 4
        %v1417 = vand.u32 %v1415, 15
        %v1418 = vsub.s32 0, %v1417
        %v1419 = vsel %vm1413, %v1418, %v1417
        %vm1420 = vcmp.lt.s32.totalorder %v1216, 0
        %v1421 = vsub.s32 0, %v1216
        %v1422 = vsel %vm1420, %v1421, %v1216
        %v1423 = vshrl.u32 %v1422, 4
        %v1424 = vand.u32 %v1422, 15
        %v1425 = vsub.s32 0, %v1424
        %v1426 = vsel %vm1420, %v1425, %v1424
        %vm1427 = vcmp.lt.s32.totalorder %v1217, 0
        %v1428 = vsub.s32 0, %v1217
        %v1429 = vsel %vm1427, %v1428, %v1217
        %v1430 = vshrl.u32 %v1429, 4
        %v1431 = vand.u32 %v1429, 15
        %v1432 = vsub.s32 0, %v1431
        %v1433 = vsel %vm1427, %v1432, %v1431
        %vm1434 = vcmp.lt.s32.totalorder %v1218, 0
        %v1435 = vsub.s32 0, %v1218
        %v1436 = vsel %vm1434, %v1435, %v1218
        %v1437 = vshrl.u32 %v1436, 4
        %v1438 = vand.u32 %v1436, 15
        %v1439 = vsub.s32 0, %v1438
        %v1440 = vsel %vm1434, %v1439, %v1438
        %vm1441 = vcmp.lt.s32.totalorder %v1219, 0
        %v1442 = vsub.s32 0, %v1219
        %v1443 = vsel %vm1441, %v1442, %v1219
        %v1444 = vshrl.u32 %v1443, 4
        %v1445 = vand.u32 %v1443, 15
        %v1446 = vsub.s32 0, %v1445
        %v1447 = vsel %vm1441, %v1446, %v1445
        %vm1448 = vcmp.lt.s32.totalorder %v1220, 0
        %v1449 = vsub.s32 0, %v1220
        %v1450 = vsel %vm1448, %v1449, %v1220
        %v1451 = vshrl.u32 %v1450, 4
        %v1452 = vand.u32 %v1450, 15
        %v1453 = vsub.s32 0, %v1452
        %v1454 = vsel %vm1448, %v1453, %v1452
        %vm1455 = vcmp.lt.s32.totalorder %v1221, 0
        %v1456 = vsub.s32 0, %v1221
        %v1457 = vsel %vm1455, %v1456, %v1221
        %v1458 = vshrl.u32 %v1457, 4
        %v1459 = vand.u32 %v1457, 15
        %v1460 = vsub.s32 0, %v1459
        %v1461 = vsel %vm1455, %v1460, %v1459
        %vm1462 = vcmp.lt.s32.totalorder %v1222, 0
        %v1463 = vsub.s32 0, %v1222
        %v1464 = vsel %vm1462, %v1463, %v1222
        %v1465 = vshrl.u32 %v1464, 4
        %v1466 = vand.u32 %v1464, 15
        %v1467 = vsub.s32 0, %v1466
        %v1468 = vsel %vm1462, %v1467, %v1466
        %vm1469 = vcmp.lt.s32.totalorder %v1223, 0
        %v1470 = vsub.s32 0, %v1223
        %v1471 = vsel %vm1469, %v1470, %v1223
        %v1472 = vshrl.u32 %v1471, 4
        %v1473 = vand.u32 %v1471, 15
        %v1474 = vsub.s32 0, %v1473
        %v1475 = vsel %vm1469, %v1474, %v1473
        %vm1476 = vcmp.ne.s32.totalorder %v1230, 0
        %vm1477 = vcmp.ne.s32.totalorder %v1237, 0
        %vm1478 = vcmp.ne.s32.totalorder %v1244, 0
        %vm1479 = vcmp.ne.s32.totalorder %v1251, 0
        %vm1480 = vcmp.ne.s32.totalorder %v1258, 0
        %vm1481 = vcmp.ne.s32.totalorder %v1265, 0
        %vm1482 = vcmp.ne.s32.totalorder %v1272, 0
        %vm1483 = vcmp.ne.s32.totalorder %v1279, 0
        %vm1484 = vcmp.ne.s32.totalorder %v1286, 0
        %vm1485 = vcmp.ne.s32.totalorder %v1293, 0
        %vm1486 = vcmp.ne.s32.totalorder %v1300, 0
        %vm1487 = vcmp.ne.s32.totalorder %v1307, 0
        %vm1488 = vcmp.ne.s32.totalorder %v1314, 0
        %vm1489 = vcmp.ne.s32.totalorder %v1321, 0
        %vm1490 = vcmp.ne.s32.totalorder %v1328, 0
        %vm1491 = vcmp.ne.s32.totalorder %v1335, 0
        %vm1492 = vcmp.ne.s32.totalorder %v1342, 0
        %vm1493 = vcmp.ne.s32.totalorder %v1349, 0
        %vm1494 = vcmp.ne.s32.totalorder %v1356, 0
        %vm1495 = vcmp.ne.s32.totalorder %v1363, 0
        %vm1496 = vcmp.ne.s32.totalorder %v1370, 0
        %vm1497 = vcmp.ne.s32.totalorder %v1377, 0
        %vm1498 = vcmp.ne.s32.totalorder %v1384, 0
        %vm1499 = vcmp.ne.s32.totalorder %v1391, 0
        %vm1500 = vcmp.ne.s32.totalorder %v1398, 0
        %vm1501 = vcmp.ne.s32.totalorder %v1405, 0
        %vm1502 = vcmp.ne.s32.totalorder %v1412, 0
        %vm1503 = vcmp.ne.s32.totalorder %v1419, 0
        %vm1504 = vcmp.ne.s32.totalorder %v1426, 0
        %vm1505 = vcmp.ne.s32.totalorder %v1433, 0
        %vm1506 = vcmp.ne.s32.totalorder %v1440, 0
        %vm1507 = vcmp.ne.s32.totalorder %v1447, 0
        %vm1508 = vcmp.ne.s32.totalorder %v1454, 0
        %vm1509 = vcmp.ne.s32.totalorder %v1461, 0
        %vm1510 = vcmp.ne.s32.totalorder %v1468, 0
        %vm1511 = vcmp.ne.s32.totalorder %v1475, 0
        %vm1512 = vcmp.lt.s32.totalorder %v1230, 0
        %vm1513 = vcmp.lt.s32.totalorder %v1237, 0
        %vm1514 = vcmp.lt.s32.totalorder %v1244, 0
        %vm1515 = vcmp.lt.s32.totalorder %v1251, 0
        %vm1516 = vcmp.lt.s32.totalorder %v1258, 0
        %vm1517 = vcmp.lt.s32.totalorder %v1265, 0
        %vm1518 = vcmp.lt.s32.totalorder %v1272, 0
        %vm1519 = vcmp.lt.s32.totalorder %v1279, 0
        %vm1520 = vcmp.lt.s32.totalorder %v1286, 0
        %vm1521 = vcmp.lt.s32.totalorder %v1293, 0
        %vm1522 = vcmp.lt.s32.totalorder %v1300, 0
        %vm1523 = vcmp.lt.s32.totalorder %v1307, 0
        %vm1524 = vcmp.lt.s32.totalorder %v1314, 0
        %vm1525 = vcmp.lt.s32.totalorder %v1321, 0
        %vm1526 = vcmp.lt.s32.totalorder %v1328, 0
        %vm1527 = vcmp.lt.s32.totalorder %v1335, 0
        %vm1528 = vcmp.lt.s32.totalorder %v1342, 0
        %vm1529 = vcmp.lt.s32.totalorder %v1349, 0
        %vm1530 = vcmp.lt.s32.totalorder %v1356, 0
        %vm1531 = vcmp.lt.s32.totalorder %v1363, 0
        %vm1532 = vcmp.lt.s32.totalorder %v1370, 0
        %vm1533 = vcmp.lt.s32.totalorder %v1377, 0
        %vm1534 = vcmp.lt.s32.totalorder %v1384, 0
        %vm1535 = vcmp.lt.s32.totalorder %v1391, 0
        %vm1536 = vcmp.lt.s32.totalorder %v1398, 0
        %vm1537 = vcmp.lt.s32.totalorder %v1405, 0
        %vm1538 = vcmp.lt.s32.totalorder %v1412, 0
        %vm1539 = vcmp.lt.s32.totalorder %v1419, 0
        %vm1540 = vcmp.lt.s32.totalorder %v1426, 0
        %vm1541 = vcmp.lt.s32.totalorder %v1433, 0
        %vm1542 = vcmp.lt.s32.totalorder %v1440, 0
        %vm1543 = vcmp.lt.s32.totalorder %v1447, 0
        %vm1544 = vcmp.lt.s32.totalorder %v1454, 0
        %vm1545 = vcmp.lt.s32.totalorder %v1461, 0
        %vm1546 = vcmp.lt.s32.totalorder %v1468, 0
        %vm1547 = vcmp.lt.s32.totalorder %v1475, 0
        %vm1548 = vmand %vm1512, %vm1476
        %vm1549 = vmand %vm1513, %vm1477
        %vm1550 = vmand %vm1514, %vm1478
        %vm1551 = vmand %vm1515, %vm1479
        %vm1552 = vmand %vm1516, %vm1480
        %vm1553 = vmand %vm1517, %vm1481
        %vm1554 = vmand %vm1518, %vm1482
        %vm1555 = vmand %vm1519, %vm1483
        %vm1556 = vmand %vm1520, %vm1484
        %vm1557 = vmand %vm1521, %vm1485
        %vm1558 = vmand %vm1522, %vm1486
        %vm1559 = vmand %vm1523, %vm1487
        %vm1560 = vmand %vm1524, %vm1488
        %vm1561 = vmand %vm1525, %vm1489
        %vm1562 = vmand %vm1526, %vm1490
        %vm1563 = vmand %vm1527, %vm1491
        %vm1564 = vmand %vm1528, %vm1492
        %vm1565 = vmand %vm1529, %vm1493
        %vm1566 = vmand %vm1530, %vm1494
        %vm1567 = vmand %vm1531, %vm1495
        %vm1568 = vmand %vm1532, %vm1496
        %vm1569 = vmand %vm1533, %vm1497
        %vm1570 = vmand %vm1534, %vm1498
        %vm1571 = vmand %vm1535, %vm1499
        %vm1572 = vmand %vm1536, %vm1500
        %vm1573 = vmand %vm1537, %vm1501
        %vm1574 = vmand %vm1538, %vm1502
        %vm1575 = vmand %vm1539, %vm1503
        %vm1576 = vmand %vm1540, %vm1504
        %vm1577 = vmand %vm1541, %vm1505
        %vm1578 = vmand %vm1542, %vm1506
        %vm1579 = vmand %vm1543, %vm1507
        %vm1580 = vmand %vm1544, %vm1508
        %vm1581 = vmand %vm1545, %vm1509
        %vm1582 = vmand %vm1546, %vm1510
        %vm1583 = vmand %vm1547, %vm1511
        %v1584 = vadd.s32 %v1230, 16
        %v1585 = vadd.s32 %v1237, 16
        %v1586 = vadd.s32 %v1244, 16
        %v1587 = vadd.s32 %v1251, 16
        %v1588 = vadd.s32 %v1258, 16
        %v1589 = vadd.s32 %v1265, 16
        %v1590 = vadd.s32 %v1272, 16
        %v1591 = vadd.s32 %v1279, 16
        %v1592 = vadd.s32 %v1286, 16
        %v1593 = vadd.s32 %v1293, 16
        %v1594 = vadd.s32 %v1300, 16
        %v1595 = vadd.s32 %v1307, 16
        %v1596 = vadd.s32 %v1314, 16
        %v1597 = vadd.s32 %v1321, 16
        %v1598 = vadd.s32 %v1328, 16
        %v1599 = vadd.s32 %v1335, 16
        %v1600 = vadd.s32 %v1342, 16
        %v1601 = vadd.s32 %v1349, 16
        %v1602 = vadd.s32 %v1356, 16
        %v1603 = vadd.s32 %v1363, 16
        %v1604 = vadd.s32 %v1370, 16
        %v1605 = vadd.s32 %v1377, 16
        %v1606 = vadd.s32 %v1384, 16
        %v1607 = vadd.s32 %v1391, 16
        %v1608 = vadd.s32 %v1398, 16
        %v1609 = vadd.s32 %v1405, 16
        %v1610 = vadd.s32 %v1412, 16
        %v1611 = vadd.s32 %v1419, 16
        %v1612 = vadd.s32 %v1426, 16
        %v1613 = vadd.s32 %v1433, 16
        %v1614 = vadd.s32 %v1440, 16
        %v1615 = vadd.s32 %v1447, 16
        %v1616 = vadd.s32 %v1454, 16
        %v1617 = vadd.s32 %v1461, 16
        %v1618 = vadd.s32 %v1468, 16
        %v1619 = vadd.s32 %v1475, 16
        %v1620 = vsel %vm1548, %v1584, %v1230
        %v1621 = vsel %vm1549, %v1585, %v1237
        %v1622 = vsel %vm1550, %v1586, %v1244
        %v1623 = vsel %vm1551, %v1587, %v1251
        %v1624 = vsel %vm1552, %v1588, %v1258
        %v1625 = vsel %vm1553, %v1589, %v1265
        %v1626 = vsel %vm1554, %v1590, %v1272
        %v1627 = vsel %vm1555, %v1591, %v1279
        %v1628 = vsel %vm1556, %v1592, %v1286
        %v1629 = vsel %vm1557, %v1593, %v1293
        %v1630 = vsel %vm1558, %v1594, %v1300
        %v1631 = vsel %vm1559, %v1595, %v1307
        %v1632 = vsel %vm1560, %v1596, %v1314
        %v1633 = vsel %vm1561, %v1597, %v1321
        %v1634 = vsel %vm1562, %v1598, %v1328
        %v1635 = vsel %vm1563, %v1599, %v1335
        %v1636 = vsel %vm1564, %v1600, %v1342
        %v1637 = vsel %vm1565, %v1601, %v1349
        %v1638 = vsel %vm1566, %v1602, %v1356
        %v1639 = vsel %vm1567, %v1603, %v1363
        %v1640 = vsel %vm1568, %v1604, %v1370
        %v1641 = vsel %vm1569, %v1605, %v1377
        %v1642 = vsel %vm1570, %v1606, %v1384
        %v1643 = vsel %vm1571, %v1607, %v1391
        %v1644 = vsel %vm1572, %v1608, %v1398
        %v1645 = vsel %vm1573, %v1609, %v1405
        %v1646 = vsel %vm1574, %v1610, %v1412
        %v1647 = vsel %vm1575, %v1611, %v1419
        %v1648 = vsel %vm1576, %v1612, %v1426
        %v1649 = vsel %vm1577, %v1613, %v1433
        %v1650 = vsel %vm1578, %v1614, %v1440
        %v1651 = vsel %vm1579, %v1615, %v1447
        %v1652 = vsel %vm1580, %v1616, %v1454
        %v1653 = vsel %vm1581, %v1617, %v1461
        %v1654 = vsel %vm1582, %v1618, %v1468
        %v1655 = vsel %vm1583, %v1619, %v1475
        %v1656 = vld [vmem:[#allocation2 + $0x7] sm:$0xff]
        %v1657 = vld [vmem:[#allocation2 + $0xf] sm:$0xff]
        %v1658 = vld [vmem:[#allocation2 + $0x17] sm:$0xff]
        %v1659 = vld [vmem:[#allocation2 + $0x1f] sm:$0xff]
        %v1660 = vld [vmem:[#allocation2 + $0x27] sm:$0xff]
        %v1661 = vld [vmem:[#allocation2 + $0x2f] sm:$0xff]
        %v1662 = vld [vmem:[#allocation2 + $0x37] sm:$0xff]
        %v1663 = vld [vmem:[#allocation2 + $0x3f] sm:$0xff]
        %v1664 = vld [vmem:[#allocation2 + $0x47] sm:$0xff]
        %v1665 = vld [vmem:[#allocation2 + $0x4f] sm:$0xff]
        %v1666 = vld [vmem:[#allocation2 + $0x57] sm:$0xff]
        %v1667 = vld [vmem:[#allocation2 + $0x5f] sm:$0xff]
        %v1668 = vld [vmem:[#allocation2 + $0x67] sm:$0xff]
        %v1669 = vld [vmem:[#allocation2 + $0x6f] sm:$0xff]
        %v1670 = vld [vmem:[#allocation2 + $0x77] sm:$0xff]
        %v1671 = vld [vmem:[#allocation2 + $0x7f] sm:$0xff]
        %v1672 = vld [vmem:[#allocation2 + $0x87] sm:$0xff]
        %v1673 = vld [vmem:[#allocation2 + $0x8f] sm:$0xff]
        %v1674 = vld [vmem:[#allocation2 + $0x97] sm:$0xff]
        %v1675 = vld [vmem:[#allocation2 + $0x9f] sm:$0xff]
        %v1676 = vld [vmem:[#allocation2 + $0xa7] sm:$0xff]
        %v1677 = vld [vmem:[#allocation2 + $0xaf] sm:$0xff]
        %v1678 = vld [vmem:[#allocation2 + $0xb7] sm:$0xff]
        %v1679 = vld [vmem:[#allocation2 + $0xbf] sm:$0xff]
        %v1680 = vld [vmem:[#allocation2 + $0xc7] sm:$0xff]
        %v1681 = vld [vmem:[#allocation2 + $0xcf] sm:$0xff]
        %v1682 = vld [vmem:[#allocation2 + $0xd7] sm:$0xff]
        %v1683 = vld [vmem:[#allocation2 + $0xdf] sm:$0xff]
        %v1684 = vld [vmem:[#allocation2 + $0xe7] sm:$0xff]
        %v1685 = vld [vmem:[#allocation2 + $0xef] sm:$0xff]
        %v1686 = vld [vmem:[#allocation2 + $0xf7] sm:$0xff]
        %v1687 = vld [vmem:[#allocation2 + $0xff] sm:$0xff]
        %v1688 = vld [vmem:[#allocation2 + $0x107] sm:$0xff]
        %v1689 = vld [vmem:[#allocation2 + $0x10f] sm:$0xff]
        %v1690 = vld [vmem:[#allocation2 + $0x117] sm:$0xff]
        %v1691 = vld [vmem:[#allocation2 + $0x11f] sm:$0xff]
        %vm1692 = vcmp.ne.s32.totalorder %v1620, 0
        %vm1693 = vcmp.ne.s32.totalorder %v1621, 0
        %vm1694 = vcmp.ne.s32.totalorder %v1622, 0
        %vm1695 = vcmp.ne.s32.totalorder %v1623, 0
        %vm1696 = vcmp.ne.s32.totalorder %v1624, 0
        %vm1697 = vcmp.ne.s32.totalorder %v1625, 0
        %vm1698 = vcmp.ne.s32.totalorder %v1626, 0
        %vm1699 = vcmp.ne.s32.totalorder %v1627, 0
        %vm1700 = vcmp.ne.s32.totalorder %v1628, 0
        %vm1701 = vcmp.ne.s32.totalorder %v1629, 0
        %vm1702 = vcmp.ne.s32.totalorder %v1630, 0
        %vm1703 = vcmp.ne.s32.totalorder %v1631, 0
        %vm1704 = vcmp.ne.s32.totalorder %v1632, 0
        %vm1705 = vcmp.ne.s32.totalorder %v1633, 0
        %vm1706 = vcmp.ne.s32.totalorder %v1634, 0
        %vm1707 = vcmp.ne.s32.totalorder %v1635, 0
        %vm1708 = vcmp.ne.s32.totalorder %v1636, 0
        %vm1709 = vcmp.ne.s32.totalorder %v1637, 0
        %vm1710 = vcmp.ne.s32.totalorder %v1638, 0
        %vm1711 = vcmp.ne.s32.totalorder %v1639, 0
        %vm1712 = vcmp.ne.s32.totalorder %v1640, 0
        %vm1713 = vcmp.ne.s32.totalorder %v1641, 0
        %vm1714 = vcmp.ne.s32.totalorder %v1642, 0
        %vm1715 = vcmp.ne.s32.totalorder %v1643, 0
        %vm1716 = vcmp.ne.s32.totalorder %v1644, 0
        %vm1717 = vcmp.ne.s32.totalorder %v1645, 0
        %vm1718 = vcmp.ne.s32.totalorder %v1646, 0
        %vm1719 = vcmp.ne.s32.totalorder %v1647, 0
        %vm1720 = vcmp.ne.s32.totalorder %v1648, 0
        %vm1721 = vcmp.ne.s32.totalorder %v1649, 0
        %vm1722 = vcmp.ne.s32.totalorder %v1650, 0
        %vm1723 = vcmp.ne.s32.totalorder %v1651, 0
        %vm1724 = vcmp.ne.s32.totalorder %v1652, 0
        %vm1725 = vcmp.ne.s32.totalorder %v1653, 0
        %vm1726 = vcmp.ne.s32.totalorder %v1654, 0
        %vm1727 = vcmp.ne.s32.totalorder %v1655, 0
        %v1728 = vsel %vm1692, 1, 0
        %v1729 = vsel %vm1693, 1, 0
        %v1730 = vsel %vm1694, 1, 0
        %v1731 = vsel %vm1695, 1, 0
        %v1732 = vsel %vm1696, 1, 0
        %v1733 = vsel %vm1697, 1, 0
        %v1734 = vsel %vm1698, 1, 0
        %v1735 = vsel %vm1699, 1, 0
        %v1736 = vsel %vm1700, 1, 0
        %v1737 = vsel %vm1701, 1, 0
        %v1738 = vsel %vm1702, 1, 0
        %v1739 = vsel %vm1703, 1, 0
        %v1740 = vsel %vm1704, 1, 0
        %v1741 = vsel %vm1705, 1, 0
        %v1742 = vsel %vm1706, 1, 0
        %v1743 = vsel %vm1707, 1, 0
        %v1744 = vsel %vm1708, 1, 0
        %v1745 = vsel %vm1709, 1, 0
        %v1746 = vsel %vm1710, 1, 0
        %v1747 = vsel %vm1711, 1, 0
        %v1748 = vsel %vm1712, 1, 0
        %v1749 = vsel %vm1713, 1, 0
        %v1750 = vsel %vm1714, 1, 0
        %v1751 = vsel %vm1715, 1, 0
        %v1752 = vsel %vm1716, 1, 0
        %v1753 = vsel %vm1717, 1, 0
        %v1754 = vsel %vm1718, 1, 0
        %v1755 = vsel %vm1719, 1, 0
        %v1756 = vsel %vm1720, 1, 0
        %v1757 = vsel %vm1721, 1, 0
        %v1758 = vsel %vm1722, 1, 0
        %v1759 = vsel %vm1723, 1, 0
        %v1760 = vsel %vm1724, 1, 0
        %v1761 = vsel %vm1725, 1, 0
        %v1762 = vsel %vm1726, 1, 0
        %v1763 = vsel %vm1727, 1, 0
        %vm1764 = vcmp.eq.s32.totalorder %v1728, 1
        %vm1765 = vcmp.eq.s32.totalorder %v1729, 1
        %vm1766 = vcmp.eq.s32.totalorder %v1730, 1
        %vm1767 = vcmp.eq.s32.totalorder %v1731, 1
        %vm1768 = vcmp.eq.s32.totalorder %v1732, 1
        %vm1769 = vcmp.eq.s32.totalorder %v1733, 1
        %vm1770 = vcmp.eq.s32.totalorder %v1734, 1
        %vm1771 = vcmp.eq.s32.totalorder %v1735, 1
        %vm1772 = vcmp.eq.s32.totalorder %v1736, 1
        %vm1773 = vcmp.eq.s32.totalorder %v1737, 1
        %vm1774 = vcmp.eq.s32.totalorder %v1738, 1
        %vm1775 = vcmp.eq.s32.totalorder %v1739, 1
        %vm1776 = vcmp.eq.s32.totalorder %v1740, 1
        %vm1777 = vcmp.eq.s32.totalorder %v1741, 1
        %vm1778 = vcmp.eq.s32.totalorder %v1742, 1
        %vm1779 = vcmp.eq.s32.totalorder %v1743, 1
        %vm1780 = vcmp.eq.s32.totalorder %v1744, 1
        %vm1781 = vcmp.eq.s32.totalorder %v1745, 1
        %vm1782 = vcmp.eq.s32.totalorder %v1746, 1
        %vm1783 = vcmp.eq.s32.totalorder %v1747, 1
        %vm1784 = vcmp.eq.s32.totalorder %v1748, 1
        %vm1785 = vcmp.eq.s32.totalorder %v1749, 1
        %vm1786 = vcmp.eq.s32.totalorder %v1750, 1
        %vm1787 = vcmp.eq.s32.totalorder %v1751, 1
        %vm1788 = vcmp.eq.s32.totalorder %v1752, 1
        %vm1789 = vcmp.eq.s32.totalorder %v1753, 1
        %vm1790 = vcmp.eq.s32.totalorder %v1754, 1
        %vm1791 = vcmp.eq.s32.totalorder %v1755, 1
        %vm1792 = vcmp.eq.s32.totalorder %v1756, 1
        %vm1793 = vcmp.eq.s32.totalorder %v1757, 1
        %vm1794 = vcmp.eq.s32.totalorder %v1758, 1
        %vm1795 = vcmp.eq.s32.totalorder %v1759, 1
        %vm1796 = vcmp.eq.s32.totalorder %v1760, 1
        %vm1797 = vcmp.eq.s32.totalorder %v1761, 1
        %vm1798 = vcmp.eq.s32.totalorder %v1762, 1
        %vm1799 = vcmp.eq.s32.totalorder %v1763, 1
        %v1800 = vsel %vm1764, %v1656, 0.0
        %v1801 = vsel %vm1765, %v1657, 0.0
        %v1802 = vsel %vm1766, %v1658, 0.0
        %v1803 = vsel %vm1767, %v1659, 0.0
        %v1804 = vsel %vm1768, %v1660, 0.0
        %v1805 = vsel %vm1769, %v1661, 0.0
        %v1806 = vsel %vm1770, %v1662, 0.0
        %v1807 = vsel %vm1771, %v1663, 0.0
        %v1808 = vsel %vm1772, %v1664, 0.0
        %v1809 = vsel %vm1773, %v1665, 0.0
        %v1810 = vsel %vm1774, %v1666, 0.0
        %v1811 = vsel %vm1775, %v1667, 0.0
        %v1812 = vsel %vm1776, %v1668, 0.0
        %v1813 = vsel %vm1777, %v1669, 0.0
        %v1814 = vsel %vm1778, %v1670, 0.0
        %v1815 = vsel %vm1779, %v1671, 0.0
        %v1816 = vsel %vm1780, %v1672, 0.0
        %v1817 = vsel %vm1781, %v1673, 0.0
        %v1818 = vsel %vm1782, %v1674, 0.0
        %v1819 = vsel %vm1783, %v1675, 0.0
        %v1820 = vsel %vm1784, %v1676, 0.0
        %v1821 = vsel %vm1785, %v1677, 0.0
        %v1822 = vsel %vm1786, %v1678, 0.0
        %v1823 = vsel %vm1787, %v1679, 0.0
        %v1824 = vsel %vm1788, %v1680, 0.0
        %v1825 = vsel %vm1789, %v1681, 0.0
        %v1826 = vsel %vm1790, %v1682, 0.0
        %v1827 = vsel %vm1791, %v1683, 0.0
        %v1828 = vsel %vm1792, %v1684, 0.0
        %v1829 = vsel %vm1793, %v1685, 0.0
        %v1830 = vsel %vm1794, %v1686, 0.0
        %v1831 = vsel %vm1795, %v1687, 0.0
        %v1832 = vsel %vm1796, %v1688, 0.0
        %v1833 = vsel %vm1797, %v1689, 0.0
        %v1834 = vsel %vm1798, %v1690, 0.0
        %v1835 = vsel %vm1799, %v1691, 0.0
        %v1836 = vld [vmem:[#allocation2 + $0x8] sm:$0xff]
        %v1837 = vld [vmem:[#allocation2 + $0x10] sm:$0xff]
        %v1838 = vld [vmem:[#allocation2 + $0x18] sm:$0xff]
        %v1839 = vld [vmem:[#allocation2 + $0x20] sm:$0xff]
        %v1840 = vld [vmem:[#allocation2 + $0x28] sm:$0xff]
        %v1841 = vld [vmem:[#allocation2 + $0x30] sm:$0xff]
        %v1842 = vld [vmem:[#allocation2 + $0x38] sm:$0xff]
        %v1843 = vld [vmem:[#allocation2 + $0x40] sm:$0xff]
        %v1844 = vld [vmem:[#allocation2 + $0x48] sm:$0xff]
        %v1845 = vld [vmem:[#allocation2 + $0x50] sm:$0xff]
        %v1846 = vld [vmem:[#allocation2 + $0x58] sm:$0xff]
        %v1847 = vld [vmem:[#allocation2 + $0x60] sm:$0xff]
        %v1848 = vld [vmem:[#allocation2 + $0x68] sm:$0xff]
        %v1849 = vld [vmem:[#allocation2 + $0x70] sm:$0xff]
        %v1850 = vld [vmem:[#allocation2 + $0x78] sm:$0xff]
        %v1851 = vld [vmem:[#allocation2 + $0x80] sm:$0xff]
        %v1852 = vld [vmem:[#allocation2 + $0x88] sm:$0xff]
        %v1853 = vld [vmem:[#allocation2 + $0x90] sm:$0xff]
        %v1854 = vld [vmem:[#allocation2 + $0x98] sm:$0xff]
        %v1855 = vld [vmem:[#allocation2 + $0xa0] sm:$0xff]
        %v1856 = vld [vmem:[#allocation2 + $0xa8] sm:$0xff]
        %v1857 = vld [vmem:[#allocation2 + $0xb0] sm:$0xff]
        %v1858 = vld [vmem:[#allocation2 + $0xb8] sm:$0xff]
        %v1859 = vld [vmem:[#allocation2 + $0xc0] sm:$0xff]
        %v1860 = vld [vmem:[#allocation2 + $0xc8] sm:$0xff]
        %v1861 = vld [vmem:[#allocation2 + $0xd0] sm:$0xff]
        %v1862 = vld [vmem:[#allocation2 + $0xd8] sm:$0xff]
        %v1863 = vld [vmem:[#allocation2 + $0xe0] sm:$0xff]
        %v1864 = vld [vmem:[#allocation2 + $0xe8] sm:$0xff]
        %v1865 = vld [vmem:[#allocation2 + $0xf0] sm:$0xff]
        %v1866 = vld [vmem:[#allocation2 + $0xf8] sm:$0xff]
        %v1867 = vld [vmem:[#allocation2 + $0x100] sm:$0xff]
        %v1868 = vld [vmem:[#allocation2 + $0x108] sm:$0xff]
        %v1869 = vld [vmem:[#allocation2 + $0x110] sm:$0xff]
        %v1870 = vld [vmem:[#allocation2 + $0x118] sm:$0xff]
        %v1871 = vld [vmem:[#allocation2 + $0x120] sm:$0xff]
        %v1872 = vld [vmem:[#allocation2 + $0x9] sm:$0xff]
        %v1873 = vld [vmem:[#allocation2 + $0x11] sm:$0xff]
        %v1874 = vld [vmem:[#allocation2 + $0x19] sm:$0xff]
        %v1875 = vld [vmem:[#allocation2 + $0x21] sm:$0xff]
        %v1876 = vld [vmem:[#allocation2 + $0x29] sm:$0xff]
        %v1877 = vld [vmem:[#allocation2 + $0x31] sm:$0xff]
        %v1878 = vld [vmem:[#allocation2 + $0x39] sm:$0xff]
        %v1879 = vld [vmem:[#allocation2 + $0x41] sm:$0xff]
        %v1880 = vld [vmem:[#allocation2 + $0x49] sm:$0xff]
        %v1881 = vld [vmem:[#allocation2 + $0x51] sm:$0xff]
        %v1882 = vld [vmem:[#allocation2 + $0x59] sm:$0xff]
        %v1883 = vld [vmem:[#allocation2 + $0x61] sm:$0xff]
        %v1884 = vld [vmem:[#allocation2 + $0x69] sm:$0xff]
        %v1885 = vld [vmem:[#allocation2 + $0x71] sm:$0xff]
        %v1886 = vld [vmem:[#allocation2 + $0x79] sm:$0xff]
        %v1887 = vld [vmem:[#allocation2 + $0x81] sm:$0xff]
        %v1888 = vld [vmem:[#allocation2 + $0x89] sm:$0xff]
        %v1889 = vld [vmem:[#allocation2 + $0x91] sm:$0xff]
        %v1890 = vld [vmem:[#allocation2 + $0x99] sm:$0xff]
        %v1891 = vld [vmem:[#allocation2 + $0xa1] sm:$0xff]
        %v1892 = vld [vmem:[#allocation2 + $0xa9] sm:$0xff]
        %v1893 = vld [vmem:[#allocation2 + $0xb1] sm:$0xff]
        %v1894 = vld [vmem:[#allocation2 + $0xb9] sm:$0xff]
        %v1895 = vld [vmem:[#allocation2 + $0xc1] sm:$0xff]
        %v1896 = vld [vmem:[#allocation2 + $0xc9] sm:$0xff]
        %v1897 = vld [vmem:[#allocation2 + $0xd1] sm:$0xff]
        %v1898 = vld [vmem:[#allocation2 + $0xd9] sm:$0xff]
        %v1899 = vld [vmem:[#allocation2 + $0xe1] sm:$0xff]
        %v1900 = vld [vmem:[#allocation2 + $0xe9] sm:$0xff]
        %v1901 = vld [vmem:[#allocation2 + $0xf1] sm:$0xff]
        %v1902 = vld [vmem:[#allocation2 + $0xf9] sm:$0xff]
        %v1903 = vld [vmem:[#allocation2 + $0x101] sm:$0xff]
        %v1904 = vld [vmem:[#allocation2 + $0x109] sm:$0xff]
        %v1905 = vld [vmem:[#allocation2 + $0x111] sm:$0xff]
        %v1906 = vld [vmem:[#allocation2 + $0x119] sm:$0xff]
        %v1907 = vld [vmem:[#allocation2 + $0x121] sm:$0xff]
        %vm1908 = vcmp.ne.s32.totalorder %v1620, 15
        %vm1909 = vcmp.ne.s32.totalorder %v1621, 15
        %vm1910 = vcmp.ne.s32.totalorder %v1622, 15
        %vm1911 = vcmp.ne.s32.totalorder %v1623, 15
        %vm1912 = vcmp.ne.s32.totalorder %v1624, 15
        %vm1913 = vcmp.ne.s32.totalorder %v1625, 15
        %vm1914 = vcmp.ne.s32.totalorder %v1626, 15
        %vm1915 = vcmp.ne.s32.totalorder %v1627, 15
        %vm1916 = vcmp.ne.s32.totalorder %v1628, 15
        %vm1917 = vcmp.ne.s32.totalorder %v1629, 15
        %vm1918 = vcmp.ne.s32.totalorder %v1630, 15
        %vm1919 = vcmp.ne.s32.totalorder %v1631, 15
        %vm1920 = vcmp.ne.s32.totalorder %v1632, 15
        %vm1921 = vcmp.ne.s32.totalorder %v1633, 15
        %vm1922 = vcmp.ne.s32.totalorder %v1634, 15
        %vm1923 = vcmp.ne.s32.totalorder %v1635, 15
        %vm1924 = vcmp.ne.s32.totalorder %v1636, 15
        %vm1925 = vcmp.ne.s32.totalorder %v1637, 15
        %vm1926 = vcmp.ne.s32.totalorder %v1638, 15
        %vm1927 = vcmp.ne.s32.totalorder %v1639, 15
        %vm1928 = vcmp.ne.s32.totalorder %v1640, 15
        %vm1929 = vcmp.ne.s32.totalorder %v1641, 15
        %vm1930 = vcmp.ne.s32.totalorder %v1642, 15
        %vm1931 = vcmp.ne.s32.totalorder %v1643, 15
        %vm1932 = vcmp.ne.s32.totalorder %v1644, 15
        %vm1933 = vcmp.ne.s32.totalorder %v1645, 15
        %vm1934 = vcmp.ne.s32.totalorder %v1646, 15
        %vm1935 = vcmp.ne.s32.totalorder %v1647, 15
        %vm1936 = vcmp.ne.s32.totalorder %v1648, 15
        %vm1937 = vcmp.ne.s32.totalorder %v1649, 15
        %vm1938 = vcmp.ne.s32.totalorder %v1650, 15
        %vm1939 = vcmp.ne.s32.totalorder %v1651, 15
        %vm1940 = vcmp.ne.s32.totalorder %v1652, 15
        %vm1941 = vcmp.ne.s32.totalorder %v1653, 15
        %vm1942 = vcmp.ne.s32.totalorder %v1654, 15
        %vm1943 = vcmp.ne.s32.totalorder %v1655, 15
        %v1944 = vsel %vm1908, 1, 0
        %v1945 = vsel %vm1909, 1, 0
        %v1946 = vsel %vm1910, 1, 0
        %v1947 = vsel %vm1911, 1, 0
        %v1948 = vsel %vm1912, 1, 0
        %v1949 = vsel %vm1913, 1, 0
        %v1950 = vsel %vm1914, 1, 0
        %v1951 = vsel %vm1915, 1, 0
        %v1952 = vsel %vm1916, 1, 0
        %v1953 = vsel %vm1917, 1, 0
        %v1954 = vsel %vm1918, 1, 0
        %v1955 = vsel %vm1919, 1, 0
        %v1956 = vsel %vm1920, 1, 0
        %v1957 = vsel %vm1921, 1, 0
        %v1958 = vsel %vm1922, 1, 0
        %v1959 = vsel %vm1923, 1, 0
        %v1960 = vsel %vm1924, 1, 0
        %v1961 = vsel %vm1925, 1, 0
        %v1962 = vsel %vm1926, 1, 0
        %v1963 = vsel %vm1927, 1, 0
        %v1964 = vsel %vm1928, 1, 0
        %v1965 = vsel %vm1929, 1, 0
        %v1966 = vsel %vm1930, 1, 0
        %v1967 = vsel %vm1931, 1, 0
        %v1968 = vsel %vm1932, 1, 0
        %v1969 = vsel %vm1933, 1, 0
        %v1970 = vsel %vm1934, 1, 0
        %v1971 = vsel %vm1935, 1, 0
        %v1972 = vsel %vm1936, 1, 0
        %v1973 = vsel %vm1937, 1, 0
        %v1974 = vsel %vm1938, 1, 0
        %v1975 = vsel %vm1939, 1, 0
        %v1976 = vsel %vm1940, 1, 0
        %v1977 = vsel %vm1941, 1, 0
        %v1978 = vsel %vm1942, 1, 0
        %v1979 = vsel %vm1943, 1, 0
        %vm1980 = vcmp.eq.s32.totalorder %v1944, 1
        %vm1981 = vcmp.eq.s32.totalorder %v1945, 1
        %vm1982 = vcmp.eq.s32.totalorder %v1946, 1
        %vm1983 = vcmp.eq.s32.totalorder %v1947, 1
        %vm1984 = vcmp.eq.s32.totalorder %v1948, 1
        %vm1985 = vcmp.eq.s32.totalorder %v1949, 1
        %vm1986 = vcmp.eq.s32.totalorder %v1950, 1
        %vm1987 = vcmp.eq.s32.totalorder %v1951, 1
        %vm1988 = vcmp.eq.s32.totalorder %v1952, 1
        %vm1989 = vcmp.eq.s32.totalorder %v1953, 1
        %vm1990 = vcmp.eq.s32.totalorder %v1954, 1
        %vm1991 = vcmp.eq.s32.totalorder %v1955, 1
        %vm1992 = vcmp.eq.s32.totalorder %v1956, 1
        %vm1993 = vcmp.eq.s32.totalorder %v1957, 1
        %vm1994 = vcmp.eq.s32.totalorder %v1958, 1
        %vm1995 = vcmp.eq.s32.totalorder %v1959, 1
        %vm1996 = vcmp.eq.s32.totalorder %v1960, 1
        %vm1997 = vcmp.eq.s32.totalorder %v1961, 1
        %vm1998 = vcmp.eq.s32.totalorder %v1962, 1
        %vm1999 = vcmp.eq.s32.totalorder %v1963, 1
        %vm2000 = vcmp.eq.s32.totalorder %v1964, 1
        %vm2001 = vcmp.eq.s32.totalorder %v1965, 1
        %vm2002 = vcmp.eq.s32.totalorder %v1966, 1
        %vm2003 = vcmp.eq.s32.totalorder %v1967, 1
        %vm2004 = vcmp.eq.s32.totalorder %v1968, 1
        %vm2005 = vcmp.eq.s32.totalorder %v1969, 1
        %vm2006 = vcmp.eq.s32.totalorder %v1970, 1
        %vm2007 = vcmp.eq.s32.totalorder %v1971, 1
        %vm2008 = vcmp.eq.s32.totalorder %v1972, 1
        %vm2009 = vcmp.eq.s32.totalorder %v1973, 1
        %vm2010 = vcmp.eq.s32.totalorder %v1974, 1
        %vm2011 = vcmp.eq.s32.totalorder %v1975, 1
        %vm2012 = vcmp.eq.s32.totalorder %v1976, 1
        %vm2013 = vcmp.eq.s32.totalorder %v1977, 1
        %vm2014 = vcmp.eq.s32.totalorder %v1978, 1
        %vm2015 = vcmp.eq.s32.totalorder %v1979, 1
        %v2016 = vsel %vm1980, %v1872, 0.0
        %v2017 = vsel %vm1981, %v1873, 0.0
        %v2018 = vsel %vm1982, %v1874, 0.0
        %v2019 = vsel %vm1983, %v1875, 0.0
        %v2020 = vsel %vm1984, %v1876, 0.0
        %v2021 = vsel %vm1985, %v1877, 0.0
        %v2022 = vsel %vm1986, %v1878, 0.0
        %v2023 = vsel %vm1987, %v1879, 0.0
        %v2024 = vsel %vm1988, %v1880, 0.0
        %v2025 = vsel %vm1989, %v1881, 0.0
        %v2026 = vsel %vm1990, %v1882, 0.0
        %v2027 = vsel %vm1991, %v1883, 0.0
        %v2028 = vsel %vm1992, %v1884, 0.0
        %v2029 = vsel %vm1993, %v1885, 0.0
        %v2030 = vsel %vm1994, %v1886, 0.0
        %v2031 = vsel %vm1995, %v1887, 0.0
        %v2032 = vsel %vm1996, %v1888, 0.0
        %v2033 = vsel %vm1997, %v1889, 0.0
        %v2034 = vsel %vm1998, %v1890, 0.0
        %v2035 = vsel %vm1999, %v1891, 0.0
        %v2036 = vsel %vm2000, %v1892, 0.0
        %v2037 = vsel %vm2001, %v1893, 0.0
        %v2038 = vsel %vm2002, %v1894, 0.0
        %v2039 = vsel %vm2003, %v1895, 0.0
        %v2040 = vsel %vm2004, %v1896, 0.0
        %v2041 = vsel %vm2005, %v1897, 0.0
        %v2042 = vsel %vm2006, %v1898, 0.0
        %v2043 = vsel %vm2007, %v1899, 0.0
        %v2044 = vsel %vm2008, %v1900, 0.0
        %v2045 = vsel %vm2009, %v1901, 0.0
        %v2046 = vsel %vm2010, %v1902, 0.0
        %v2047 = vsel %vm2011, %v1903, 0.0
        %v2048 = vsel %vm2012, %v1904, 0.0
        %v2049 = vsel %vm2013, %v1905, 0.0
        %v2050 = vsel %vm2014, %v1906, 0.0
        %v2051 = vsel %vm2015, %v1907, 0.0
        %v2052 = vpack.c.bf16 %v1800, %v1800
        %v2053 = vpack.c.bf16 %v1801, %v1801
        %v2054 = vpack.c.bf16 %v1802, %v1802
        %v2055 = vpack.c.bf16 %v1803, %v1803
        %v2056 = vpack.c.bf16 %v1804, %v1804
        %v2057 = vpack.c.bf16 %v1805, %v1805
        %v2058 = vpack.c.bf16 %v1806, %v1806
        %v2059 = vpack.c.bf16 %v1807, %v1807
        %v2060 = vpack.c.bf16 %v1808, %v1808
        %v2061 = vpack.c.bf16 %v1809, %v1809
        %v2062 = vpack.c.bf16 %v1810, %v1810
        %v2063 = vpack.c.bf16 %v1811, %v1811
        %v2064 = vpack.c.bf16 %v1812, %v1812
        %v2065 = vpack.c.bf16 %v1813, %v1813
        %v2066 = vpack.c.bf16 %v1814, %v1814
        %v2067 = vpack.c.bf16 %v1815, %v1815
        %v2068 = vpack.c.bf16 %v1816, %v1816
        %v2069 = vpack.c.bf16 %v1817, %v1817
        %v2070 = vpack.c.bf16 %v1818, %v1818
        %v2071 = vpack.c.bf16 %v1819, %v1819
        %v2072 = vpack.c.bf16 %v1820, %v1820
        %v2073 = vpack.c.bf16 %v1821, %v1821
        %v2074 = vpack.c.bf16 %v1822, %v1822
        %v2075 = vpack.c.bf16 %v1823, %v1823
        %v2076 = vpack.c.bf16 %v1824, %v1824
        %v2077 = vpack.c.bf16 %v1825, %v1825
        %v2078 = vpack.c.bf16 %v1826, %v1826
        %v2079 = vpack.c.bf16 %v1827, %v1827
        %v2080 = vpack.c.bf16 %v1828, %v1828
        %v2081 = vpack.c.bf16 %v1829, %v1829
        %v2082 = vpack.c.bf16 %v1830, %v1830
        %v2083 = vpack.c.bf16 %v1831, %v1831
        %2084 = vst [vmem:[#allocation3] sm:$0xf] %v2052
        %2085 = vst [vmem:[#allocation3 + $0x24] sm:$0xf] %v2053
        %2086 = vst [vmem:[#allocation3 + $0x48] sm:$0xf] %v2054
        %2087 = vst [vmem:[#allocation3 + $0x6c] sm:$0xf] %v2055
        %2088 = vst [vmem:[#allocation3 + $0x90] sm:$0xf] %v2056
        %2089 = vst [vmem:[#allocation3 + $0xb4] sm:$0xf] %v2057
        %2090 = vst [vmem:[#allocation3 + $0xd8] sm:$0xf] %v2058
        %2091 = vst [vmem:[#allocation3 + $0xfc] sm:$0xf] %v2059
        %2092 = vst [vmem:[#allocation3 + $0x120] sm:$0xf] %v2060
        %2093 = vst [vmem:[#allocation3 + $0x144] sm:$0xf] %v2061
        %2094 = vst [vmem:[#allocation3 + $0x168] sm:$0xf] %v2062
        %2095 = vst [vmem:[#allocation3 + $0x18c] sm:$0xf] %v2063
        %2096 = vst [vmem:[#allocation3 + $0x1b0] sm:$0xf] %v2064
        %2097 = vst [vmem:[#allocation3 + $0x1d4] sm:$0xf] %v2065
        %2098 = vst [vmem:[#allocation3 + $0x1f8] sm:$0xf] %v2066
        %2099 = vst [vmem:[#allocation3 + $0x21c] sm:$0xf] %v2067
        %2100 = vst [vmem:[#allocation3 + $0x240] sm:$0xf] %v2068
        %2101 = vst [vmem:[#allocation3 + $0x264] sm:$0xf] %v2069
        %2102 = vst [vmem:[#allocation3 + $0x288] sm:$0xf] %v2070
        %2103 = vst [vmem:[#allocation3 + $0x2ac] sm:$0xf] %v2071
        %2104 = vst [vmem:[#allocation3 + $0x2d0] sm:$0xf] %v2072
        %2105 = vst [vmem:[#allocation3 + $0x2f4] sm:$0xf] %v2073
        %2106 = vst [vmem:[#allocation3 + $0x318] sm:$0xf] %v2074
        %2107 = vst [vmem:[#allocation3 + $0x33c] sm:$0xf] %v2075
        %2108 = vst [vmem:[#allocation3 + $0x360] sm:$0xf] %v2076
        %2109 = vst [vmem:[#allocation3 + $0x384] sm:$0xf] %v2077
        %2110 = vst [vmem:[#allocation3 + $0x3a8] sm:$0xf] %v2078
        %2111 = vst [vmem:[#allocation3 + $0x3cc] sm:$0xf] %v2079
        %2112 = vst [vmem:[#allocation3 + $0x3f0] sm:$0xf] %v2080
        %2113 = vst [vmem:[#allocation3 + $0x414] sm:$0xf] %v2081
        %2114 = vst [vmem:[#allocation3 + $0x438] sm:$0xf] %v2082
        %2115 = vst [vmem:[#allocation3 + $0x45c] sm:$0xf] %v2083
        %v2116 = vpack.c.bf16 %v1836, %v1836
        %v2117 = vpack.c.bf16 %v1837, %v1837
        %v2118 = vpack.c.bf16 %v1838, %v1838
        %v2119 = vpack.c.bf16 %v1839, %v1839
        %v2120 = vpack.c.bf16 %v1840, %v1840
        %v2121 = vpack.c.bf16 %v1841, %v1841
        %v2122 = vpack.c.bf16 %v1842, %v1842
        %v2123 = vpack.c.bf16 %v1843, %v1843
        %v2124 = vpack.c.bf16 %v1844, %v1844
        %v2125 = vpack.c.bf16 %v1845, %v1845
        %v2126 = vpack.c.bf16 %v1846, %v1846
        %v2127 = vpack.c.bf16 %v1847, %v1847
        %v2128 = vpack.c.bf16 %v1848, %v1848
        %v2129 = vpack.c.bf16 %v1849, %v1849
        %v2130 = vpack.c.bf16 %v1850, %v1850
        %v2131 = vpack.c.bf16 %v1851, %v1851
        %v2132 = vpack.c.bf16 %v1852, %v1852
        %v2133 = vpack.c.bf16 %v1853, %v1853
        %v2134 = vpack.c.bf16 %v1854, %v1854
        %v2135 = vpack.c.bf16 %v1855, %v1855
        %v2136 = vpack.c.bf16 %v1856, %v1856
        %v2137 = vpack.c.bf16 %v1857, %v1857
        %v2138 = vpack.c.bf16 %v1858, %v1858
        %v2139 = vpack.c.bf16 %v1859, %v1859
        %v2140 = vpack.c.bf16 %v1860, %v1860
        %v2141 = vpack.c.bf16 %v1861, %v1861
        %v2142 = vpack.c.bf16 %v1862, %v1862
        %v2143 = vpack.c.bf16 %v1863, %v1863
        %v2144 = vpack.c.bf16 %v1864, %v1864
        %v2145 = vpack.c.bf16 %v1865, %v1865
        %v2146 = vpack.c.bf16 %v1866, %v1866
        %v2147 = vpack.c.bf16 %v1867, %v1867
        %2148 = vst [vmem:[#allocation3 + $0x4] sm:$0xf] %v2116
        %2149 = vst [vmem:[#allocation3 + $0x28] sm:$0xf] %v2117
        %2150 = vst [vmem:[#allocation3 + $0x4c] sm:$0xf] %v2118
        %2151 = vst [vmem:[#allocation3 + $0x70] sm:$0xf] %v2119
        %2152 = vst [vmem:[#allocation3 + $0x94] sm:$0xf] %v2120
        %2153 = vst [vmem:[#allocation3 + $0xb8] sm:$0xf] %v2121
        %2154 = vst [vmem:[#allocation3 + $0xdc] sm:$0xf] %v2122
        %2155 = vst [vmem:[#allocation3 + $0x100] sm:$0xf] %v2123
        %2156 = vst [vmem:[#allocation3 + $0x124] sm:$0xf] %v2124
        %2157 = vst [vmem:[#allocation3 + $0x148] sm:$0xf] %v2125
        %2158 = vst [vmem:[#allocation3 + $0x16c] sm:$0xf] %v2126
        %2159 = vst [vmem:[#allocation3 + $0x190] sm:$0xf] %v2127
        %2160 = vst [vmem:[#allocation3 + $0x1b4] sm:$0xf] %v2128
        %2161 = vst [vmem:[#allocation3 + $0x1d8] sm:$0xf] %v2129
        %2162 = vst [vmem:[#allocation3 + $0x1fc] sm:$0xf] %v2130
        %2163 = vst [vmem:[#allocation3 + $0x220] sm:$0xf] %v2131
        %2164 = vst [vmem:[#allocation3 + $0x244] sm:$0xf] %v2132
        %2165 = vst [vmem:[#allocation3 + $0x268] sm:$0xf] %v2133
        %2166 = vst [vmem:[#allocation3 + $0x28c] sm:$0xf] %v2134
        %2167 = vst [vmem:[#allocation3 + $0x2b0] sm:$0xf] %v2135
        %2168 = vst [vmem:[#allocation3 + $0x2d4] sm:$0xf] %v2136
        %2169 = vst [vmem:[#allocation3 + $0x2f8] sm:$0xf] %v2137
        %2170 = vst [vmem:[#allocation3 + $0x31c] sm:$0xf] %v2138
        %2171 = vst [vmem:[#allocation3 + $0x340] sm:$0xf] %v2139
        %2172 = vst [vmem:[#allocation3 + $0x364] sm:$0xf] %v2140
        %2173 = vst [vmem:[#allocation3 + $0x388] sm:$0xf] %v2141
        %2174 = vst [vmem:[#allocation3 + $0x3ac] sm:$0xf] %v2142
        %2175 = vst [vmem:[#allocation3 + $0x3d0] sm:$0xf] %v2143
        %2176 = vst [vmem:[#allocation3 + $0x3f4] sm:$0xf] %v2144
        %2177 = vst [vmem:[#allocation3 + $0x418] sm:$0xf] %v2145
        %2178 = vst [vmem:[#allocation3 + $0x43c] sm:$0xf] %v2146
        %2179 = vst [vmem:[#allocation3 + $0x460] sm:$0xf] %v2147
        %v2180 = vpack.c.bf16 %v2016, %v2016
        %v2181 = vpack.c.bf16 %v2017, %v2017
        %v2182 = vpack.c.bf16 %v2018, %v2018
        %v2183 = vpack.c.bf16 %v2019, %v2019
        %v2184 = vpack.c.bf16 %v2020, %v2020
        %v2185 = vpack.c.bf16 %v2021, %v2021
        %v2186 = vpack.c.bf16 %v2022, %v2022
        %v2187 = vpack.c.bf16 %v2023, %v2023
        %v2188 = vpack.c.bf16 %v2024, %v2024
        %v2189 = vpack.c.bf16 %v2025, %v2025
        %v2190 = vpack.c.bf16 %v2026, %v2026
        %v2191 = vpack.c.bf16 %v2027, %v2027
        %v2192 = vpack.c.bf16 %v2028, %v2028
        %v2193 = vpack.c.bf16 %v2029, %v2029
        %v2194 = vpack.c.bf16 %v2030, %v2030
        %v2195 = vpack.c.bf16 %v2031, %v2031
        %v2196 = vpack.c.bf16 %v2032, %v2032
        %v2197 = vpack.c.bf16 %v2033, %v2033
        %v2198 = vpack.c.bf16 %v2034, %v2034
        %v2199 = vpack.c.bf16 %v2035, %v2035
        %v2200 = vpack.c.bf16 %v2036, %v2036
        %v2201 = vpack.c.bf16 %v2037, %v2037
        %v2202 = vpack.c.bf16 %v2038, %v2038
        %v2203 = vpack.c.bf16 %v2039, %v2039
        %v2204 = vpack.c.bf16 %v2040, %v2040
        %v2205 = vpack.c.bf16 %v2041, %v2041
        %v2206 = vpack.c.bf16 %v2042, %v2042
        %v2207 = vpack.c.bf16 %v2043, %v2043
        %v2208 = vpack.c.bf16 %v2044, %v2044
        %v2209 = vpack.c.bf16 %v2045, %v2045
        %v2210 = vpack.c.bf16 %v2046, %v2046
        %v2211 = vpack.c.bf16 %v2047, %v2047
        %2212 = vst [vmem:[#allocation3 + $0x8] sm:$0xf] %v2180
        %2213 = vst [vmem:[#allocation3 + $0x2c] sm:$0xf] %v2181
        %2214 = vst [vmem:[#allocation3 + $0x50] sm:$0xf] %v2182
        %2215 = vst [vmem:[#allocation3 + $0x74] sm:$0xf] %v2183
        %2216 = vst [vmem:[#allocation3 + $0x98] sm:$0xf] %v2184
        %2217 = vst [vmem:[#allocation3 + $0xbc] sm:$0xf] %v2185
        %2218 = vst [vmem:[#allocation3 + $0xe0] sm:$0xf] %v2186
        %2219 = vst [vmem:[#allocation3 + $0x104] sm:$0xf] %v2187
        %2220 = vst [vmem:[#allocation3 + $0x128] sm:$0xf] %v2188
        %2221 = vst [vmem:[#allocation3 + $0x14c] sm:$0xf] %v2189
        %2222 = vst [vmem:[#allocation3 + $0x170] sm:$0xf] %v2190
        %2223 = vst [vmem:[#allocation3 + $0x194] sm:$0xf] %v2191
        %2224 = vst [vmem:[#allocation3 + $0x1b8] sm:$0xf] %v2192
        %2225 = vst [vmem:[#allocation3 + $0x1dc] sm:$0xf] %v2193
        %2226 = vst [vmem:[#allocation3 + $0x200] sm:$0xf] %v2194
        %2227 = vst [vmem:[#allocation3 + $0x224] sm:$0xf] %v2195
        %2228 = vst [vmem:[#allocation3 + $0x248] sm:$0xf] %v2196
        %2229 = vst [vmem:[#allocation3 + $0x26c] sm:$0xf] %v2197
        %2230 = vst [vmem:[#allocation3 + $0x290] sm:$0xf] %v2198
        %2231 = vst [vmem:[#allocation3 + $0x2b4] sm:$0xf] %v2199
        %2232 = vst [vmem:[#allocation3 + $0x2d8] sm:$0xf] %v2200
        %2233 = vst [vmem:[#allocation3 + $0x2fc] sm:$0xf] %v2201
        %2234 = vst [vmem:[#allocation3 + $0x320] sm:$0xf] %v2202
        %2235 = vst [vmem:[#allocation3 + $0x344] sm:$0xf] %v2203
        %2236 = vst [vmem:[#allocation3 + $0x368] sm:$0xf] %v2204
        %2237 = vst [vmem:[#allocation3 + $0x38c] sm:$0xf] %v2205
        %2238 = vst [vmem:[#allocation3 + $0x3b0] sm:$0xf] %v2206
        %2239 = vst [vmem:[#allocation3 + $0x3d4] sm:$0xf] %v2207
        %2240 = vst [vmem:[#allocation3 + $0x3f8] sm:$0xf] %v2208
        %2241 = vst [vmem:[#allocation3 + $0x41c] sm:$0xf] %v2209
        %2242 = vst [vmem:[#allocation3 + $0x440] sm:$0xf] %v2210
        %2243 = vst [vmem:[#allocation3 + $0x464] sm:$0xf] %v2211
        %v2244 = vpack.c.bf16 %v1832, %v1832
        %v2245 = vpack.c.bf16 %v1833, %v1833
        %2246 = vst [vmem:[#allocation3 + $0xc] sm:$0xf] %v2054
        %2247 = vst [vmem:[#allocation3 + $0x30] sm:$0xf] %v2055
        %2248 = vst [vmem:[#allocation3 + $0x54] sm:$0xf] %v2056
        %2249 = vst [vmem:[#allocation3 + $0x78] sm:$0xf] %v2057
        %2250 = vst [vmem:[#allocation3 + $0x9c] sm:$0xf] %v2058
        %2251 = vst [vmem:[#allocation3 + $0xc0] sm:$0xf] %v2059
        %2252 = vst [vmem:[#allocation3 + $0xe4] sm:$0xf] %v2060
        %2253 = vst [vmem:[#allocation3 + $0x108] sm:$0xf] %v2061
        %2254 = vst [vmem:[#allocation3 + $0x12c] sm:$0xf] %v2062
        %2255 = vst [vmem:[#allocation3 + $0x150] sm:$0xf] %v2063
        %2256 = vst [vmem:[#allocation3 + $0x174] sm:$0xf] %v2064
        %2257 = vst [vmem:[#allocation3 + $0x198] sm:$0xf] %v2065
        %2258 = vst [vmem:[#allocation3 + $0x1bc] sm:$0xf] %v2066
        %2259 = vst [vmem:[#allocation3 + $0x1e0] sm:$0xf] %v2067
        %2260 = vst [vmem:[#allocation3 + $0x204] sm:$0xf] %v2068
        %2261 = vst [vmem:[#allocation3 + $0x228] sm:$0xf] %v2069
        %2262 = vst [vmem:[#allocation3 + $0x24c] sm:$0xf] %v2070
        %2263 = vst [vmem:[#allocation3 + $0x270] sm:$0xf] %v2071
        %2264 = vst [vmem:[#allocation3 + $0x294] sm:$0xf] %v2072
        %2265 = vst [vmem:[#allocation3 + $0x2b8] sm:$0xf] %v2073
        %2266 = vst [vmem:[#allocation3 + $0x2dc] sm:$0xf] %v2074
        %2267 = vst [vmem:[#allocation3 + $0x300] sm:$0xf] %v2075
        %2268 = vst [vmem:[#allocation3 + $0x324] sm:$0xf] %v2076
        %2269 = vst [vmem:[#allocation3 + $0x348] sm:$0xf] %v2077
        %2270 = vst [vmem:[#allocation3 + $0x36c] sm:$0xf] %v2078
        %2271 = vst [vmem:[#allocation3 + $0x390] sm:$0xf] %v2079
        %2272 = vst [vmem:[#allocation3 + $0x3b4] sm:$0xf] %v2080
        %2273 = vst [vmem:[#allocation3 + $0x3d8] sm:$0xf] %v2081
        %2274 = vst [vmem:[#allocation3 + $0x3fc] sm:$0xf] %v2082
        %2275 = vst [vmem:[#allocation3 + $0x420] sm:$0xf] %v2083
        %2276 = vst [vmem:[#allocation3 + $0x444] sm:$0xf] %v2244
        %2277 = vst [vmem:[#allocation3 + $0x468] sm:$0xf] %v2245
        %v2278 = vpack.c.bf16 %v1868, %v1868
        %v2279 = vpack.c.bf16 %v1869, %v1869
        %2280 = vst [vmem:[#allocation3 + $0x10] sm:$0xf] %v2118
        %2281 = vst [vmem:[#allocation3 + $0x34] sm:$0xf] %v2119
        %2282 = vst [vmem:[#allocation3 + $0x58] sm:$0xf] %v2120
        %2283 = vst [vmem:[#allocation3 + $0x7c] sm:$0xf] %v2121
        %2284 = vst [vmem:[#allocation3 + $0xa0] sm:$0xf] %v2122
        %2285 = vst [vmem:[#allocation3 + $0xc4] sm:$0xf] %v2123
        %2286 = vst [vmem:[#allocation3 + $0xe8] sm:$0xf] %v2124
        %2287 = vst [vmem:[#allocation3 + $0x10c] sm:$0xf] %v2125
        %2288 = vst [vmem:[#allocation3 + $0x130] sm:$0xf] %v2126
        %2289 = vst [vmem:[#allocation3 + $0x154] sm:$0xf] %v2127
        %2290 = vst [vmem:[#allocation3 + $0x178] sm:$0xf] %v2128
        %2291 = vst [vmem:[#allocation3 + $0x19c] sm:$0xf] %v2129
        %2292 = vst [vmem:[#allocation3 + $0x1c0] sm:$0xf] %v2130
        %2293 = vst [vmem:[#allocation3 + $0x1e4] sm:$0xf] %v2131
        %2294 = vst [vmem:[#allocation3 + $0x208] sm:$0xf] %v2132
        %2295 = vst [vmem:[#allocation3 + $0x22c] sm:$0xf] %v2133
        %2296 = vst [vmem:[#allocation3 + $0x250] sm:$0xf] %v2134
        %2297 = vst [vmem:[#allocation3 + $0x274] sm:$0xf] %v2135
        %2298 = vst [vmem:[#allocation3 + $0x298] sm:$0xf] %v2136
        %2299 = vst [vmem:[#allocation3 + $0x2bc] sm:$0xf] %v2137
        %2300 = vst [vmem:[#allocation3 + $0x2e0] sm:$0xf] %v2138
        %2301 = vst [vmem:[#allocation3 + $0x304] sm:$0xf] %v2139
        %2302 = vst [vmem:[#allocation3 + $0x328] sm:$0xf] %v2140
        %2303 = vst [vmem:[#allocation3 + $0x34c] sm:$0xf] %v2141
        %2304 = vst [vmem:[#allocation3 + $0x370] sm:$0xf] %v2142
        %2305 = vst [vmem:[#allocation3 + $0x394] sm:$0xf] %v2143
        %2306 = vst [vmem:[#allocation3 + $0x3b8] sm:$0xf] %v2144
        %2307 = vst [vmem:[#allocation3 + $0x3dc] sm:$0xf] %v2145
        %2308 = vst [vmem:[#allocation3 + $0x400] sm:$0xf] %v2146
        %2309 = vst [vmem:[#allocation3 + $0x424] sm:$0xf] %v2147
        %2310 = vst [vmem:[#allocation3 + $0x448] sm:$0xf] %v2278
        %2311 = vst [vmem:[#allocation3 + $0x46c] sm:$0xf] %v2279
        %v2312 = vpack.c.bf16 %v2048, %v2048
        %v2313 = vpack.c.bf16 %v2049, %v2049
        %2314 = vst [vmem:[#allocation3 + $0x14] sm:$0xf] %v2182
        %2315 = vst [vmem:[#allocation3 + $0x38] sm:$0xf] %v2183
        %2316 = vst [vmem:[#allocation3 + $0x5c] sm:$0xf] %v2184
        %2317 = vst [vmem:[#allocation3 + $0x80] sm:$0xf] %v2185
        %2318 = vst [vmem:[#allocation3 + $0xa4] sm:$0xf] %v2186
        %2319 = vst [vmem:[#allocation3 + $0xc8] sm:$0xf] %v2187
        %2320 = vst [vmem:[#allocation3 + $0xec] sm:$0xf] %v2188
        %2321 = vst [vmem:[#allocation3 + $0x110] sm:$0xf] %v2189
        %2322 = vst [vmem:[#allocation3 + $0x134] sm:$0xf] %v2190
        %2323 = vst [vmem:[#allocation3 + $0x158] sm:$0xf] %v2191
        %2324 = vst [vmem:[#allocation3 + $0x17c] sm:$0xf] %v2192
        %2325 = vst [vmem:[#allocation3 + $0x1a0] sm:$0xf] %v2193
        %2326 = vst [vmem:[#allocation3 + $0x1c4] sm:$0xf] %v2194
        %2327 = vst [vmem:[#allocation3 + $0x1e8] sm:$0xf] %v2195
        %2328 = vst [vmem:[#allocation3 + $0x20c] sm:$0xf] %v2196
        %2329 = vst [vmem:[#allocation3 + $0x230] sm:$0xf] %v2197
        %2330 = vst [vmem:[#allocation3 + $0x254] sm:$0xf] %v2198
        %2331 = vst [vmem:[#allocation3 + $0x278] sm:$0xf] %v2199
        %2332 = vst [vmem:[#allocation3 + $0x29c] sm:$0xf] %v2200
        %2333 = vst [vmem:[#allocation3 + $0x2c0] sm:$0xf] %v2201
        %2334 = vst [vmem:[#allocation3 + $0x2e4] sm:$0xf] %v2202
        %2335 = vst [vmem:[#allocation3 + $0x308] sm:$0xf] %v2203
        %2336 = vst [vmem:[#allocation3 + $0x32c] sm:$0xf] %v2204
        %2337 = vst [vmem:[#allocation3 + $0x350] sm:$0xf] %v2205
        %2338 = vst [vmem:[#allocation3 + $0x374] sm:$0xf] %v2206
        %2339 = vst [vmem:[#allocation3 + $0x398] sm:$0xf] %v2207
        %2340 = vst [vmem:[#allocation3 + $0x3bc] sm:$0xf] %v2208
        %2341 = vst [vmem:[#allocation3 + $0x3e0] sm:$0xf] %v2209
        %2342 = vst [vmem:[#allocation3 + $0x404] sm:$0xf] %v2210
        %2343 = vst [vmem:[#allocation3 + $0x428] sm:$0xf] %v2211
        %2344 = vst [vmem:[#allocation3 + $0x44c] sm:$0xf] %v2312
        %2345 = vst [vmem:[#allocation3 + $0x470] sm:$0xf] %v2313
        %v2346 = vpack.c.bf16 %v1834, %v1834
        %v2347 = vpack.c.bf16 %v1835, %v1835
        %2348 = vst [vmem:[#allocation3 + $0x18] sm:$0xf] %v2056
        %2349 = vst [vmem:[#allocation3 + $0x3c] sm:$0xf] %v2057
        %2350 = vst [vmem:[#allocation3 + $0x60] sm:$0xf] %v2058
        %2351 = vst [vmem:[#allocation3 + $0x84] sm:$0xf] %v2059
        %2352 = vst [vmem:[#allocation3 + $0xa8] sm:$0xf] %v2060
        %2353 = vst [vmem:[#allocation3 + $0xcc] sm:$0xf] %v2061
        %2354 = vst [vmem:[#allocation3 + $0xf0] sm:$0xf] %v2062
        %2355 = vst [vmem:[#allocation3 + $0x114] sm:$0xf] %v2063
        %2356 = vst [vmem:[#allocation3 + $0x138] sm:$0xf] %v2064
        %2357 = vst [vmem:[#allocation3 + $0x15c] sm:$0xf] %v2065
        %2358 = vst [vmem:[#allocation3 + $0x180] sm:$0xf] %v2066
        %2359 = vst [vmem:[#allocation3 + $0x1a4] sm:$0xf] %v2067
        %2360 = vst [vmem:[#allocation3 + $0x1c8] sm:$0xf] %v2068
        %2361 = vst [vmem:[#allocation3 + $0x1ec] sm:$0xf] %v2069
        %2362 = vst [vmem:[#allocation3 + $0x210] sm:$0xf] %v2070
        %2363 = vst [vmem:[#allocation3 + $0x234] sm:$0xf] %v2071
        %2364 = vst [vmem:[#allocation3 + $0x258] sm:$0xf] %v2072
        %2365 = vst [vmem:[#allocation3 + $0x27c] sm:$0xf] %v2073
        %2366 = vst [vmem:[#allocation3 + $0x2a0] sm:$0xf] %v2074
        %2367 = vst [vmem:[#allocation3 + $0x2c4] sm:$0xf] %v2075
        %2368 = vst [vmem:[#allocation3 + $0x2e8] sm:$0xf] %v2076
        %2369 = vst [vmem:[#allocation3 + $0x30c] sm:$0xf] %v2077
        %2370 = vst [vmem:[#allocation3 + $0x330] sm:$0xf] %v2078
        %2371 = vst [vmem:[#allocation3 + $0x354] sm:$0xf] %v2079
        %2372 = vst [vmem:[#allocation3 + $0x378] sm:$0xf] %v2080
        %2373 = vst [vmem:[#allocation3 + $0x39c] sm:$0xf] %v2081
        %2374 = vst [vmem:[#allocation3 + $0x3c0] sm:$0xf] %v2082
        %2375 = vst [vmem:[#allocation3 + $0x3e4] sm:$0xf] %v2083
        %2376 = vst [vmem:[#allocation3 + $0x408] sm:$0xf] %v2244
        %2377 = vst [vmem:[#allocation3 + $0x42c] sm:$0xf] %v2245
        %2378 = vst [vmem:[#allocation3 + $0x450] sm:$0xf] %v2346
        %2379 = vst [vmem:[#allocation3 + $0x474] sm:$0xf] %v2347
        %v2380 = vpack.c.bf16 %v1870, %v1870
        %v2381 = vpack.c.bf16 %v1871, %v1871
        %2382 = vst [vmem:[#allocation3 + $0x1c] sm:$0xf] %v2120
        %2383 = vst [vmem:[#allocation3 + $0x40] sm:$0xf] %v2121
        %2384 = vst [vmem:[#allocation3 + $0x64] sm:$0xf] %v2122
        %2385 = vst [vmem:[#allocation3 + $0x88] sm:$0xf] %v2123
        %2386 = vst [vmem:[#allocation3 + $0xac] sm:$0xf] %v2124
        %2387 = vst [vmem:[#allocation3 + $0xd0] sm:$0xf] %v2125
        %2388 = vst [vmem:[#allocation3 + $0xf4] sm:$0xf] %v2126
        %2389 = vst [vmem:[#allocation3 + $0x118] sm:$0xf] %v2127
        %2390 = vst [vmem:[#allocation3 + $0x13c] sm:$0xf] %v2128
        %2391 = vst [vmem:[#allocation3 + $0x160] sm:$0xf] %v2129
        %2392 = vst [vmem:[#allocation3 + $0x184] sm:$0xf] %v2130
        %2393 = vst [vmem:[#allocation3 + $0x1a8] sm:$0xf] %v2131
        %2394 = vst [vmem:[#allocation3 + $0x1cc] sm:$0xf] %v2132
        %2395 = vst [vmem:[#allocation3 + $0x1f0] sm:$0xf] %v2133
        %2396 = vst [vmem:[#allocation3 + $0x214] sm:$0xf] %v2134
        %2397 = vst [vmem:[#allocation3 + $0x238] sm:$0xf] %v2135
        %2398 = vst [vmem:[#allocation3 + $0x25c] sm:$0xf] %v2136
        %2399 = vst [vmem:[#allocation3 + $0x280] sm:$0xf] %v2137
        %2400 = vst [vmem:[#allocation3 + $0x2a4] sm:$0xf] %v2138
        %2401 = vst [vmem:[#allocation3 + $0x2c8] sm:$0xf] %v2139
        %2402 = vst [vmem:[#allocation3 + $0x2ec] sm:$0xf] %v2140
        %2403 = vst [vmem:[#allocation3 + $0x310] sm:$0xf] %v2141
        %2404 = vst [vmem:[#allocation3 + $0x334] sm:$0xf] %v2142
        %2405 = vst [vmem:[#allocation3 + $0x358] sm:$0xf] %v2143
        %2406 = vst [vmem:[#allocation3 + $0x37c] sm:$0xf] %v2144
        %2407 = vst [vmem:[#allocation3 + $0x3a0] sm:$0xf] %v2145
        %2408 = vst [vmem:[#allocation3 + $0x3c4] sm:$0xf] %v2146
        %2409 = vst [vmem:[#allocation3 + $0x3e8] sm:$0xf] %v2147
        %2410 = vst [vmem:[#allocation3 + $0x40c] sm:$0xf] %v2278
        %2411 = vst [vmem:[#allocation3 + $0x430] sm:$0xf] %v2279
        %2412 = vst [vmem:[#allocation3 + $0x454] sm:$0xf] %v2380
        %2413 = vst [vmem:[#allocation3 + $0x478] sm:$0xf] %v2381
        %v2414 = vpack.c.bf16 %v2050, %v2050
        %v2415 = vpack.c.bf16 %v2051, %v2051
        %2416 = vst [vmem:[#allocation3 + $0x20] sm:$0xf] %v2184
        %2417 = vst [vmem:[#allocation3 + $0x44] sm:$0xf] %v2185
        %2418 = vst [vmem:[#allocation3 + $0x68] sm:$0xf] %v2186
        %2419 = vst [vmem:[#allocation3 + $0x8c] sm:$0xf] %v2187
        %2420 = vst [vmem:[#allocation3 + $0xb0] sm:$0xf] %v2188
        %2421 = vst [vmem:[#allocation3 + $0xd4] sm:$0xf] %v2189
        %2422 = vst [vmem:[#allocation3 + $0xf8] sm:$0xf] %v2190
        %2423 = vst [vmem:[#allocation3 + $0x11c] sm:$0xf] %v2191
        %2424 = vst [vmem:[#allocation3 + $0x140] sm:$0xf] %v2192
        %2425 = vst [vmem:[#allocation3 + $0x164] sm:$0xf] %v2193
        %2426 = vst [vmem:[#allocation3 + $0x188] sm:$0xf] %v2194
        %2427 = vst [vmem:[#allocation3 + $0x1ac] sm:$0xf] %v2195
        %2428 = vst [vmem:[#allocation3 + $0x1d0] sm:$0xf] %v2196
        %2429 = vst [vmem:[#allocation3 + $0x1f4] sm:$0xf] %v2197
        %2430 = vst [vmem:[#allocation3 + $0x218] sm:$0xf] %v2198
        %2431 = vst [vmem:[#allocation3 + $0x23c] sm:$0xf] %v2199
        %2432 = vst [vmem:[#allocation3 + $0x260] sm:$0xf] %v2200
        %2433 = vst [vmem:[#allocation3 + $0x284] sm:$0xf] %v2201
        %2434 = vst [vmem:[#allocation3 + $0x2a8] sm:$0xf] %v2202
        %2435 = vst [vmem:[#allocation3 + $0x2cc] sm:$0xf] %v2203
        %2436 = vst [vmem:[#allocation3 + $0x2f0] sm:$0xf] %v2204
        %2437 = vst [vmem:[#allocation3 + $0x314] sm:$0xf] %v2205
        %2438 = vst [vmem:[#allocation3 + $0x338] sm:$0xf] %v2206
        %2439 = vst [vmem:[#allocation3 + $0x35c] sm:$0xf] %v2207
        %2440 = vst [vmem:[#allocation3 + $0x380] sm:$0xf] %v2208
        %2441 = vst [vmem:[#allocation3 + $0x3a4] sm:$0xf] %v2209
        %2442 = vst [vmem:[#allocation3 + $0x3c8] sm:$0xf] %v2210
        %2443 = vst [vmem:[#allocation3 + $0x3ec] sm:$0xf] %v2211
        %2444 = vst [vmem:[#allocation3 + $0x410] sm:$0xf] %v2312
        %2445 = vst [vmem:[#allocation3 + $0x434] sm:$0xf] %v2313
        %2446 = vst [vmem:[#allocation3 + $0x458] sm:$0xf] %v2414
        %2447 = vst [vmem:[#allocation3 + $0x47c] sm:$0xf] %v2415
        %v2448 = vld [vmem:[#allocation3] sm:$0xff]
        %v2449 = vld [vmem:[#allocation3 + $0x8] sm:$0xff]
        %v2450 = vld [vmem:[#allocation3 + $0x10] sm:$0xff]
        %v2451 = vld [vmem:[#allocation3 + $0x18] sm:$0xff]
        %v2452 = vld [vmem:[#allocation3 + $0x20] sm:$0xf]
        %v2453 = vld [vmem:[#allocation3 + $0x24] sm:$0xff]
        %v2454 = vld [vmem:[#allocation3 + $0x2c] sm:$0xff]
        %v2455 = vld [vmem:[#allocation3 + $0x34] sm:$0xff]
        %v2456 = vld [vmem:[#allocation3 + $0x3c] sm:$0xff]
        %v2457 = vld [vmem:[#allocation3 + $0x44] sm:$0xf]
        %v2458 = vld [vmem:[#allocation3 + $0x48] sm:$0xff]
        %v2459 = vld [vmem:[#allocation3 + $0x50] sm:$0xff]
        %v2460 = vld [vmem:[#allocation3 + $0x58] sm:$0xff]
        %v2461 = vld [vmem:[#allocation3 + $0x60] sm:$0xff]
        %v2462 = vld [vmem:[#allocation3 + $0x68] sm:$0xf]
        %v2463 = vld [vmem:[#allocation3 + $0x6c] sm:$0xff]
        %v2464 = vld [vmem:[#allocation3 + $0x74] sm:$0xff]
        %v2465 = vld [vmem:[#allocation3 + $0x7c] sm:$0xff]
        %v2466 = vld [vmem:[#allocation3 + $0x84] sm:$0xff]
        %v2467 = vld [vmem:[#allocation3 + $0x8c] sm:$0xf]
        %v2468 = vld [vmem:[#allocation3 + $0x90] sm:$0xff]
        %v2469 = vld [vmem:[#allocation3 + $0x98] sm:$0xff]
        %v2470 = vld [vmem:[#allocation3 + $0xa0] sm:$0xff]
        %v2471 = vld [vmem:[#allocation3 + $0xa8] sm:$0xff]
        %v2472 = vld [vmem:[#allocation3 + $0xb0] sm:$0xf]
        %v2473 = vld [vmem:[#allocation3 + $0xb4] sm:$0xff]
        %v2474 = vld [vmem:[#allocation3 + $0xbc] sm:$0xff]
        %v2475 = vld [vmem:[#allocation3 + $0xc4] sm:$0xff]
        %v2476 = vld [vmem:[#allocation3 + $0xcc] sm:$0xff]
        %v2477 = vld [vmem:[#allocation3 + $0xd4] sm:$0xf]
        %v2478 = vld [vmem:[#allocation3 + $0xd8] sm:$0xff]
        %v2479 = vld [vmem:[#allocation3 + $0xe0] sm:$0xff]
        %v2480 = vld [vmem:[#allocation3 + $0xe8] sm:$0xff]
        %v2481 = vld [vmem:[#allocation3 + $0xf0] sm:$0xff]
        %v2482 = vld [vmem:[#allocation3 + $0xf8] sm:$0xf]
        %v2483 = vld [vmem:[#allocation3 + $0xfc] sm:$0xff]
        %v2484 = vld [vmem:[#allocation3 + $0x104] sm:$0xff]
        %v2485 = vld [vmem:[#allocation3 + $0x10c] sm:$0xff]
        %v2486 = vld [vmem:[#allocation3 + $0x114] sm:$0xff]
        %v2487 = vld [vmem:[#allocation3 + $0x11c] sm:$0xf]
        %v2488 = vld [vmem:[#allocation3 + $0x120] sm:$0xff]
        %v2489 = vld [vmem:[#allocation3 + $0x128] sm:$0xff]
        %v2490 = vld [vmem:[#allocation3 + $0x130] sm:$0xff]
        %v2491 = vld [vmem:[#allocation3 + $0x138] sm:$0xff]
        %v2492 = vld [vmem:[#allocation3 + $0x140] sm:$0xf]
        %v2493 = vld [vmem:[#allocation3 + $0x144] sm:$0xff]
        %v2494 = vld [vmem:[#allocation3 + $0x14c] sm:$0xff]
        %v2495 = vld [vmem:[#allocation3 + $0x154] sm:$0xff]
        %v2496 = vld [vmem:[#allocation3 + $0x15c] sm:$0xff]
        %v2497 = vld [vmem:[#allocation3 + $0x164] sm:$0xf]
        %v2498 = vld [vmem:[#allocation3 + $0x168] sm:$0xff]
        %v2499 = vld [vmem:[#allocation3 + $0x170] sm:$0xff]
        %v2500 = vld [vmem:[#allocation3 + $0x178] sm:$0xff]
        %v2501 = vld [vmem:[#allocation3 + $0x180] sm:$0xff]
        %v2502 = vld [vmem:[#allocation3 + $0x188] sm:$0xf]
        %v2503 = vld [vmem:[#allocation3 + $0x18c] sm:$0xff]
        %v2504 = vld [vmem:[#allocation3 + $0x194] sm:$0xff]
        %v2505 = vld [vmem:[#allocation3 + $0x19c] sm:$0xff]
        %v2506 = vld [vmem:[#allocation3 + $0x1a4] sm:$0xff]
        %v2507 = vld [vmem:[#allocation3 + $0x1ac] sm:$0xf]
        %v2508 = vld [vmem:[#allocation3 + $0x1b0] sm:$0xff]
        %v2509 = vld [vmem:[#allocation3 + $0x1b8] sm:$0xff]
        %v2510 = vld [vmem:[#allocation3 + $0x1c0] sm:$0xff]
        %v2511 = vld [vmem:[#allocation3 + $0x1c8] sm:$0xff]
        %v2512 = vld [vmem:[#allocation3 + $0x1d0] sm:$0xf]
        %v2513 = vld [vmem:[#allocation3 + $0x1d4] sm:$0xff]
        %v2514 = vld [vmem:[#allocation3 + $0x1dc] sm:$0xff]
        %v2515 = vld [vmem:[#allocation3 + $0x1e4] sm:$0xff]
        %v2516 = vld [vmem:[#allocation3 + $0x1ec] sm:$0xff]
        %v2517 = vld [vmem:[#allocation3 + $0x1f4] sm:$0xf]
        %v2518 = vld [vmem:[#allocation3 + $0x1f8] sm:$0xff]
        %v2519 = vld [vmem:[#allocation3 + $0x200] sm:$0xff]
        %v2520 = vld [vmem:[#allocation3 + $0x208] sm:$0xff]
        %v2521 = vld [vmem:[#allocation3 + $0x210] sm:$0xff]
        %v2522 = vld [vmem:[#allocation3 + $0x218] sm:$0xf]
        %v2523 = vld [vmem:[#allocation3 + $0x21c] sm:$0xff]
        %v2524 = vld [vmem:[#allocation3 + $0x224] sm:$0xff]
        %v2525 = vld [vmem:[#allocation3 + $0x22c] sm:$0xff]
        %v2526 = vld [vmem:[#allocation3 + $0x234] sm:$0xff]
        %v2527 = vld [vmem:[#allocation3 + $0x23c] sm:$0xf]
        %v2528 = vld [vmem:[#allocation3 + $0x240] sm:$0xff]
        %v2529 = vld [vmem:[#allocation3 + $0x248] sm:$0xff]
        %v2530 = vld [vmem:[#allocation3 + $0x250] sm:$0xff]
        %v2531 = vld [vmem:[#allocation3 + $0x258] sm:$0xff]
        %v2532 = vld [vmem:[#allocation3 + $0x260] sm:$0xf]
        %v2533 = vld [vmem:[#allocation3 + $0x264] sm:$0xff]
        %v2534 = vld [vmem:[#allocation3 + $0x26c] sm:$0xff]
        %v2535 = vld [vmem:[#allocation3 + $0x274] sm:$0xff]
        %v2536 = vld [vmem:[#allocation3 + $0x27c] sm:$0xff]
        %v2537 = vld [vmem:[#allocation3 + $0x284] sm:$0xf]
        %v2538 = vld [vmem:[#allocation3 + $0x288] sm:$0xff]
        %v2539 = vld [vmem:[#allocation3 + $0x290] sm:$0xff]
        %v2540 = vld [vmem:[#allocation3 + $0x298] sm:$0xff]
        %v2541 = vld [vmem:[#allocation3 + $0x2a0] sm:$0xff]
        %v2542 = vld [vmem:[#allocation3 + $0x2a8] sm:$0xf]
        %v2543 = vld [vmem:[#allocation3 + $0x2ac] sm:$0xff]
        %v2544 = vld [vmem:[#allocation3 + $0x2b4] sm:$0xff]
        %v2545 = vld [vmem:[#allocation3 + $0x2bc] sm:$0xff]
        %v2546 = vld [vmem:[#allocation3 + $0x2c4] sm:$0xff]
        %v2547 = vld [vmem:[#allocation3 + $0x2cc] sm:$0xf]
        %v2548 = vld [vmem:[#allocation3 + $0x2d0] sm:$0xff]
        %v2549 = vld [vmem:[#allocation3 + $0x2d8] sm:$0xff]
        %v2550 = vld [vmem:[#allocation3 + $0x2e0] sm:$0xff]
        %v2551 = vld [vmem:[#allocation3 + $0x2e8] sm:$0xff]
        %v2552 = vld [vmem:[#allocation3 + $0x2f0] sm:$0xf]
        %v2553 = vld [vmem:[#allocation3 + $0x2f4] sm:$0xff]
        %v2554 = vld [vmem:[#allocation3 + $0x2fc] sm:$0xff]
        %v2555 = vld [vmem:[#allocation3 + $0x304] sm:$0xff]
        %v2556 = vld [vmem:[#allocation3 + $0x30c] sm:$0xff]
        %v2557 = vld [vmem:[#allocation3 + $0x314] sm:$0xf]
        %v2558 = vld [vmem:[#allocation3 + $0x318] sm:$0xff]
        %v2559 = vld [vmem:[#allocation3 + $0x320] sm:$0xff]
        %v2560 = vld [vmem:[#allocation3 + $0x328] sm:$0xff]
        %v2561 = vld [vmem:[#allocation3 + $0x330] sm:$0xff]
        %v2562 = vld [vmem:[#allocation3 + $0x338] sm:$0xf]
        %v2563 = vld [vmem:[#allocation3 + $0x33c] sm:$0xff]
        %v2564 = vld [vmem:[#allocation3 + $0x344] sm:$0xff]
        %v2565 = vld [vmem:[#allocation3 + $0x34c] sm:$0xff]
        %v2566 = vld [vmem:[#allocation3 + $0x354] sm:$0xff]
        %v2567 = vld [vmem:[#allocation3 + $0x35c] sm:$0xf]
        %v2568 = vld [vmem:[#allocation3 + $0x360] sm:$0xff]
        %v2569 = vld [vmem:[#allocation3 + $0x368] sm:$0xff]
        %v2570 = vld [vmem:[#allocation3 + $0x370] sm:$0xff]
        %v2571 = vld [vmem:[#allocation3 + $0x378] sm:$0xff]
        %v2572 = vld [vmem:[#allocation3 + $0x380] sm:$0xf]
        %v2573 = vld [vmem:[#allocation3 + $0x384] sm:$0xff]
        %v2574 = vld [vmem:[#allocation3 + $0x38c] sm:$0xff]
        %v2575 = vld [vmem:[#allocation3 + $0x394] sm:$0xff]
        %v2576 = vld [vmem:[#allocation3 + $0x39c] sm:$0xff]
        %v2577 = vld [vmem:[#allocation3 + $0x3a4] sm:$0xf]
        %v2578 = vld [vmem:[#allocation3 + $0x3a8] sm:$0xff]
        %v2579 = vld [vmem:[#allocation3 + $0x3b0] sm:$0xff]
        %v2580 = vld [vmem:[#allocation3 + $0x3b8] sm:$0xff]
        %v2581 = vld [vmem:[#allocation3 + $0x3c0] sm:$0xff]
        %v2582 = vld [vmem:[#allocation3 + $0x3c8] sm:$0xf]
        %v2583 = vld [vmem:[#allocation3 + $0x3cc] sm:$0xff]
        %v2584 = vld [vmem:[#allocation3 + $0x3d4] sm:$0xff]
        %v2585 = vld [vmem:[#allocation3 + $0x3dc] sm:$0xff]
        %v2586 = vld [vmem:[#allocation3 + $0x3e4] sm:$0xff]
        %v2587 = vld [vmem:[#allocation3 + $0x3ec] sm:$0xf]
        %v2588 = vld [vmem:[#allocation3 + $0x3f0] sm:$0xff]
        %v2589 = vld [vmem:[#allocation3 + $0x3f8] sm:$0xff]
        %v2590 = vld [vmem:[#allocation3 + $0x400] sm:$0xff]
        %v2591 = vld [vmem:[#allocation3 + $0x408] sm:$0xff]
        %v2592 = vld [vmem:[#allocation3 + $0x410] sm:$0xf]
        %v2593 = vld [vmem:[#allocation3 + $0x414] sm:$0xff]
        %v2594 = vld [vmem:[#allocation3 + $0x41c] sm:$0xff]
        %v2595 = vld [vmem:[#allocation3 + $0x424] sm:$0xff]
        %v2596 = vld [vmem:[#allocation3 + $0x42c] sm:$0xff]
        %v2597 = vld [vmem:[#allocation3 + $0x434] sm:$0xf]
        %v2598 = vld [vmem:[#allocation3 + $0x438] sm:$0xff]
        %v2599 = vld [vmem:[#allocation3 + $0x440] sm:$0xff]
        %v2600 = vld [vmem:[#allocation3 + $0x448] sm:$0xff]
        %v2601 = vld [vmem:[#allocation3 + $0x450] sm:$0xff]
        %v2602 = vld [vmem:[#allocation3 + $0x458] sm:$0xf]
        %v2603 = vld [vmem:[#allocation3 + $0x45c] sm:$0xff]
        %v2604 = vld [vmem:[#allocation3 + $0x464] sm:$0xff]
        %v2605 = vld [vmem:[#allocation3 + $0x46c] sm:$0xff]
        %v2606 = vld [vmem:[#allocation3 + $0x474] sm:$0xff]
        %v2607 = vld [vmem:[#allocation3 + $0x47c] sm:$0xf]
        %v2608 = vld [vmem:[%s3] sm:$0xf]
        %v2609 = vld [vmem:[%s3 + $0x4] sm:$0xf]
        %v2610 = vld [vmem:[%s3 + $0x8] sm:$0xf]
        %v2611 = vld [vmem:[%s3 + $0xc] sm:$0xf]
        %v2612 = vld [vmem:[%s3 + $0x10] sm:$0xf]
        %v2613 = vld [vmem:[%s3 + $0x14] sm:$0xf]
        %v2614 = vld [vmem:[%s3 + $0x18] sm:$0xf]
        %v2615 = vld [vmem:[%s3 + $0x1c] sm:$0xf]
        %v2616 = vld [vmem:[%s3 + $0x20] sm:$0xf]
        %v2617 = vld [vmem:[%s3 + $0x24] sm:$0xf]
        %v2618 = vld [vmem:[%s3 + $0x28] sm:$0xf]
        %v2619 = vld [vmem:[%s3 + $0x2c] sm:$0xf]
        %v2620 = vld [vmem:[%s3 + $0x30] sm:$0xf]
        %v2621 = vld [vmem:[%s3 + $0x34] sm:$0xf]
        %v2622 = vld [vmem:[%s3 + $0x38] sm:$0xf]
        %v2623 = vld [vmem:[%s3 + $0x3c] sm:$0xf]
        %v2624 = vld [vmem:[%s3 + $0x40] sm:$0xf]
        %v2625 = vld [vmem:[%s3 + $0x44] sm:$0xf]
        %v2626 = vld [vmem:[%s3 + $0x48] sm:$0xf]
        %v2627 = vld [vmem:[%s3 + $0x4c] sm:$0xf]
        %v2628 = vld [vmem:[%s3 + $0x50] sm:$0xf]
        %v2629 = vld [vmem:[%s3 + $0x54] sm:$0xf]
        %v2630 = vld [vmem:[%s3 + $0x58] sm:$0xf]
        %v2631 = vld [vmem:[%s3 + $0x5c] sm:$0xf]
        %v2632 = vld [vmem:[%s3 + $0x60] sm:$0xf]
        %v2633 = vld [vmem:[%s3 + $0x64] sm:$0xf]
        %v2634 = vld [vmem:[%s3 + $0x68] sm:$0xf]
        %v2635 = vld [vmem:[%s3 + $0x6c] sm:$0xf]
        %v2636 = vld [vmem:[%s3 + $0x70] sm:$0xf]
        %v2637 = vld [vmem:[%s3 + $0x74] sm:$0xf]
        %v2638 = vld [vmem:[%s3 + $0x78] sm:$0xf]
        %v2639 = vld [vmem:[%s3 + $0x7c] sm:$0xf]
        %v2640 = vld [vmem:[%s3 + $0x80] sm:$0xf]
        %v2641 = vld [vmem:[%s3 + $0x84] sm:$0xf]
        %v2642 = vld [vmem:[%s3 + $0x88] sm:$0xf]
        %v2643 = vld [vmem:[%s3 + $0x8c] sm:$0xf]
        %v2644 = vld [vmem:[%s3 + $0x90] sm:$0xf]
        %v2645 = vld [vmem:[%s3 + $0x94] sm:$0xf]
        %v2646 = vld [vmem:[%s3 + $0x98] sm:$0xf]
        %v2647 = vld [vmem:[%s3 + $0x9c] sm:$0xf]
        %v2648 = vld [vmem:[%s3 + $0xa0] sm:$0xf]
        %v2649 = vld [vmem:[%s3 + $0xa4] sm:$0xf]
        %v2650 = vld [vmem:[%s3 + $0xa8] sm:$0xf]
        %v2651 = vld [vmem:[%s3 + $0xac] sm:$0xf]
        %v2652 = vld [vmem:[%s3 + $0xb0] sm:$0xf]
        %v2653 = vld [vmem:[%s3 + $0xb4] sm:$0xf]
        %v2654 = vld [vmem:[%s3 + $0xb8] sm:$0xf]
        %v2655 = vld [vmem:[%s3 + $0xbc] sm:$0xf]
        %v2656 = vld [vmem:[%s3 + $0xc0] sm:$0xf]
        %v2657 = vld [vmem:[%s3 + $0xc4] sm:$0xf]
        %v2658 = vld [vmem:[%s3 + $0xc8] sm:$0xf]
        %v2659 = vld [vmem:[%s3 + $0xcc] sm:$0xf]
        %v2660 = vld [vmem:[%s3 + $0xd0] sm:$0xf]
        %v2661 = vld [vmem:[%s3 + $0xd4] sm:$0xf]
        %v2662 = vld [vmem:[%s3 + $0xd8] sm:$0xf]
        %v2663 = vld [vmem:[%s3 + $0xdc] sm:$0xf]
        %v2664 = vld [vmem:[%s3 + $0xe0] sm:$0xf]
        %v2665 = vld [vmem:[%s3 + $0xe4] sm:$0xf]
        %v2666 = vld [vmem:[%s3 + $0xe8] sm:$0xf]
        %v2667 = vld [vmem:[%s3 + $0xec] sm:$0xf]
        %v2668 = vld [vmem:[%s3 + $0xf0] sm:$0xf]
        %v2669 = vld [vmem:[%s3 + $0xf4] sm:$0xf]
        %v2670 = vld [vmem:[%s3 + $0xf8] sm:$0xf]
        %v2671 = vld [vmem:[%s3 + $0xfc] sm:$0xf]
        %v2672 = vld [vmem:[%s3 + $0x100] sm:$0xf]
        %v2673 = vld [vmem:[%s3 + $0x104] sm:$0xf]
        %v2674 = vld [vmem:[%s3 + $0x108] sm:$0xf]
        %v2675 = vld [vmem:[%s3 + $0x10c] sm:$0xf]
        %v2676 = vld [vmem:[%s3 + $0x110] sm:$0xf]
        %v2677 = vld [vmem:[%s3 + $0x114] sm:$0xf]
        %v2678 = vld [vmem:[%s3 + $0x118] sm:$0xf]
        %v2679 = vld [vmem:[%s3 + $0x11c] sm:$0xf]
        %v2680 = vld [vmem:[%s3 + $0x120] sm:$0xf]
        %v2681 = vld [vmem:[%s3 + $0x124] sm:$0xf]
        %v2682 = vld [vmem:[%s3 + $0x128] sm:$0xf]
        %v2683 = vld [vmem:[%s3 + $0x12c] sm:$0xf]
        %v2684 = vld [vmem:[%s3 + $0x130] sm:$0xf]
        %v2685 = vld [vmem:[%s3 + $0x134] sm:$0xf]
        %v2686 = vld [vmem:[%s3 + $0x138] sm:$0xf]
        %v2687 = vld [vmem:[%s3 + $0x13c] sm:$0xf]
        %v2688 = vld [vmem:[%s3 + $0x140] sm:$0xf]
        %v2689 = vld [vmem:[%s3 + $0x144] sm:$0xf]
        %v2690 = vld [vmem:[%s3 + $0x148] sm:$0xf]
        %v2691 = vld [vmem:[%s3 + $0x14c] sm:$0xf]
        %v2692 = vld [vmem:[%s3 + $0x150] sm:$0xf]
        %v2693 = vld [vmem:[%s3 + $0x154] sm:$0xf]
        %v2694 = vld [vmem:[%s3 + $0x158] sm:$0xf]
        %v2695 = vld [vmem:[%s3 + $0x15c] sm:$0xf]
        %v2696 = vld [vmem:[%s3 + $0x160] sm:$0xf]
        %v2697 = vld [vmem:[%s3 + $0x164] sm:$0xf]
        %v2698 = vld [vmem:[%s3 + $0x168] sm:$0xf]
        %v2699 = vld [vmem:[%s3 + $0x16c] sm:$0xf]
        %v2700 = vld [vmem:[%s3 + $0x170] sm:$0xf]
        %v2701 = vld [vmem:[%s3 + $0x174] sm:$0xf]
        %v2702 = vld [vmem:[%s3 + $0x178] sm:$0xf]
        %v2703 = vld [vmem:[%s3 + $0x17c] sm:$0xf]
        %v2704 = vld [vmem:[%s3 + $0x180] sm:$0xf]
        %v2705 = vld [vmem:[%s3 + $0x184] sm:$0xf]
        %v2706 = vld [vmem:[%s3 + $0x188] sm:$0xf]
        %v2707 = vld [vmem:[%s3 + $0x18c] sm:$0xf]
        %v2708 = vld [vmem:[%s3 + $0x190] sm:$0xf]
        %v2709 = vld [vmem:[%s3 + $0x194] sm:$0xf]
        %v2710 = vld [vmem:[%s3 + $0x198] sm:$0xf]
        %v2711 = vld [vmem:[%s3 + $0x19c] sm:$0xf]
        %v2712 = vld [vmem:[%s3 + $0x1a0] sm:$0xf]
        %v2713 = vld [vmem:[%s3 + $0x1a4] sm:$0xf]
        %v2714 = vld [vmem:[%s3 + $0x1a8] sm:$0xf]
        %v2715 = vld [vmem:[%s3 + $0x1ac] sm:$0xf]
        %v2716 = vld [vmem:[%s3 + $0x1b0] sm:$0xf]
        %v2717 = vld [vmem:[%s3 + $0x1b4] sm:$0xf]
        %v2718 = vld [vmem:[%s3 + $0x1b8] sm:$0xf]
        %v2719 = vld [vmem:[%s3 + $0x1bc] sm:$0xf]
        %v2720 = vld [vmem:[%s3 + $0x1c0] sm:$0xf]
        %v2721 = vld [vmem:[%s3 + $0x1c4] sm:$0xf]
        %v2722 = vld [vmem:[%s3 + $0x1c8] sm:$0xf]
        %v2723 = vld [vmem:[%s3 + $0x1cc] sm:$0xf]
        %v2724 = vld [vmem:[%s3 + $0x1d0] sm:$0xf]
        %v2725 = vld [vmem:[%s3 + $0x1d4] sm:$0xf]
        %v2726 = vld [vmem:[%s3 + $0x1d8] sm:$0xf]
        %v2727 = vld [vmem:[%s3 + $0x1dc] sm:$0xf]
        %v2728 = vld [vmem:[%s3 + $0x1e0] sm:$0xf]
        %v2729 = vld [vmem:[%s3 + $0x1e4] sm:$0xf]
        %v2730 = vld [vmem:[%s3 + $0x1e8] sm:$0xf]
        %v2731 = vld [vmem:[%s3 + $0x1ec] sm:$0xf]
        %v2732 = vld [vmem:[%s3 + $0x1f0] sm:$0xf]
        %v2733 = vld [vmem:[%s3 + $0x1f4] sm:$0xf]
        %v2734 = vld [vmem:[%s3 + $0x1f8] sm:$0xf]
        %v2735 = vld [vmem:[%s3 + $0x1fc] sm:$0xf]
        %v2736 = vld [vmem:[%s3 + $0x200] sm:$0xf]
        %v2737 = vld [vmem:[%s3 + $0x204] sm:$0xf]
        %v2738 = vld [vmem:[%s3 + $0x208] sm:$0xf]
        %v2739 = vld [vmem:[%s3 + $0x20c] sm:$0xf]
        %v2740 = vld [vmem:[%s3 + $0x210] sm:$0xf]
        %v2741 = vld [vmem:[%s3 + $0x214] sm:$0xf]
        %v2742 = vld [vmem:[%s3 + $0x218] sm:$0xf]
        %v2743 = vld [vmem:[%s3 + $0x21c] sm:$0xf]
        %v2744 = vld [vmem:[%s3 + $0x220] sm:$0xf]
        %v2745 = vld [vmem:[%s3 + $0x224] sm:$0xf]
        %v2746 = vld [vmem:[%s3 + $0x228] sm:$0xf]
        %v2747 = vld [vmem:[%s3 + $0x22c] sm:$0xf]
        %v2748 = vld [vmem:[%s3 + $0x230] sm:$0xf]
        %v2749 = vld [vmem:[%s3 + $0x234] sm:$0xf]
        %v2750 = vld [vmem:[%s3 + $0x238] sm:$0xf]
        %v2751 = vld [vmem:[%s3 + $0x23c] sm:$0xf]
        %v2752 = vld [vmem:[%s4] sm:$0x1]
        %v2754 = vperm.slane %v2752, 0
        %v2916 = vunpack.c.l.b16 %v2448
        %v2917 = vunpack.c.h.b16 %v2448
        %v2918 = vunpack.c.l.b16 %v2449
        %v2919 = vunpack.c.h.b16 %v2449
        %v2920 = vunpack.c.l.b16 %v2450
        %v2921 = vunpack.c.h.b16 %v2450
        %v2922 = vunpack.c.l.b16 %v2451
        %v2923 = vunpack.c.h.b16 %v2451
        %v2924 = vunpack.c.l.b16 %v2452
        %v2925 = vunpack.c.l.b16 %v2453
        %v2926 = vunpack.c.h.b16 %v2453
        %v2927 = vunpack.c.l.b16 %v2454
        %v2928 = vunpack.c.h.b16 %v2454
        %v2929 = vunpack.c.l.b16 %v2455
        %v2930 = vunpack.c.h.b16 %v2455
        %v2931 = vunpack.c.l.b16 %v2456
        %v2932 = vunpack.c.h.b16 %v2456
        %v2933 = vunpack.c.l.b16 %v2457
        %v2934 = vunpack.c.l.b16 %v2458
        %v2935 = vunpack.c.h.b16 %v2458
        %v2936 = vunpack.c.l.b16 %v2459
        %v2937 = vunpack.c.h.b16 %v2459
        %v2938 = vunpack.c.l.b16 %v2460
        %v2939 = vunpack.c.h.b16 %v2460
        %v2940 = vunpack.c.l.b16 %v2461
        %v2941 = vunpack.c.h.b16 %v2461
        %v2942 = vunpack.c.l.b16 %v2462
        %v2943 = vunpack.c.l.b16 %v2463
        %v2944 = vunpack.c.h.b16 %v2463
        %v2945 = vunpack.c.l.b16 %v2464
        %v2946 = vunpack.c.h.b16 %v2464
        %v2947 = vunpack.c.l.b16 %v2465
        %v2948 = vunpack.c.h.b16 %v2465
        %v2949 = vunpack.c.l.b16 %v2466
        %v2950 = vunpack.c.h.b16 %v2466
        %v2951 = vunpack.c.l.b16 %v2467
        %v2952 = vunpack.c.l.b16 %v2468
        %v2953 = vunpack.c.h.b16 %v2468
        %v2954 = vunpack.c.l.b16 %v2469
        %v2955 = vunpack.c.h.b16 %v2469
        %v2956 = vunpack.c.l.b16 %v2470
        %v2957 = vunpack.c.h.b16 %v2470
        %v2958 = vunpack.c.l.b16 %v2471
        %v2959 = vunpack.c.h.b16 %v2471
        %v2960 = vunpack.c.l.b16 %v2472
        %v2961 = vunpack.c.l.b16 %v2473
        %v2962 = vunpack.c.h.b16 %v2473
        %v2963 = vunpack.c.l.b16 %v2474
        %v2964 = vunpack.c.h.b16 %v2474
        %v2965 = vunpack.c.l.b16 %v2475
        %v2966 = vunpack.c.h.b16 %v2475
        %v2967 = vunpack.c.l.b16 %v2476
        %v2968 = vunpack.c.h.b16 %v2476
        %v2969 = vunpack.c.l.b16 %v2477
        %v2970 = vunpack.c.l.b16 %v2478
        %v2971 = vunpack.c.h.b16 %v2478
        %v2972 = vunpack.c.l.b16 %v2479
        %v2973 = vunpack.c.h.b16 %v2479
        %v2974 = vunpack.c.l.b16 %v2480
        %v2975 = vunpack.c.h.b16 %v2480
        %v2976 = vunpack.c.l.b16 %v2481
        %v2977 = vunpack.c.h.b16 %v2481
        %v2978 = vunpack.c.l.b16 %v2482
        %v2979 = vunpack.c.l.b16 %v2483
        %v2980 = vunpack.c.h.b16 %v2483
        %v2981 = vunpack.c.l.b16 %v2484
        %v2982 = vunpack.c.h.b16 %v2484
        %v2983 = vunpack.c.l.b16 %v2485
        %v2984 = vunpack.c.h.b16 %v2485
        %v2985 = vunpack.c.l.b16 %v2486
        %v2986 = vunpack.c.h.b16 %v2486
        %v2987 = vunpack.c.l.b16 %v2487
        %v2988 = vunpack.c.l.b16 %v2488
        %v2989 = vunpack.c.h.b16 %v2488
        %v2990 = vunpack.c.l.b16 %v2489
        %v2991 = vunpack.c.h.b16 %v2489
        %v2992 = vunpack.c.l.b16 %v2490
        %v2993 = vunpack.c.h.b16 %v2490
        %v2994 = vunpack.c.l.b16 %v2491
        %v2995 = vunpack.c.h.b16 %v2491
        %v2996 = vunpack.c.l.b16 %v2492
        %v2997 = vunpack.c.l.b16 %v2493
        %v2998 = vunpack.c.h.b16 %v2493
        %v2999 = vunpack.c.l.b16 %v2494
        %v3000 = vunpack.c.h.b16 %v2494
        %v3001 = vunpack.c.l.b16 %v2495
        %v3002 = vunpack.c.h.b16 %v2495
        %v3003 = vunpack.c.l.b16 %v2496
        %v3004 = vunpack.c.h.b16 %v2496
        %v3005 = vunpack.c.l.b16 %v2497
        %v3006 = vunpack.c.l.b16 %v2498
        %v3007 = vunpack.c.h.b16 %v2498
        %v3008 = vunpack.c.l.b16 %v2499
        %v3009 = vunpack.c.h.b16 %v2499
        %v3010 = vunpack.c.l.b16 %v2500
        %v3011 = vunpack.c.h.b16 %v2500
        %v3012 = vunpack.c.l.b16 %v2501
        %v3013 = vunpack.c.h.b16 %v2501
        %v3014 = vunpack.c.l.b16 %v2502
        %v3015 = vunpack.c.l.b16 %v2503
        %v3016 = vunpack.c.h.b16 %v2503
        %v3017 = vunpack.c.l.b16 %v2504
        %v3018 = vunpack.c.h.b16 %v2504
        %v3019 = vunpack.c.l.b16 %v2505
        %v3020 = vunpack.c.h.b16 %v2505
        %v3021 = vunpack.c.l.b16 %v2506
        %v3022 = vunpack.c.h.b16 %v2506
        %v3023 = vunpack.c.l.b16 %v2507
        %v3024 = vunpack.c.l.b16 %v2508
        %v3025 = vunpack.c.h.b16 %v2508
        %v3026 = vunpack.c.l.b16 %v2509
        %v3027 = vunpack.c.h.b16 %v2509
        %v3028 = vunpack.c.l.b16 %v2510
        %v3029 = vunpack.c.h.b16 %v2510
        %v3030 = vunpack.c.l.b16 %v2511
        %v3031 = vunpack.c.h.b16 %v2511
        %v3032 = vunpack.c.l.b16 %v2512
        %v3033 = vunpack.c.l.b16 %v2513
        %v3034 = vunpack.c.h.b16 %v2513
        %v3035 = vunpack.c.l.b16 %v2514
        %v3036 = vunpack.c.h.b16 %v2514
        %v3037 = vunpack.c.l.b16 %v2515
        %v3038 = vunpack.c.h.b16 %v2515
        %v3039 = vunpack.c.l.b16 %v2516
        %v3040 = vunpack.c.h.b16 %v2516
        %v3041 = vunpack.c.l.b16 %v2517
        %v3042 = vunpack.c.l.b16 %v2518
        %v3043 = vunpack.c.h.b16 %v2518
        %v3044 = vunpack.c.l.b16 %v2519
        %v3045 = vunpack.c.h.b16 %v2519
        %v3046 = vunpack.c.l.b16 %v2520
        %v3047 = vunpack.c.h.b16 %v2520
        %v3048 = vunpack.c.l.b16 %v2521
        %v3049 = vunpack.c.h.b16 %v2521
        %v3050 = vunpack.c.l.b16 %v2522
        %v3051 = vunpack.c.l.b16 %v2523
        %v3052 = vunpack.c.h.b16 %v2523
        %v3053 = vunpack.c.l.b16 %v2524
        %v3054 = vunpack.c.h.b16 %v2524
        %v3055 = vunpack.c.l.b16 %v2525
        %v3056 = vunpack.c.h.b16 %v2525
        %v3057 = vunpack.c.l.b16 %v2526
        %v3058 = vunpack.c.h.b16 %v2526
        %v3059 = vunpack.c.l.b16 %v2527
        %v3060 = vunpack.c.l.b16 %v2528
        %v3061 = vunpack.c.h.b16 %v2528
        %v3062 = vunpack.c.l.b16 %v2529
        %v3063 = vunpack.c.h.b16 %v2529
        %v3064 = vunpack.c.l.b16 %v2530
        %v3065 = vunpack.c.h.b16 %v2530
        %v3066 = vunpack.c.l.b16 %v2531
        %v3067 = vunpack.c.h.b16 %v2531
        %v3068 = vunpack.c.l.b16 %v2532
        %v3069 = vunpack.c.l.b16 %v2533
        %v3070 = vunpack.c.h.b16 %v2533
        %v3071 = vunpack.c.l.b16 %v2534
        %v3072 = vunpack.c.h.b16 %v2534
        %v3073 = vunpack.c.l.b16 %v2535
        %v3074 = vunpack.c.h.b16 %v2535
        %v3075 = vunpack.c.l.b16 %v2536
        %v3076 = vunpack.c.h.b16 %v2536
        %v3077 = vunpack.c.l.b16 %v2537
        %v3078 = vunpack.c.l.b16 %v2538
        %v3079 = vunpack.c.h.b16 %v2538
        %v3080 = vunpack.c.l.b16 %v2539
        %v3081 = vunpack.c.h.b16 %v2539
        %v3082 = vunpack.c.l.b16 %v2540
        %v3083 = vunpack.c.h.b16 %v2540
        %v3084 = vunpack.c.l.b16 %v2541
        %v3085 = vunpack.c.h.b16 %v2541
        %v3086 = vunpack.c.l.b16 %v2542
        %v3087 = vunpack.c.l.b16 %v2543
        %v3088 = vunpack.c.h.b16 %v2543
        %v3089 = vunpack.c.l.b16 %v2544
        %v3090 = vunpack.c.h.b16 %v2544
        %v3091 = vunpack.c.l.b16 %v2545
        %v3092 = vunpack.c.h.b16 %v2545
        %v3093 = vunpack.c.l.b16 %v2546
        %v3094 = vunpack.c.h.b16 %v2546
        %v3095 = vunpack.c.l.b16 %v2547
        %v3096 = vunpack.c.l.b16 %v2548
        %v3097 = vunpack.c.h.b16 %v2548
        %v3098 = vunpack.c.l.b16 %v2549
        %v3099 = vunpack.c.h.b16 %v2549
        %v3100 = vunpack.c.l.b16 %v2550
        %v3101 = vunpack.c.h.b16 %v2550
        %v3102 = vunpack.c.l.b16 %v2551
        %v3103 = vunpack.c.h.b16 %v2551
        %v3104 = vunpack.c.l.b16 %v2552
        %v3105 = vunpack.c.l.b16 %v2553
        %v3106 = vunpack.c.h.b16 %v2553
        %v3107 = vunpack.c.l.b16 %v2554
        %v3108 = vunpack.c.h.b16 %v2554
        %v3109 = vunpack.c.l.b16 %v2555
        %v3110 = vunpack.c.h.b16 %v2555
        %v3111 = vunpack.c.l.b16 %v2556
        %v3112 = vunpack.c.h.b16 %v2556
        %v3113 = vunpack.c.l.b16 %v2557
        %v3114 = vunpack.c.l.b16 %v2558
        %v3115 = vunpack.c.h.b16 %v2558
        %v3116 = vunpack.c.l.b16 %v2559
        %v3117 = vunpack.c.h.b16 %v2559
        %v3118 = vunpack.c.l.b16 %v2560
        %v3119 = vunpack.c.h.b16 %v2560
        %v3120 = vunpack.c.l.b16 %v2561
        %v3121 = vunpack.c.h.b16 %v2561
        %v3122 = vunpack.c.l.b16 %v2562
        %v3123 = vunpack.c.l.b16 %v2563
        %v3124 = vunpack.c.h.b16 %v2563
        %v3125 = vunpack.c.l.b16 %v2564
        %v3126 = vunpack.c.h.b16 %v2564
        %v3127 = vunpack.c.l.b16 %v2565
        %v3128 = vunpack.c.h.b16 %v2565
        %v3129 = vunpack.c.l.b16 %v2566
        %v3130 = vunpack.c.h.b16 %v2566
        %v3131 = vunpack.c.l.b16 %v2567
        %v3132 = vunpack.c.l.b16 %v2568
        %v3133 = vunpack.c.h.b16 %v2568
        %v3134 = vunpack.c.l.b16 %v2569
        %v3135 = vunpack.c.h.b16 %v2569
        %v3136 = vunpack.c.l.b16 %v2570
        %v3137 = vunpack.c.h.b16 %v2570
        %v3138 = vunpack.c.l.b16 %v2571
        %v3139 = vunpack.c.h.b16 %v2571
        %v3140 = vunpack.c.l.b16 %v2572
        %v3141 = vunpack.c.l.b16 %v2573
        %v3142 = vunpack.c.h.b16 %v2573
        %v3143 = vunpack.c.l.b16 %v2574
        %v3144 = vunpack.c.h.b16 %v2574
        %v3145 = vunpack.c.l.b16 %v2575
        %v3146 = vunpack.c.h.b16 %v2575
        %v3147 = vunpack.c.l.b16 %v2576
        %v3148 = vunpack.c.h.b16 %v2576
        %v3149 = vunpack.c.l.b16 %v2577
        %v3150 = vunpack.c.l.b16 %v2578
        %v3151 = vunpack.c.h.b16 %v2578
        %v3152 = vunpack.c.l.b16 %v2579
        %v3153 = vunpack.c.h.b16 %v2579
        %v3154 = vunpack.c.l.b16 %v2580
        %v3155 = vunpack.c.h.b16 %v2580
        %v3156 = vunpack.c.l.b16 %v2581
        %v3157 = vunpack.c.h.b16 %v2581
        %v3158 = vunpack.c.l.b16 %v2582
        %v3159 = vunpack.c.l.b16 %v2583
        %v3160 = vunpack.c.h.b16 %v2583
        %v3161 = vunpack.c.l.b16 %v2584
        %v3162 = vunpack.c.h.b16 %v2584
        %v3163 = vunpack.c.l.b16 %v2585
        %v3164 = vunpack.c.h.b16 %v2585
        %v3165 = vunpack.c.l.b16 %v2586
        %v3166 = vunpack.c.h.b16 %v2586
        %v3167 = vunpack.c.l.b16 %v2587
        %v3168 = vunpack.c.l.b16 %v2588
        %v3169 = vunpack.c.h.b16 %v2588
        %v3170 = vunpack.c.l.b16 %v2589
        %v3171 = vunpack.c.h.b16 %v2589
        %v3172 = vunpack.c.l.b16 %v2590
        %v3173 = vunpack.c.h.b16 %v2590
        %v3174 = vunpack.c.l.b16 %v2591
        %v3175 = vunpack.c.h.b16 %v2591
        %v3176 = vunpack.c.l.b16 %v2592
        %v3177 = vunpack.c.l.b16 %v2593
        %v3178 = vunpack.c.h.b16 %v2593
        %v3179 = vunpack.c.l.b16 %v2594
        %v3180 = vunpack.c.h.b16 %v2594
        %v3181 = vunpack.c.l.b16 %v2595
        %v3182 = vunpack.c.h.b16 %v2595
        %v3183 = vunpack.c.l.b16 %v2596
        %v3184 = vunpack.c.h.b16 %v2596
        %v3185 = vunpack.c.l.b16 %v2597
        %v3186 = vunpack.c.l.b16 %v2598
        %v3187 = vunpack.c.h.b16 %v2598
        %v3188 = vunpack.c.l.b16 %v2599
        %v3189 = vunpack.c.h.b16 %v2599
        %v3190 = vunpack.c.l.b16 %v2600
        %v3191 = vunpack.c.h.b16 %v2600
        %v3192 = vunpack.c.l.b16 %v2601
        %v3193 = vunpack.c.h.b16 %v2601
        %v3194 = vunpack.c.l.b16 %v2602
        %v3195 = vunpack.c.l.b16 %v2603
        %v3196 = vunpack.c.h.b16 %v2603
        %v3197 = vunpack.c.l.b16 %v2604
        %v3198 = vunpack.c.h.b16 %v2604
        %v3199 = vunpack.c.l.b16 %v2605
        %v3200 = vunpack.c.h.b16 %v2605
        %v3201 = vunpack.c.l.b16 %v2606
        %v3202 = vunpack.c.h.b16 %v2606
        %v3203 = vunpack.c.l.b16 %v2607
        %v3204 = vpack.c.b16 %v2925, %v2916
        %v3205 = vpack.c.b16 %v2926, %v2917
        %v3206 = vpack.c.b16 %v2927, %v2918
        %v3207 = vpack.c.b16 %v2928, %v2919
        %v3208 = vpack.c.b16 %v2929, %v2920
        %v3209 = vpack.c.b16 %v2930, %v2921
        %v3210 = vpack.c.b16 %v2931, %v2922
        %v3211 = vpack.c.b16 %v2932, %v2923
        %v3212 = vpack.c.b16 %v2933, %v2924
        %v3213 = vpack.c.b16 %v2943, %v2934
        %v3214 = vpack.c.b16 %v2944, %v2935
        %v3215 = vpack.c.b16 %v2945, %v2936
        %v3216 = vpack.c.b16 %v2946, %v2937
        %v3217 = vpack.c.b16 %v2947, %v2938
        %v3218 = vpack.c.b16 %v2948, %v2939
        %v3219 = vpack.c.b16 %v2949, %v2940
        %v3220 = vpack.c.b16 %v2950, %v2941
        %v3221 = vpack.c.b16 %v2951, %v2942
        %v3222 = vpack.c.b16 %v2961, %v2952
        %v3223 = vpack.c.b16 %v2962, %v2953
        %v3224 = vpack.c.b16 %v2963, %v2954
        %v3225 = vpack.c.b16 %v2964, %v2955
        %v3226 = vpack.c.b16 %v2965, %v2956
        %v3227 = vpack.c.b16 %v2966, %v2957
        %v3228 = vpack.c.b16 %v2967, %v2958
        %v3229 = vpack.c.b16 %v2968, %v2959
        %v3230 = vpack.c.b16 %v2969, %v2960
        %v3231 = vpack.c.b16 %v2979, %v2970
        %v3232 = vpack.c.b16 %v2980, %v2971
        %v3233 = vpack.c.b16 %v2981, %v2972
        %v3234 = vpack.c.b16 %v2982, %v2973
        %v3235 = vpack.c.b16 %v2983, %v2974
        %v3236 = vpack.c.b16 %v2984, %v2975
        %v3237 = vpack.c.b16 %v2985, %v2976
        %v3238 = vpack.c.b16 %v2986, %v2977
        %v3239 = vpack.c.b16 %v2987, %v2978
        %v3240 = vpack.c.b16 %v2997, %v2988
        %v3241 = vpack.c.b16 %v2998, %v2989
        %v3242 = vpack.c.b16 %v2999, %v2990
        %v3243 = vpack.c.b16 %v3000, %v2991
        %v3244 = vpack.c.b16 %v3001, %v2992
        %v3245 = vpack.c.b16 %v3002, %v2993
        %v3246 = vpack.c.b16 %v3003, %v2994
        %v3247 = vpack.c.b16 %v3004, %v2995
        %v3248 = vpack.c.b16 %v3005, %v2996
        %v3249 = vpack.c.b16 %v3015, %v3006
        %v3250 = vpack.c.b16 %v3016, %v3007
        %v3251 = vpack.c.b16 %v3017, %v3008
        %v3252 = vpack.c.b16 %v3018, %v3009
        %v3253 = vpack.c.b16 %v3019, %v3010
        %v3254 = vpack.c.b16 %v3020, %v3011
        %v3255 = vpack.c.b16 %v3021, %v3012
        %v3256 = vpack.c.b16 %v3022, %v3013
        %v3257 = vpack.c.b16 %v3023, %v3014
        %v3258 = vpack.c.b16 %v3033, %v3024
        %v3259 = vpack.c.b16 %v3034, %v3025
        %v3260 = vpack.c.b16 %v3035, %v3026
        %v3261 = vpack.c.b16 %v3036, %v3027
        %v3262 = vpack.c.b16 %v3037, %v3028
        %v3263 = vpack.c.b16 %v3038, %v3029
        %v3264 = vpack.c.b16 %v3039, %v3030
        %v3265 = vpack.c.b16 %v3040, %v3031
        %v3266 = vpack.c.b16 %v3041, %v3032
        %v3267 = vpack.c.b16 %v3051, %v3042
        %v3268 = vpack.c.b16 %v3052, %v3043
        %v3269 = vpack.c.b16 %v3053, %v3044
        %v3270 = vpack.c.b16 %v3054, %v3045
        %v3271 = vpack.c.b16 %v3055, %v3046
        %v3272 = vpack.c.b16 %v3056, %v3047
        %v3273 = vpack.c.b16 %v3057, %v3048
        %v3274 = vpack.c.b16 %v3058, %v3049
        %v3275 = vpack.c.b16 %v3059, %v3050
        %v3276 = vpack.c.b16 %v3069, %v3060
        %v3277 = vpack.c.b16 %v3070, %v3061
        %v3278 = vpack.c.b16 %v3071, %v3062
        %v3279 = vpack.c.b16 %v3072, %v3063
        %v3280 = vpack.c.b16 %v3073, %v3064
        %v3281 = vpack.c.b16 %v3074, %v3065
        %v3282 = vpack.c.b16 %v3075, %v3066
        %v3283 = vpack.c.b16 %v3076, %v3067
        %v3284 = vpack.c.b16 %v3077, %v3068
        %v3285 = vpack.c.b16 %v3087, %v3078
        %v3286 = vpack.c.b16 %v3088, %v3079
        %v3287 = vpack.c.b16 %v3089, %v3080
        %v3288 = vpack.c.b16 %v3090, %v3081
        %v3289 = vpack.c.b16 %v3091, %v3082
        %v3290 = vpack.c.b16 %v3092, %v3083
        %v3291 = vpack.c.b16 %v3093, %v3084
        %v3292 = vpack.c.b16 %v3094, %v3085
        %v3293 = vpack.c.b16 %v3095, %v3086
        %v3294 = vpack.c.b16 %v3105, %v3096
        %v3295 = vpack.c.b16 %v3106, %v3097
        %v3296 = vpack.c.b16 %v3107, %v3098
        %v3297 = vpack.c.b16 %v3108, %v3099
        %v3298 = vpack.c.b16 %v3109, %v3100
        %v3299 = vpack.c.b16 %v3110, %v3101
        %v3300 = vpack.c.b16 %v3111, %v3102
        %v3301 = vpack.c.b16 %v3112, %v3103
        %v3302 = vpack.c.b16 %v3113, %v3104
        %v3303 = vpack.c.b16 %v3123, %v3114
        %v3304 = vpack.c.b16 %v3124, %v3115
        %v3305 = vpack.c.b16 %v3125, %v3116
        %v3306 = vpack.c.b16 %v3126, %v3117
        %v3307 = vpack.c.b16 %v3127, %v3118
        %v3308 = vpack.c.b16 %v3128, %v3119
        %v3309 = vpack.c.b16 %v3129, %v3120
        %v3310 = vpack.c.b16 %v3130, %v3121
        %v3311 = vpack.c.b16 %v3131, %v3122
        %v3312 = vpack.c.b16 %v3141, %v3132
        %v3313 = vpack.c.b16 %v3142, %v3133
        %v3314 = vpack.c.b16 %v3143, %v3134
        %v3315 = vpack.c.b16 %v3144, %v3135
        %v3316 = vpack.c.b16 %v3145, %v3136
        %v3317 = vpack.c.b16 %v3146, %v3137
        %v3318 = vpack.c.b16 %v3147, %v3138
        %v3319 = vpack.c.b16 %v3148, %v3139
        %v3320 = vpack.c.b16 %v3149, %v3140
        %v3321 = vpack.c.b16 %v3159, %v3150
        %v3322 = vpack.c.b16 %v3160, %v3151
        %v3323 = vpack.c.b16 %v3161, %v3152
        %v3324 = vpack.c.b16 %v3162, %v3153
        %v3325 = vpack.c.b16 %v3163, %v3154
        %v3326 = vpack.c.b16 %v3164, %v3155
        %v3327 = vpack.c.b16 %v3165, %v3156
        %v3328 = vpack.c.b16 %v3166, %v3157
        %v3329 = vpack.c.b16 %v3167, %v3158
        %v3330 = vpack.c.b16 %v3177, %v3168
        %v3331 = vpack.c.b16 %v3178, %v3169
        %v3332 = vpack.c.b16 %v3179, %v3170
        %v3333 = vpack.c.b16 %v3180, %v3171
        %v3334 = vpack.c.b16 %v3181, %v3172
        %v3335 = vpack.c.b16 %v3182, %v3173
        %v3336 = vpack.c.b16 %v3183, %v3174
        %v3337 = vpack.c.b16 %v3184, %v3175
        %v3338 = vpack.c.b16 %v3185, %v3176
        %v3339 = vpack.c.b16 %v3195, %v3186
        %v3340 = vpack.c.b16 %v3196, %v3187
        %v3341 = vpack.c.b16 %v3197, %v3188
        %v3342 = vpack.c.b16 %v3198, %v3189
        %v3343 = vpack.c.b16 %v3199, %v3190
        %v3344 = vpack.c.b16 %v3200, %v3191
        %v3345 = vpack.c.b16 %v3201, %v3192
        %v3346 = vpack.c.b16 %v3202, %v3193
        %v3347 = vpack.c.b16 %v3203, %v3194
        %v3636 = vunpack.c.l.b16 %v2608
        %v3637 = vunpack.c.l.b16 %v2609
        %v3638 = vunpack.c.l.b16 %v2610
        %v3639 = vunpack.c.l.b16 %v2611
        %v3640 = vunpack.c.l.b16 %v2612
        %v3641 = vunpack.c.l.b16 %v2613
        %v3642 = vunpack.c.l.b16 %v2614
        %v3643 = vunpack.c.l.b16 %v2615
        %v3644 = vunpack.c.l.b16 %v2616
        %v3645 = vunpack.c.l.b16 %v2617
        %v3646 = vunpack.c.l.b16 %v2618
        %v3647 = vunpack.c.l.b16 %v2619
        %v3648 = vunpack.c.l.b16 %v2620
        %v3649 = vunpack.c.l.b16 %v2621
        %v3650 = vunpack.c.l.b16 %v2622
        %v3651 = vunpack.c.l.b16 %v2623
        %v3652 = vunpack.c.l.b16 %v2624
        %v3653 = vunpack.c.l.b16 %v2625
        %v3654 = vunpack.c.l.b16 %v2626
        %v3655 = vunpack.c.l.b16 %v2627
        %v3656 = vunpack.c.l.b16 %v2628
        %v3657 = vunpack.c.l.b16 %v2629
        %v3658 = vunpack.c.l.b16 %v2630
        %v3659 = vunpack.c.l.b16 %v2631
        %v3660 = vunpack.c.l.b16 %v2632
        %v3661 = vunpack.c.l.b16 %v2633
        %v3662 = vunpack.c.l.b16 %v2634
        %v3663 = vunpack.c.l.b16 %v2635
        %v3664 = vunpack.c.l.b16 %v2636
        %v3665 = vunpack.c.l.b16 %v2637
        %v3666 = vunpack.c.l.b16 %v2638
        %v3667 = vunpack.c.l.b16 %v2639
        %v3668 = vunpack.c.l.b16 %v2640
        %v3669 = vunpack.c.l.b16 %v2641
        %v3670 = vunpack.c.l.b16 %v2642
        %v3671 = vunpack.c.l.b16 %v2643
        %v3672 = vunpack.c.l.b16 %v2644
        %v3673 = vunpack.c.l.b16 %v2645
        %v3674 = vunpack.c.l.b16 %v2646
        %v3675 = vunpack.c.l.b16 %v2647
        %v3676 = vunpack.c.l.b16 %v2648
        %v3677 = vunpack.c.l.b16 %v2649
        %v3678 = vunpack.c.l.b16 %v2650
        %v3679 = vunpack.c.l.b16 %v2651
        %v3680 = vunpack.c.l.b16 %v2652
        %v3681 = vunpack.c.l.b16 %v2653
        %v3682 = vunpack.c.l.b16 %v2654
        %v3683 = vunpack.c.l.b16 %v2655
        %v3684 = vunpack.c.l.b16 %v2656
        %v3685 = vunpack.c.l.b16 %v2657
        %v3686 = vunpack.c.l.b16 %v2658
        %v3687 = vunpack.c.l.b16 %v2659
        %v3688 = vunpack.c.l.b16 %v2660
        %v3689 = vunpack.c.l.b16 %v2661
        %v3690 = vunpack.c.l.b16 %v2662
        %v3691 = vunpack.c.l.b16 %v2663
        %v3692 = vunpack.c.l.b16 %v2664
        %v3693 = vunpack.c.l.b16 %v2665
        %v3694 = vunpack.c.l.b16 %v2666
        %v3695 = vunpack.c.l.b16 %v2667
        %v3696 = vunpack.c.l.b16 %v2668
        %v3697 = vunpack.c.l.b16 %v2669
        %v3698 = vunpack.c.l.b16 %v2670
        %v3699 = vunpack.c.l.b16 %v2671
        %v3700 = vunpack.c.l.b16 %v2672
        %v3701 = vunpack.c.l.b16 %v2673
        %v3702 = vunpack.c.l.b16 %v2674
        %v3703 = vunpack.c.l.b16 %v2675
        %v3704 = vunpack.c.l.b16 %v2676
        %v3705 = vunpack.c.l.b16 %v2677
        %v3706 = vunpack.c.l.b16 %v2678
        %v3707 = vunpack.c.l.b16 %v2679
        %v3708 = vunpack.c.l.b16 %v2680
        %v3709 = vunpack.c.l.b16 %v2681
        %v3710 = vunpack.c.l.b16 %v2682
        %v3711 = vunpack.c.l.b16 %v2683
        %v3712 = vunpack.c.l.b16 %v2684
        %v3713 = vunpack.c.l.b16 %v2685
        %v3714 = vunpack.c.l.b16 %v2686
        %v3715 = vunpack.c.l.b16 %v2687
        %v3716 = vunpack.c.l.b16 %v2688
        %v3717 = vunpack.c.l.b16 %v2689
        %v3718 = vunpack.c.l.b16 %v2690
        %v3719 = vunpack.c.l.b16 %v2691
        %v3720 = vunpack.c.l.b16 %v2692
        %v3721 = vunpack.c.l.b16 %v2693
        %v3722 = vunpack.c.l.b16 %v2694
        %v3723 = vunpack.c.l.b16 %v2695
        %v3724 = vunpack.c.l.b16 %v2696
        %v3725 = vunpack.c.l.b16 %v2697
        %v3726 = vunpack.c.l.b16 %v2698
        %v3727 = vunpack.c.l.b16 %v2699
        %v3728 = vunpack.c.l.b16 %v2700
        %v3729 = vunpack.c.l.b16 %v2701
        %v3730 = vunpack.c.l.b16 %v2702
        %v3731 = vunpack.c.l.b16 %v2703
        %v3732 = vunpack.c.l.b16 %v2704
        %v3733 = vunpack.c.l.b16 %v2705
        %v3734 = vunpack.c.l.b16 %v2706
        %v3735 = vunpack.c.l.b16 %v2707
        %v3736 = vunpack.c.l.b16 %v2708
        %v3737 = vunpack.c.l.b16 %v2709
        %v3738 = vunpack.c.l.b16 %v2710
        %v3739 = vunpack.c.l.b16 %v2711
        %v3740 = vunpack.c.l.b16 %v2712
        %v3741 = vunpack.c.l.b16 %v2713
        %v3742 = vunpack.c.l.b16 %v2714
        %v3743 = vunpack.c.l.b16 %v2715
        %v3744 = vunpack.c.l.b16 %v2716
        %v3745 = vunpack.c.l.b16 %v2717
        %v3746 = vunpack.c.l.b16 %v2718
        %v3747 = vunpack.c.l.b16 %v2719
        %v3748 = vunpack.c.l.b16 %v2720
        %v3749 = vunpack.c.l.b16 %v2721
        %v3750 = vunpack.c.l.b16 %v2722
        %v3751 = vunpack.c.l.b16 %v2723
        %v3752 = vunpack.c.l.b16 %v2724
        %v3753 = vunpack.c.l.b16 %v2725
        %v3754 = vunpack.c.l.b16 %v2726
        %v3755 = vunpack.c.l.b16 %v2727
        %v3756 = vunpack.c.l.b16 %v2728
        %v3757 = vunpack.c.l.b16 %v2729
        %v3758 = vunpack.c.l.b16 %v2730
        %v3759 = vunpack.c.l.b16 %v2731
        %v3760 = vunpack.c.l.b16 %v2732
        %v3761 = vunpack.c.l.b16 %v2733
        %v3762 = vunpack.c.l.b16 %v2734
        %v3763 = vunpack.c.l.b16 %v2735
        %v3764 = vunpack.c.l.b16 %v2736
        %v3765 = vunpack.c.l.b16 %v2737
        %v3766 = vunpack.c.l.b16 %v2738
        %v3767 = vunpack.c.l.b16 %v2739
        %v3768 = vunpack.c.l.b16 %v2740
        %v3769 = vunpack.c.l.b16 %v2741
        %v3770 = vunpack.c.l.b16 %v2742
        %v3771 = vunpack.c.l.b16 %v2743
        %v3772 = vunpack.c.l.b16 %v2744
        %v3773 = vunpack.c.l.b16 %v2745
        %v3774 = vunpack.c.l.b16 %v2746
        %v3775 = vunpack.c.l.b16 %v2747
        %v3776 = vunpack.c.l.b16 %v2748
        %v3777 = vunpack.c.l.b16 %v2749
        %v3778 = vunpack.c.l.b16 %v2750
        %v3779 = vunpack.c.l.b16 %v2751
        %v3780 = vpack.c.b16 %v3637, %v3636
        %v3781 = vpack.c.b16 %v3639, %v3638
        %v3782 = vpack.c.b16 %v3641, %v3640
        %v3783 = vpack.c.b16 %v3643, %v3642
        %v3784 = vpack.c.b16 %v3645, %v3644
        %v3785 = vpack.c.b16 %v3647, %v3646
        %v3786 = vpack.c.b16 %v3649, %v3648
        %v3787 = vpack.c.b16 %v3651, %v3650
        %v3788 = vpack.c.b16 %v3653, %v3652
        %v3789 = vpack.c.b16 %v3655, %v3654
        %v3790 = vpack.c.b16 %v3657, %v3656
        %v3791 = vpack.c.b16 %v3659, %v3658
        %v3792 = vpack.c.b16 %v3661, %v3660
        %v3793 = vpack.c.b16 %v3663, %v3662
        %v3794 = vpack.c.b16 %v3665, %v3664
        %v3795 = vpack.c.b16 %v3667, %v3666
        %v3796 = vpack.c.b16 %v3669, %v3668
        %v3797 = vpack.c.b16 %v3671, %v3670
        %v3798 = vpack.c.b16 %v3673, %v3672
        %v3799 = vpack.c.b16 %v3675, %v3674
        %v3800 = vpack.c.b16 %v3677, %v3676
        %v3801 = vpack.c.b16 %v3679, %v3678
        %v3802 = vpack.c.b16 %v3681, %v3680
        %v3803 = vpack.c.b16 %v3683, %v3682
        %v3804 = vpack.c.b16 %v3685, %v3684
        %v3805 = vpack.c.b16 %v3687, %v3686
        %v3806 = vpack.c.b16 %v3689, %v3688
        %v3807 = vpack.c.b16 %v3691, %v3690
        %v3808 = vpack.c.b16 %v3693, %v3692
        %v3809 = vpack.c.b16 %v3695, %v3694
        %v3810 = vpack.c.b16 %v3697, %v3696
        %v3811 = vpack.c.b16 %v3699, %v3698
        %v3812 = vpack.c.b16 %v3701, %v3700
        %v3813 = vpack.c.b16 %v3703, %v3702
        %v3814 = vpack.c.b16 %v3705, %v3704
        %v3815 = vpack.c.b16 %v3707, %v3706
        %v3816 = vpack.c.b16 %v3709, %v3708
        %v3817 = vpack.c.b16 %v3711, %v3710
        %v3818 = vpack.c.b16 %v3713, %v3712
        %v3819 = vpack.c.b16 %v3715, %v3714
        %v3820 = vpack.c.b16 %v3717, %v3716
        %v3821 = vpack.c.b16 %v3719, %v3718
        %v3822 = vpack.c.b16 %v3721, %v3720
        %v3823 = vpack.c.b16 %v3723, %v3722
        %v3824 = vpack.c.b16 %v3725, %v3724
        %v3825 = vpack.c.b16 %v3727, %v3726
        %v3826 = vpack.c.b16 %v3729, %v3728
        %v3827 = vpack.c.b16 %v3731, %v3730
        %v3828 = vpack.c.b16 %v3733, %v3732
        %v3829 = vpack.c.b16 %v3735, %v3734
        %v3830 = vpack.c.b16 %v3737, %v3736
        %v3831 = vpack.c.b16 %v3739, %v3738
        %v3832 = vpack.c.b16 %v3741, %v3740
        %v3833 = vpack.c.b16 %v3743, %v3742
        %v3834 = vpack.c.b16 %v3745, %v3744
        %v3835 = vpack.c.b16 %v3747, %v3746
        %v3836 = vpack.c.b16 %v3749, %v3748
        %v3837 = vpack.c.b16 %v3751, %v3750
        %v3838 = vpack.c.b16 %v3753, %v3752
        %v3839 = vpack.c.b16 %v3755, %v3754
        %v3840 = vpack.c.b16 %v3757, %v3756
        %v3841 = vpack.c.b16 %v3759, %v3758
        %v3842 = vpack.c.b16 %v3761, %v3760
        %v3843 = vpack.c.b16 %v3763, %v3762
        %v3844 = vpack.c.b16 %v3765, %v3764
        %v3845 = vpack.c.b16 %v3767, %v3766
        %v3846 = vpack.c.b16 %v3769, %v3768
        %v3847 = vpack.c.b16 %v3771, %v3770
        %v3848 = vpack.c.b16 %v3773, %v3772
        %v3849 = vpack.c.b16 %v3775, %v3774
        %v3850 = vpack.c.b16 %v3777, %v3776
        %v3851 = vpack.c.b16 %v3779, %v3778
        %3924 = vmatpush.bf16.msra.mxu0 %v3787
        %3925 = vmatpush.bf16.msra.mxu0 %v3786
        %3926 = vmatpush.bf16.msra.mxu0 %v3785
        %3927 = vmatpush.bf16.msra.mxu0 %v3784
        %3928 = vmatpush.bf16.msra.mxu0 %v3783
        %3929 = vmatpush.bf16.msra.mxu0 %v3782
        %3930 = vmatpush.bf16.msra.mxu0 %v3781
        %3931 = vmatpush.bf16.msra.mxu0 %v3780
        %3932 = vmatmul.bf16.gmra.mxu0 %v3204
        %v3933 = vpop.f32.mrf.mxu0
        %v3934 = vadd.f32 %v2754, %v3933
        %v3935 = vpop.f32.mrf.mxu0
        %v3936 = vadd.f32 %v2754, %v3935
        %3937 = vmatmul.bf16.gmra.mxu0 %v3213
        %v3938 = vpop.f32.mrf.mxu0
        %v3939 = vadd.f32 %v2754, %v3938
        %v3940 = vpop.f32.mrf.mxu0
        %v3941 = vadd.f32 %v2754, %v3940
        %3942 = vmatmul.bf16.gmra.mxu0 %v3222
        %v3943 = vpop.f32.mrf.mxu0
        %v3944 = vadd.f32 %v2754, %v3943
        %v3945 = vpop.f32.mrf.mxu0
        %v3946 = vadd.f32 %v2754, %v3945
        %3947 = vmatmul.bf16.gmra.mxu0 %v3231
        %v3948 = vpop.f32.mrf.mxu0
        %v3949 = vadd.f32 %v2754, %v3948
        %v3950 = vpop.f32.mrf.mxu0
        %v3951 = vadd.f32 %v2754, %v3950
        %3952 = vmatmul.bf16.gmra.mxu0 %v3240
        %v3953 = vpop.f32.mrf.mxu0
        %v3954 = vadd.f32 %v2754, %v3953
        %v3955 = vpop.f32.mrf.mxu0
        %v3956 = vadd.f32 %v2754, %v3955
        %3957 = vmatmul.bf16.gmra.mxu0 %v3249
        %v3958 = vpop.f32.mrf.mxu0
        %v3959 = vadd.f32 %v2754, %v3958
        %v3960 = vpop.f32.mrf.mxu0
        %v3961 = vadd.f32 %v2754, %v3960
        %3962 = vmatmul.bf16.gmra.mxu0 %v3258
        %v3963 = vpop.f32.mrf.mxu0
        %v3964 = vadd.f32 %v2754, %v3963
        %v3965 = vpop.f32.mrf.mxu0
        %v3966 = vadd.f32 %v2754, %v3965
        %3967 = vmatmul.bf16.gmra.mxu0 %v3267
        %v3968 = vpop.f32.mrf.mxu0
        %v3969 = vadd.f32 %v2754, %v3968
        %v3970 = vpop.f32.mrf.mxu0
        %v3971 = vadd.f32 %v2754, %v3970
        %3972 = vmatmul.bf16.gmra.mxu0 %v3276
        %v3973 = vpop.f32.mrf.mxu0
        %v3974 = vadd.f32 %v2754, %v3973
        %v3975 = vpop.f32.mrf.mxu0
        %v3976 = vadd.f32 %v2754, %v3975
        %3977 = vmatmul.bf16.gmra.mxu0 %v3285
        %v3978 = vpop.f32.mrf.mxu0
        %v3979 = vadd.f32 %v2754, %v3978
        %v3980 = vpop.f32.mrf.mxu0
        %v3981 = vadd.f32 %v2754, %v3980
        %3982 = vmatmul.bf16.gmra.mxu0 %v3294
        %v3983 = vpop.f32.mrf.mxu0
        %v3984 = vadd.f32 %v2754, %v3983
        %v3985 = vpop.f32.mrf.mxu0
        %v3986 = vadd.f32 %v2754, %v3985
        %3987 = vmatmul.bf16.gmra.mxu0 %v3303
        %v3988 = vpop.f32.mrf.mxu0
        %v3989 = vadd.f32 %v2754, %v3988
        %v3990 = vpop.f32.mrf.mxu0
        %v3991 = vadd.f32 %v2754, %v3990
        %3992 = vmatmul.bf16.gmra.mxu0 %v3312
        %v3993 = vpop.f32.mrf.mxu0
        %v3994 = vadd.f32 %v2754, %v3993
        %v3995 = vpop.f32.mrf.mxu0
        %v3996 = vadd.f32 %v2754, %v3995
        %3997 = vmatmul.bf16.gmra.mxu0 %v3321
        %v3998 = vpop.f32.mrf.mxu0
        %v3999 = vadd.f32 %v2754, %v3998
        %v4000 = vpop.f32.mrf.mxu0
        %v4001 = vadd.f32 %v2754, %v4000
        %4002 = vmatmul.bf16.gmra.mxu0 %v3330
        %v4003 = vpop.f32.mrf.mxu0
        %v4004 = vadd.f32 %v2754, %v4003
        %v4005 = vpop.f32.mrf.mxu0
        %v4006 = vadd.f32 %v2754, %v4005
        %4007 = vmatmul.bf16.gmra.mxu0 %v3339
        %v4008 = vpop.f32.mrf.mxu0
        %v4009 = vadd.f32 %v2754, %v4008
        %v4010 = vpop.f32.mrf.mxu0
        %v4011 = vadd.f32 %v2754, %v4010
        %4012 = vdwg.mxu0
        %4013 = vmatpush.bf16.msra.mxu0 %v3795
        %4014 = vmatpush.bf16.msra.mxu0 %v3794
        %4015 = vmatpush.bf16.msra.mxu0 %v3793
        %4016 = vmatpush.bf16.msra.mxu0 %v3792
        %4017 = vmatpush.bf16.msra.mxu0 %v3791
        %4018 = vmatpush.bf16.msra.mxu0 %v3790
        %4019 = vmatpush.bf16.msra.mxu0 %v3789
        %4020 = vmatpush.bf16.msra.mxu0 %v3788
        %4021 = vmatmul.bf16.gmra.mxu0 %v3205
        %v4022 = vpop.f32.mrf.mxu0
        %v4023 = vadd.f32 %v3934, %v4022
        %v4024 = vpop.f32.mrf.mxu0
        %v4025 = vadd.f32 %v3936, %v4024
        %4026 = vmatmul.bf16.gmra.mxu0 %v3214
        %v4027 = vpop.f32.mrf.mxu0
        %v4028 = vadd.f32 %v3939, %v4027
        %v4029 = vpop.f32.mrf.mxu0
        %v4030 = vadd.f32 %v3941, %v4029
        %4031 = vmatmul.bf16.gmra.mxu0 %v3223
        %v4032 = vpop.f32.mrf.mxu0
        %v4033 = vadd.f32 %v3944, %v4032
        %v4034 = vpop.f32.mrf.mxu0
        %v4035 = vadd.f32 %v3946, %v4034
        %4036 = vmatmul.bf16.gmra.mxu0 %v3232
        %v4037 = vpop.f32.mrf.mxu0
        %v4038 = vadd.f32 %v3949, %v4037
        %v4039 = vpop.f32.mrf.mxu0
        %v4040 = vadd.f32 %v3951, %v4039
        %4041 = vmatmul.bf16.gmra.mxu0 %v3241
        %v4042 = vpop.f32.mrf.mxu0
        %v4043 = vadd.f32 %v3954, %v4042
        %v4044 = vpop.f32.mrf.mxu0
        %v4045 = vadd.f32 %v3956, %v4044
        %4046 = vmatmul.bf16.gmra.mxu0 %v3250
        %v4047 = vpop.f32.mrf.mxu0
        %v4048 = vadd.f32 %v3959, %v4047
        %v4049 = vpop.f32.mrf.mxu0
        %v4050 = vadd.f32 %v3961, %v4049
        %4051 = vmatmul.bf16.gmra.mxu0 %v3259
        %v4052 = vpop.f32.mrf.mxu0
        %v4053 = vadd.f32 %v3964, %v4052
        %v4054 = vpop.f32.mrf.mxu0
        %v4055 = vadd.f32 %v3966, %v4054
        %4056 = vmatmul.bf16.gmra.mxu0 %v3268
        %v4057 = vpop.f32.mrf.mxu0
        %v4058 = vadd.f32 %v3969, %v4057
        %v4059 = vpop.f32.mrf.mxu0
        %v4060 = vadd.f32 %v3971, %v4059
        %4061 = vmatmul.bf16.gmra.mxu0 %v3277
        %v4062 = vpop.f32.mrf.mxu0
        %v4063 = vadd.f32 %v3974, %v4062
        %v4064 = vpop.f32.mrf.mxu0
        %v4065 = vadd.f32 %v3976, %v4064
        %4066 = vmatmul.bf16.gmra.mxu0 %v3286
        %v4067 = vpop.f32.mrf.mxu0
        %v4068 = vadd.f32 %v3979, %v4067
        %v4069 = vpop.f32.mrf.mxu0
        %v4070 = vadd.f32 %v3981, %v4069
        %4071 = vmatmul.bf16.gmra.mxu0 %v3295
        %v4072 = vpop.f32.mrf.mxu0
        %v4073 = vadd.f32 %v3984, %v4072
        %v4074 = vpop.f32.mrf.mxu0
        %v4075 = vadd.f32 %v3986, %v4074
        %4076 = vmatmul.bf16.gmra.mxu0 %v3304
        %v4077 = vpop.f32.mrf.mxu0
        %v4078 = vadd.f32 %v3989, %v4077
        %v4079 = vpop.f32.mrf.mxu0
        %v4080 = vadd.f32 %v3991, %v4079
        %4081 = vmatmul.bf16.gmra.mxu0 %v3313
        %v4082 = vpop.f32.mrf.mxu0
        %v4083 = vadd.f32 %v3994, %v4082
        %v4084 = vpop.f32.mrf.mxu0
        %v4085 = vadd.f32 %v3996, %v4084
        %4086 = vmatmul.bf16.gmra.mxu0 %v3322
        %v4087 = vpop.f32.mrf.mxu0
        %v4088 = vadd.f32 %v3999, %v4087
        %v4089 = vpop.f32.mrf.mxu0
        %v4090 = vadd.f32 %v4001, %v4089
        %4091 = vmatmul.bf16.gmra.mxu0 %v3331
        %v4092 = vpop.f32.mrf.mxu0
        %v4093 = vadd.f32 %v4004, %v4092
        %v4094 = vpop.f32.mrf.mxu0
        %v4095 = vadd.f32 %v4006, %v4094
        %4096 = vmatmul.bf16.gmra.mxu0 %v3340
        %v4097 = vpop.f32.mrf.mxu0
        %v4098 = vadd.f32 %v4009, %v4097
        %v4099 = vpop.f32.mrf.mxu0
        %v4100 = vadd.f32 %v4011, %v4099
        %4101 = vdwg.mxu0
        %4102 = vmatpush.bf16.msra.mxu0 %v3803
        %4103 = vmatpush.bf16.msra.mxu0 %v3802
        %4104 = vmatpush.bf16.msra.mxu0 %v3801
        %4105 = vmatpush.bf16.msra.mxu0 %v3800
        %4106 = vmatpush.bf16.msra.mxu0 %v3799
        %4107 = vmatpush.bf16.msra.mxu0 %v3798
        %4108 = vmatpush.bf16.msra.mxu0 %v3797
        %4109 = vmatpush.bf16.msra.mxu0 %v3796
        %4110 = vmatmul.bf16.gmra.mxu0 %v3206
        %v4111 = vpop.f32.mrf.mxu0
        %v4112 = vadd.f32 %v4023, %v4111
        %v4113 = vpop.f32.mrf.mxu0
        %v4114 = vadd.f32 %v4025, %v4113
        %4115 = vmatmul.bf16.gmra.mxu0 %v3215
        %v4116 = vpop.f32.mrf.mxu0
        %v4117 = vadd.f32 %v4028, %v4116
        %v4118 = vpop.f32.mrf.mxu0
        %v4119 = vadd.f32 %v4030, %v4118
        %4120 = vmatmul.bf16.gmra.mxu0 %v3224
        %v4121 = vpop.f32.mrf.mxu0
        %v4122 = vadd.f32 %v4033, %v4121
        %v4123 = vpop.f32.mrf.mxu0
        %v4124 = vadd.f32 %v4035, %v4123
        %4125 = vmatmul.bf16.gmra.mxu0 %v3233
        %v4126 = vpop.f32.mrf.mxu0
        %v4127 = vadd.f32 %v4038, %v4126
        %v4128 = vpop.f32.mrf.mxu0
        %v4129 = vadd.f32 %v4040, %v4128
        %4130 = vmatmul.bf16.gmra.mxu0 %v3242
        %v4131 = vpop.f32.mrf.mxu0
        %v4132 = vadd.f32 %v4043, %v4131
        %v4133 = vpop.f32.mrf.mxu0
        %v4134 = vadd.f32 %v4045, %v4133
        %4135 = vmatmul.bf16.gmra.mxu0 %v3251
        %v4136 = vpop.f32.mrf.mxu0
        %v4137 = vadd.f32 %v4048, %v4136
        %v4138 = vpop.f32.mrf.mxu0
        %v4139 = vadd.f32 %v4050, %v4138
        %4140 = vmatmul.bf16.gmra.mxu0 %v3260
        %v4141 = vpop.f32.mrf.mxu0
        %v4142 = vadd.f32 %v4053, %v4141
        %v4143 = vpop.f32.mrf.mxu0
        %v4144 = vadd.f32 %v4055, %v4143
        %4145 = vmatmul.bf16.gmra.mxu0 %v3269
        %v4146 = vpop.f32.mrf.mxu0
        %v4147 = vadd.f32 %v4058, %v4146
        %v4148 = vpop.f32.mrf.mxu0
        %v4149 = vadd.f32 %v4060, %v4148
        %4150 = vmatmul.bf16.gmra.mxu0 %v3278
        %v4151 = vpop.f32.mrf.mxu0
        %v4152 = vadd.f32 %v4063, %v4151
        %v4153 = vpop.f32.mrf.mxu0
        %v4154 = vadd.f32 %v4065, %v4153
        %4155 = vmatmul.bf16.gmra.mxu0 %v3287
        %v4156 = vpop.f32.mrf.mxu0
        %v4157 = vadd.f32 %v4068, %v4156
        %v4158 = vpop.f32.mrf.mxu0
        %v4159 = vadd.f32 %v4070, %v4158
        %4160 = vmatmul.bf16.gmra.mxu0 %v3296
        %v4161 = vpop.f32.mrf.mxu0
        %v4162 = vadd.f32 %v4073, %v4161
        %v4163 = vpop.f32.mrf.mxu0
        %v4164 = vadd.f32 %v4075, %v4163
        %4165 = vmatmul.bf16.gmra.mxu0 %v3305
        %v4166 = vpop.f32.mrf.mxu0
        %v4167 = vadd.f32 %v4078, %v4166
        %v4168 = vpop.f32.mrf.mxu0
        %v4169 = vadd.f32 %v4080, %v4168
        %4170 = vmatmul.bf16.gmra.mxu0 %v3314
        %v4171 = vpop.f32.mrf.mxu0
        %v4172 = vadd.f32 %v4083, %v4171
        %v4173 = vpop.f32.mrf.mxu0
        %v4174 = vadd.f32 %v4085, %v4173
        %4175 = vmatmul.bf16.gmra.mxu0 %v3323
        %v4176 = vpop.f32.mrf.mxu0
        %v4177 = vadd.f32 %v4088, %v4176
        %v4178 = vpop.f32.mrf.mxu0
        %v4179 = vadd.f32 %v4090, %v4178
        %4180 = vmatmul.bf16.gmra.mxu0 %v3332
        %v4181 = vpop.f32.mrf.mxu0
        %v4182 = vadd.f32 %v4093, %v4181
        %v4183 = vpop.f32.mrf.mxu0
        %v4184 = vadd.f32 %v4095, %v4183
        %4185 = vmatmul.bf16.gmra.mxu0 %v3341
        %v4186 = vpop.f32.mrf.mxu0
        %v4187 = vadd.f32 %v4098, %v4186
        %v4188 = vpop.f32.mrf.mxu0
        %v4189 = vadd.f32 %v4100, %v4188
        %4190 = vdwg.mxu0
        %4191 = vmatpush.bf16.msra.mxu0 %v3811
        %4192 = vmatpush.bf16.msra.mxu0 %v3810
        %4193 = vmatpush.bf16.msra.mxu0 %v3809
        %4194 = vmatpush.bf16.msra.mxu0 %v3808
        %4195 = vmatpush.bf16.msra.mxu0 %v3807
        %4196 = vmatpush.bf16.msra.mxu0 %v3806
        %4197 = vmatpush.bf16.msra.mxu0 %v3805
        %4198 = vmatpush.bf16.msra.mxu0 %v3804
        %4199 = vmatmul.bf16.gmra.mxu0 %v3207
        %v4200 = vpop.f32.mrf.mxu0
        %v4201 = vadd.f32 %v4112, %v4200
        %v4202 = vpop.f32.mrf.mxu0
        %v4203 = vadd.f32 %v4114, %v4202
        %4204 = vmatmul.bf16.gmra.mxu0 %v3216
        %v4205 = vpop.f32.mrf.mxu0
        %v4206 = vadd.f32 %v4117, %v4205
        %v4207 = vpop.f32.mrf.mxu0
        %v4208 = vadd.f32 %v4119, %v4207
        %4209 = vmatmul.bf16.gmra.mxu0 %v3225
        %v4210 = vpop.f32.mrf.mxu0
        %v4211 = vadd.f32 %v4122, %v4210
        %v4212 = vpop.f32.mrf.mxu0
        %v4213 = vadd.f32 %v4124, %v4212
        %4214 = vmatmul.bf16.gmra.mxu0 %v3234
        %v4215 = vpop.f32.mrf.mxu0
        %v4216 = vadd.f32 %v4127, %v4215
        %v4217 = vpop.f32.mrf.mxu0
        %v4218 = vadd.f32 %v4129, %v4217
        %4219 = vmatmul.bf16.gmra.mxu0 %v3243
        %v4220 = vpop.f32.mrf.mxu0
        %v4221 = vadd.f32 %v4132, %v4220
        %v4222 = vpop.f32.mrf.mxu0
        %v4223 = vadd.f32 %v4134, %v4222
        %4224 = vmatmul.bf16.gmra.mxu0 %v3252
        %v4225 = vpop.f32.mrf.mxu0
        %v4226 = vadd.f32 %v4137, %v4225
        %v4227 = vpop.f32.mrf.mxu0
        %v4228 = vadd.f32 %v4139, %v4227
        %4229 = vmatmul.bf16.gmra.mxu0 %v3261
        %v4230 = vpop.f32.mrf.mxu0
        %v4231 = vadd.f32 %v4142, %v4230
        %v4232 = vpop.f32.mrf.mxu0
        %v4233 = vadd.f32 %v4144, %v4232
        %4234 = vmatmul.bf16.gmra.mxu0 %v3270
        %v4235 = vpop.f32.mrf.mxu0
        %v4236 = vadd.f32 %v4147, %v4235
        %v4237 = vpop.f32.mrf.mxu0
        %v4238 = vadd.f32 %v4149, %v4237
        %4239 = vmatmul.bf16.gmra.mxu0 %v3279
        %v4240 = vpop.f32.mrf.mxu0
        %v4241 = vadd.f32 %v4152, %v4240
        %v4242 = vpop.f32.mrf.mxu0
        %v4243 = vadd.f32 %v4154, %v4242
        %4244 = vmatmul.bf16.gmra.mxu0 %v3288
        %v4245 = vpop.f32.mrf.mxu0
        %v4246 = vadd.f32 %v4157, %v4245
        %v4247 = vpop.f32.mrf.mxu0
        %v4248 = vadd.f32 %v4159, %v4247
        %4249 = vmatmul.bf16.gmra.mxu0 %v3297
        %v4250 = vpop.f32.mrf.mxu0
        %v4251 = vadd.f32 %v4162, %v4250
        %v4252 = vpop.f32.mrf.mxu0
        %v4253 = vadd.f32 %v4164, %v4252
        %4254 = vmatmul.bf16.gmra.mxu0 %v3306
        %v4255 = vpop.f32.mrf.mxu0
        %v4256 = vadd.f32 %v4167, %v4255
        %v4257 = vpop.f32.mrf.mxu0
        %v4258 = vadd.f32 %v4169, %v4257
        %4259 = vmatmul.bf16.gmra.mxu0 %v3315
        %v4260 = vpop.f32.mrf.mxu0
        %v4261 = vadd.f32 %v4172, %v4260
        %v4262 = vpop.f32.mrf.mxu0
        %v4263 = vadd.f32 %v4174, %v4262
        %4264 = vmatmul.bf16.gmra.mxu0 %v3324
        %v4265 = vpop.f32.mrf.mxu0
        %v4266 = vadd.f32 %v4177, %v4265
        %v4267 = vpop.f32.mrf.mxu0
        %v4268 = vadd.f32 %v4179, %v4267
        %4269 = vmatmul.bf16.gmra.mxu0 %v3333
        %v4270 = vpop.f32.mrf.mxu0
        %v4271 = vadd.f32 %v4182, %v4270
        %v4272 = vpop.f32.mrf.mxu0
        %v4273 = vadd.f32 %v4184, %v4272
        %4274 = vmatmul.bf16.gmra.mxu0 %v3342
        %v4275 = vpop.f32.mrf.mxu0
        %v4276 = vadd.f32 %v4187, %v4275
        %v4277 = vpop.f32.mrf.mxu0
        %v4278 = vadd.f32 %v4189, %v4277
        %4279 = vdwg.mxu0
        %4280 = vmatpush.bf16.msra.mxu0 %v3819
        %4281 = vmatpush.bf16.msra.mxu0 %v3818
        %4282 = vmatpush.bf16.msra.mxu0 %v3817
        %4283 = vmatpush.bf16.msra.mxu0 %v3816
        %4284 = vmatpush.bf16.msra.mxu0 %v3815
        %4285 = vmatpush.bf16.msra.mxu0 %v3814
        %4286 = vmatpush.bf16.msra.mxu0 %v3813
        %4287 = vmatpush.bf16.msra.mxu0 %v3812
        %4288 = vmatmul.bf16.gmra.mxu0 %v3208
        %v4289 = vpop.f32.mrf.mxu0
        %v4290 = vadd.f32 %v4201, %v4289
        %v4291 = vpop.f32.mrf.mxu0
        %v4292 = vadd.f32 %v4203, %v4291
        %4293 = vmatmul.bf16.gmra.mxu0 %v3217
        %v4294 = vpop.f32.mrf.mxu0
        %v4295 = vadd.f32 %v4206, %v4294
        %v4296 = vpop.f32.mrf.mxu0
        %v4297 = vadd.f32 %v4208, %v4296
        %4298 = vmatmul.bf16.gmra.mxu0 %v3226
        %v4299 = vpop.f32.mrf.mxu0
        %v4300 = vadd.f32 %v4211, %v4299
        %v4301 = vpop.f32.mrf.mxu0
        %v4302 = vadd.f32 %v4213, %v4301
        %4303 = vmatmul.bf16.gmra.mxu0 %v3235
        %v4304 = vpop.f32.mrf.mxu0
        %v4305 = vadd.f32 %v4216, %v4304
        %v4306 = vpop.f32.mrf.mxu0
        %v4307 = vadd.f32 %v4218, %v4306
        %4308 = vmatmul.bf16.gmra.mxu0 %v3244
        %v4309 = vpop.f32.mrf.mxu0
        %v4310 = vadd.f32 %v4221, %v4309
        %v4311 = vpop.f32.mrf.mxu0
        %v4312 = vadd.f32 %v4223, %v4311
        %4313 = vmatmul.bf16.gmra.mxu0 %v3253
        %v4314 = vpop.f32.mrf.mxu0
        %v4315 = vadd.f32 %v4226, %v4314
        %v4316 = vpop.f32.mrf.mxu0
        %v4317 = vadd.f32 %v4228, %v4316
        %4318 = vmatmul.bf16.gmra.mxu0 %v3262
        %v4319 = vpop.f32.mrf.mxu0
        %v4320 = vadd.f32 %v4231, %v4319
        %v4321 = vpop.f32.mrf.mxu0
        %v4322 = vadd.f32 %v4233, %v4321
        %4323 = vmatmul.bf16.gmra.mxu0 %v3271
        %v4324 = vpop.f32.mrf.mxu0
        %v4325 = vadd.f32 %v4236, %v4324
        %v4326 = vpop.f32.mrf.mxu0
        %v4327 = vadd.f32 %v4238, %v4326
        %4328 = vmatmul.bf16.gmra.mxu0 %v3280
        %v4329 = vpop.f32.mrf.mxu0
        %v4330 = vadd.f32 %v4241, %v4329
        %v4331 = vpop.f32.mrf.mxu0
        %v4332 = vadd.f32 %v4243, %v4331
        %4333 = vmatmul.bf16.gmra.mxu0 %v3289
        %v4334 = vpop.f32.mrf.mxu0
        %v4335 = vadd.f32 %v4246, %v4334
        %v4336 = vpop.f32.mrf.mxu0
        %v4337 = vadd.f32 %v4248, %v4336
        %4338 = vmatmul.bf16.gmra.mxu0 %v3298
        %v4339 = vpop.f32.mrf.mxu0
        %v4340 = vadd.f32 %v4251, %v4339
        %v4341 = vpop.f32.mrf.mxu0
        %v4342 = vadd.f32 %v4253, %v4341
        %4343 = vmatmul.bf16.gmra.mxu0 %v3307
        %v4344 = vpop.f32.mrf.mxu0
        %v4345 = vadd.f32 %v4256, %v4344
        %v4346 = vpop.f32.mrf.mxu0
        %v4347 = vadd.f32 %v4258, %v4346
        %4348 = vmatmul.bf16.gmra.mxu0 %v3316
        %v4349 = vpop.f32.mrf.mxu0
        %v4350 = vadd.f32 %v4261, %v4349
        %v4351 = vpop.f32.mrf.mxu0
        %v4352 = vadd.f32 %v4263, %v4351
        %4353 = vmatmul.bf16.gmra.mxu0 %v3325
        %v4354 = vpop.f32.mrf.mxu0
        %v4355 = vadd.f32 %v4266, %v4354
        %v4356 = vpop.f32.mrf.mxu0
        %v4357 = vadd.f32 %v4268, %v4356
        %4358 = vmatmul.bf16.gmra.mxu0 %v3334
        %v4359 = vpop.f32.mrf.mxu0
        %v4360 = vadd.f32 %v4271, %v4359
        %v4361 = vpop.f32.mrf.mxu0
        %v4362 = vadd.f32 %v4273, %v4361
        %4363 = vmatmul.bf16.gmra.mxu0 %v3343
        %v4364 = vpop.f32.mrf.mxu0
        %v4365 = vadd.f32 %v4276, %v4364
        %v4366 = vpop.f32.mrf.mxu0
        %v4367 = vadd.f32 %v4278, %v4366
        %4368 = vdwg.mxu0
        %4369 = vmatpush.bf16.msra.mxu0 %v3827
        %4370 = vmatpush.bf16.msra.mxu0 %v3826
        %4371 = vmatpush.bf16.msra.mxu0 %v3825
        %4372 = vmatpush.bf16.msra.mxu0 %v3824
        %4373 = vmatpush.bf16.msra.mxu0 %v3823
        %4374 = vmatpush.bf16.msra.mxu0 %v3822
        %4375 = vmatpush.bf16.msra.mxu0 %v3821
        %4376 = vmatpush.bf16.msra.mxu0 %v3820
        %4377 = vmatmul.bf16.gmra.mxu0 %v3209
        %v4378 = vpop.f32.mrf.mxu0
        %v4379 = vadd.f32 %v4290, %v4378
        %v4380 = vpop.f32.mrf.mxu0
        %v4381 = vadd.f32 %v4292, %v4380
        %4382 = vmatmul.bf16.gmra.mxu0 %v3218
        %v4383 = vpop.f32.mrf.mxu0
        %v4384 = vadd.f32 %v4295, %v4383
        %v4385 = vpop.f32.mrf.mxu0
        %v4386 = vadd.f32 %v4297, %v4385
        %4387 = vmatmul.bf16.gmra.mxu0 %v3227
        %v4388 = vpop.f32.mrf.mxu0
        %v4389 = vadd.f32 %v4300, %v4388
        %v4390 = vpop.f32.mrf.mxu0
        %v4391 = vadd.f32 %v4302, %v4390
        %4392 = vmatmul.bf16.gmra.mxu0 %v3236
        %v4393 = vpop.f32.mrf.mxu0
        %v4394 = vadd.f32 %v4305, %v4393
        %v4395 = vpop.f32.mrf.mxu0
        %v4396 = vadd.f32 %v4307, %v4395
        %4397 = vmatmul.bf16.gmra.mxu0 %v3245
        %v4398 = vpop.f32.mrf.mxu0
        %v4399 = vadd.f32 %v4310, %v4398
        %v4400 = vpop.f32.mrf.mxu0
        %v4401 = vadd.f32 %v4312, %v4400
        %4402 = vmatmul.bf16.gmra.mxu0 %v3254
        %v4403 = vpop.f32.mrf.mxu0
        %v4404 = vadd.f32 %v4315, %v4403
        %v4405 = vpop.f32.mrf.mxu0
        %v4406 = vadd.f32 %v4317, %v4405
        %4407 = vmatmul.bf16.gmra.mxu0 %v3263
        %v4408 = vpop.f32.mrf.mxu0
        %v4409 = vadd.f32 %v4320, %v4408
        %v4410 = vpop.f32.mrf.mxu0
        %v4411 = vadd.f32 %v4322, %v4410
        %4412 = vmatmul.bf16.gmra.mxu0 %v3272
        %v4413 = vpop.f32.mrf.mxu0
        %v4414 = vadd.f32 %v4325, %v4413
        %v4415 = vpop.f32.mrf.mxu0
        %v4416 = vadd.f32 %v4327, %v4415
        %4417 = vmatmul.bf16.gmra.mxu0 %v3281
        %v4418 = vpop.f32.mrf.mxu0
        %v4419 = vadd.f32 %v4330, %v4418
        %v4420 = vpop.f32.mrf.mxu0
        %v4421 = vadd.f32 %v4332, %v4420
        %4422 = vmatmul.bf16.gmra.mxu0 %v3290
        %v4423 = vpop.f32.mrf.mxu0
        %v4424 = vadd.f32 %v4335, %v4423
        %v4425 = vpop.f32.mrf.mxu0
        %v4426 = vadd.f32 %v4337, %v4425
        %4427 = vmatmul.bf16.gmra.mxu0 %v3299
        %v4428 = vpop.f32.mrf.mxu0
        %v4429 = vadd.f32 %v4340, %v4428
        %v4430 = vpop.f32.mrf.mxu0
        %v4431 = vadd.f32 %v4342, %v4430
        %4432 = vmatmul.bf16.gmra.mxu0 %v3308
        %v4433 = vpop.f32.mrf.mxu0
        %v4434 = vadd.f32 %v4345, %v4433
        %v4435 = vpop.f32.mrf.mxu0
        %v4436 = vadd.f32 %v4347, %v4435
        %4437 = vmatmul.bf16.gmra.mxu0 %v3317
        %v4438 = vpop.f32.mrf.mxu0
        %v4439 = vadd.f32 %v4350, %v4438
        %v4440 = vpop.f32.mrf.mxu0
        %v4441 = vadd.f32 %v4352, %v4440
        %4442 = vmatmul.bf16.gmra.mxu0 %v3326
        %v4443 = vpop.f32.mrf.mxu0
        %v4444 = vadd.f32 %v4355, %v4443
        %v4445 = vpop.f32.mrf.mxu0
        %v4446 = vadd.f32 %v4357, %v4445
        %4447 = vmatmul.bf16.gmra.mxu0 %v3335
        %v4448 = vpop.f32.mrf.mxu0
        %v4449 = vadd.f32 %v4360, %v4448
        %v4450 = vpop.f32.mrf.mxu0
        %v4451 = vadd.f32 %v4362, %v4450
        %4452 = vmatmul.bf16.gmra.mxu0 %v3344
        %v4453 = vpop.f32.mrf.mxu0
        %v4454 = vadd.f32 %v4365, %v4453
        %v4455 = vpop.f32.mrf.mxu0
        %v4456 = vadd.f32 %v4367, %v4455
        %4457 = vdwg.mxu0
        %4458 = vmatpush.bf16.msra.mxu0 %v3835
        %4459 = vmatpush.bf16.msra.mxu0 %v3834
        %4460 = vmatpush.bf16.msra.mxu0 %v3833
        %4461 = vmatpush.bf16.msra.mxu0 %v3832
        %4462 = vmatpush.bf16.msra.mxu0 %v3831
        %4463 = vmatpush.bf16.msra.mxu0 %v3830
        %4464 = vmatpush.bf16.msra.mxu0 %v3829
        %4465 = vmatpush.bf16.msra.mxu0 %v3828
        %4466 = vmatmul.bf16.gmra.mxu0 %v3210
        %v4467 = vpop.f32.mrf.mxu0
        %v4468 = vadd.f32 %v4379, %v4467
        %v4469 = vpop.f32.mrf.mxu0
        %v4470 = vadd.f32 %v4381, %v4469
        %4471 = vmatmul.bf16.gmra.mxu0 %v3219
        %v4472 = vpop.f32.mrf.mxu0
        %v4473 = vadd.f32 %v4384, %v4472
        %v4474 = vpop.f32.mrf.mxu0
        %v4475 = vadd.f32 %v4386, %v4474
        %4476 = vmatmul.bf16.gmra.mxu0 %v3228
        %v4477 = vpop.f32.mrf.mxu0
        %v4478 = vadd.f32 %v4389, %v4477
        %v4479 = vpop.f32.mrf.mxu0
        %v4480 = vadd.f32 %v4391, %v4479
        %4481 = vmatmul.bf16.gmra.mxu0 %v3237
        %v4482 = vpop.f32.mrf.mxu0
        %v4483 = vadd.f32 %v4394, %v4482
        %v4484 = vpop.f32.mrf.mxu0
        %v4485 = vadd.f32 %v4396, %v4484
        %4486 = vmatmul.bf16.gmra.mxu0 %v3246
        %v4487 = vpop.f32.mrf.mxu0
        %v4488 = vadd.f32 %v4399, %v4487
        %v4489 = vpop.f32.mrf.mxu0
        %v4490 = vadd.f32 %v4401, %v4489
        %4491 = vmatmul.bf16.gmra.mxu0 %v3255
        %v4492 = vpop.f32.mrf.mxu0
        %v4493 = vadd.f32 %v4404, %v4492
        %v4494 = vpop.f32.mrf.mxu0
        %v4495 = vadd.f32 %v4406, %v4494
        %4496 = vmatmul.bf16.gmra.mxu0 %v3264
        %v4497 = vpop.f32.mrf.mxu0
        %v4498 = vadd.f32 %v4409, %v4497
        %v4499 = vpop.f32.mrf.mxu0
        %v4500 = vadd.f32 %v4411, %v4499
        %4501 = vmatmul.bf16.gmra.mxu0 %v3273
        %v4502 = vpop.f32.mrf.mxu0
        %v4503 = vadd.f32 %v4414, %v4502
        %v4504 = vpop.f32.mrf.mxu0
        %v4505 = vadd.f32 %v4416, %v4504
        %4506 = vmatmul.bf16.gmra.mxu0 %v3282
        %v4507 = vpop.f32.mrf.mxu0
        %v4508 = vadd.f32 %v4419, %v4507
        %v4509 = vpop.f32.mrf.mxu0
        %v4510 = vadd.f32 %v4421, %v4509
        %4511 = vmatmul.bf16.gmra.mxu0 %v3291
        %v4512 = vpop.f32.mrf.mxu0
        %v4513 = vadd.f32 %v4424, %v4512
        %v4514 = vpop.f32.mrf.mxu0
        %v4515 = vadd.f32 %v4426, %v4514
        %4516 = vmatmul.bf16.gmra.mxu0 %v3300
        %v4517 = vpop.f32.mrf.mxu0
        %v4518 = vadd.f32 %v4429, %v4517
        %v4519 = vpop.f32.mrf.mxu0
        %v4520 = vadd.f32 %v4431, %v4519
        %4521 = vmatmul.bf16.gmra.mxu0 %v3309
        %v4522 = vpop.f32.mrf.mxu0
        %v4523 = vadd.f32 %v4434, %v4522
        %v4524 = vpop.f32.mrf.mxu0
        %v4525 = vadd.f32 %v4436, %v4524
        %4526 = vmatmul.bf16.gmra.mxu0 %v3318
        %v4527 = vpop.f32.mrf.mxu0
        %v4528 = vadd.f32 %v4439, %v4527
        %v4529 = vpop.f32.mrf.mxu0
        %v4530 = vadd.f32 %v4441, %v4529
        %4531 = vmatmul.bf16.gmra.mxu0 %v3327
        %v4532 = vpop.f32.mrf.mxu0
        %v4533 = vadd.f32 %v4444, %v4532
        %v4534 = vpop.f32.mrf.mxu0
        %v4535 = vadd.f32 %v4446, %v4534
        %4536 = vmatmul.bf16.gmra.mxu0 %v3336
        %v4537 = vpop.f32.mrf.mxu0
        %v4538 = vadd.f32 %v4449, %v4537
        %v4539 = vpop.f32.mrf.mxu0
        %v4540 = vadd.f32 %v4451, %v4539
        %4541 = vmatmul.bf16.gmra.mxu0 %v3345
        %v4542 = vpop.f32.mrf.mxu0
        %v4543 = vadd.f32 %v4454, %v4542
        %v4544 = vpop.f32.mrf.mxu0
        %v4545 = vadd.f32 %v4456, %v4544
        %4546 = vdwg.mxu0
        %4547 = vmatpush.bf16.msra.mxu0 %v3843
        %4548 = vmatpush.bf16.msra.mxu0 %v3842
        %4549 = vmatpush.bf16.msra.mxu0 %v3841
        %4550 = vmatpush.bf16.msra.mxu0 %v3840
        %4551 = vmatpush.bf16.msra.mxu0 %v3839
        %4552 = vmatpush.bf16.msra.mxu0 %v3838
        %4553 = vmatpush.bf16.msra.mxu0 %v3837
        %4554 = vmatpush.bf16.msra.mxu0 %v3836
        %4555 = vmatmul.bf16.gmra.mxu0 %v3211
        %v4556 = vpop.f32.mrf.mxu0
        %v4557 = vadd.f32 %v4468, %v4556
        %v4558 = vpop.f32.mrf.mxu0
        %v4559 = vadd.f32 %v4470, %v4558
        %4560 = vmatmul.bf16.gmra.mxu0 %v3220
        %v4561 = vpop.f32.mrf.mxu0
        %v4562 = vadd.f32 %v4473, %v4561
        %v4563 = vpop.f32.mrf.mxu0
        %v4564 = vadd.f32 %v4475, %v4563
        %4565 = vmatmul.bf16.gmra.mxu0 %v3229
        %v4566 = vpop.f32.mrf.mxu0
        %v4567 = vadd.f32 %v4478, %v4566
        %v4568 = vpop.f32.mrf.mxu0
        %v4569 = vadd.f32 %v4480, %v4568
        %4570 = vmatmul.bf16.gmra.mxu0 %v3238
        %v4571 = vpop.f32.mrf.mxu0
        %v4572 = vadd.f32 %v4483, %v4571
        %v4573 = vpop.f32.mrf.mxu0
        %v4574 = vadd.f32 %v4485, %v4573
        %4575 = vmatmul.bf16.gmra.mxu0 %v3247
        %v4576 = vpop.f32.mrf.mxu0
        %v4577 = vadd.f32 %v4488, %v4576
        %v4578 = vpop.f32.mrf.mxu0
        %v4579 = vadd.f32 %v4490, %v4578
        %4580 = vmatmul.bf16.gmra.mxu0 %v3256
        %v4581 = vpop.f32.mrf.mxu0
        %v4582 = vadd.f32 %v4493, %v4581
        %v4583 = vpop.f32.mrf.mxu0
        %v4584 = vadd.f32 %v4495, %v4583
        %4585 = vmatmul.bf16.gmra.mxu0 %v3265
        %v4586 = vpop.f32.mrf.mxu0
        %v4587 = vadd.f32 %v4498, %v4586
        %v4588 = vpop.f32.mrf.mxu0
        %v4589 = vadd.f32 %v4500, %v4588
        %4590 = vmatmul.bf16.gmra.mxu0 %v3274
        %v4591 = vpop.f32.mrf.mxu0
        %v4592 = vadd.f32 %v4503, %v4591
        %v4593 = vpop.f32.mrf.mxu0
        %v4594 = vadd.f32 %v4505, %v4593
        %4595 = vmatmul.bf16.gmra.mxu0 %v3283
        %v4596 = vpop.f32.mrf.mxu0
        %v4597 = vadd.f32 %v4508, %v4596
        %v4598 = vpop.f32.mrf.mxu0
        %v4599 = vadd.f32 %v4510, %v4598
        %4600 = vmatmul.bf16.gmra.mxu0 %v3292
        %v4601 = vpop.f32.mrf.mxu0
        %v4602 = vadd.f32 %v4513, %v4601
        %v4603 = vpop.f32.mrf.mxu0
        %v4604 = vadd.f32 %v4515, %v4603
        %4605 = vmatmul.bf16.gmra.mxu0 %v3301
        %v4606 = vpop.f32.mrf.mxu0
        %v4607 = vadd.f32 %v4518, %v4606
        %v4608 = vpop.f32.mrf.mxu0
        %v4609 = vadd.f32 %v4520, %v4608
        %4610 = vmatmul.bf16.gmra.mxu0 %v3310
        %v4611 = vpop.f32.mrf.mxu0
        %v4612 = vadd.f32 %v4523, %v4611
        %v4613 = vpop.f32.mrf.mxu0
        %v4614 = vadd.f32 %v4525, %v4613
        %4615 = vmatmul.bf16.gmra.mxu0 %v3319
        %v4616 = vpop.f32.mrf.mxu0
        %v4617 = vadd.f32 %v4528, %v4616
        %v4618 = vpop.f32.mrf.mxu0
        %v4619 = vadd.f32 %v4530, %v4618
        %4620 = vmatmul.bf16.gmra.mxu0 %v3328
        %v4621 = vpop.f32.mrf.mxu0
        %v4622 = vadd.f32 %v4533, %v4621
        %v4623 = vpop.f32.mrf.mxu0
        %v4624 = vadd.f32 %v4535, %v4623
        %4625 = vmatmul.bf16.gmra.mxu0 %v3337
        %v4626 = vpop.f32.mrf.mxu0
        %v4627 = vadd.f32 %v4538, %v4626
        %v4628 = vpop.f32.mrf.mxu0
        %v4629 = vadd.f32 %v4540, %v4628
        %4630 = vmatmul.bf16.gmra.mxu0 %v3346
        %v4631 = vpop.f32.mrf.mxu0
        %v4632 = vadd.f32 %v4543, %v4631
        %v4633 = vpop.f32.mrf.mxu0
        %v4634 = vadd.f32 %v4545, %v4633
        %4635 = vdwg.mxu0
        %4636 = vmatpush.bf16.msra.mxu0 %v3851
        %4637 = vmatpush.bf16.msra.mxu0 %v3850
        %4638 = vmatpush.bf16.msra.mxu0 %v3849
        %4639 = vmatpush.bf16.msra.mxu0 %v3848
        %4640 = vmatpush.bf16.msra.mxu0 %v3847
        %4641 = vmatpush.bf16.msra.mxu0 %v3846
        %4642 = vmatpush.bf16.msra.mxu0 %v3845
        %4643 = vmatpush.bf16.msra.mxu0 %v3844
        %4644 = vmatmul.bf16.gmra.mxu0 %v3212
        %v4645 = vpop.f32.mrf.mxu0
        %v4646 = vadd.f32 %v4557, %v4645
        %v4647 = vpop.f32.mrf.mxu0
        %v4648 = vadd.f32 %v4559, %v4647
        %4649 = vmatmul.bf16.gmra.mxu0 %v3221
        %v4650 = vpop.f32.mrf.mxu0
        %v4651 = vadd.f32 %v4562, %v4650
        %v4652 = vpop.f32.mrf.mxu0
        %v4653 = vadd.f32 %v4564, %v4652
        %4654 = vmatmul.bf16.gmra.mxu0 %v3230
        %v4655 = vpop.f32.mrf.mxu0
        %v4656 = vadd.f32 %v4567, %v4655
        %v4657 = vpop.f32.mrf.mxu0
        %v4658 = vadd.f32 %v4569, %v4657
        %4659 = vmatmul.bf16.gmra.mxu0 %v3239
        %v4660 = vpop.f32.mrf.mxu0
        %v4661 = vadd.f32 %v4572, %v4660
        %v4662 = vpop.f32.mrf.mxu0
        %v4663 = vadd.f32 %v4574, %v4662
        %4664 = vmatmul.bf16.gmra.mxu0 %v3248
        %v4665 = vpop.f32.mrf.mxu0
        %v4666 = vadd.f32 %v4577, %v4665
        %v4667 = vpop.f32.mrf.mxu0
        %v4668 = vadd.f32 %v4579, %v4667
        %4669 = vmatmul.bf16.gmra.mxu0 %v3257
        %v4670 = vpop.f32.mrf.mxu0
        %v4671 = vadd.f32 %v4582, %v4670
        %v4672 = vpop.f32.mrf.mxu0
        %v4673 = vadd.f32 %v4584, %v4672
        %4674 = vmatmul.bf16.gmra.mxu0 %v3266
        %v4675 = vpop.f32.mrf.mxu0
        %v4676 = vadd.f32 %v4587, %v4675
        %v4677 = vpop.f32.mrf.mxu0
        %v4678 = vadd.f32 %v4589, %v4677
        %4679 = vmatmul.bf16.gmra.mxu0 %v3275
        %v4680 = vpop.f32.mrf.mxu0
        %v4681 = vadd.f32 %v4592, %v4680
        %v4682 = vpop.f32.mrf.mxu0
        %v4683 = vadd.f32 %v4594, %v4682
        %4684 = vmatmul.bf16.gmra.mxu0 %v3284
        %v4685 = vpop.f32.mrf.mxu0
        %v4686 = vadd.f32 %v4597, %v4685
        %v4687 = vpop.f32.mrf.mxu0
        %v4688 = vadd.f32 %v4599, %v4687
        %4689 = vmatmul.bf16.gmra.mxu0 %v3293
        %v4690 = vpop.f32.mrf.mxu0
        %v4691 = vadd.f32 %v4602, %v4690
        %v4692 = vpop.f32.mrf.mxu0
        %v4693 = vadd.f32 %v4604, %v4692
        %4694 = vmatmul.bf16.gmra.mxu0 %v3302
        %v4695 = vpop.f32.mrf.mxu0
        %v4696 = vadd.f32 %v4607, %v4695
        %v4697 = vpop.f32.mrf.mxu0
        %v4698 = vadd.f32 %v4609, %v4697
        %4699 = vmatmul.bf16.gmra.mxu0 %v3311
        %v4700 = vpop.f32.mrf.mxu0
        %v4701 = vadd.f32 %v4612, %v4700
        %v4702 = vpop.f32.mrf.mxu0
        %v4703 = vadd.f32 %v4614, %v4702
        %4704 = vmatmul.bf16.gmra.mxu0 %v3320
        %v4705 = vpop.f32.mrf.mxu0
        %v4706 = vadd.f32 %v4617, %v4705
        %v4707 = vpop.f32.mrf.mxu0
        %v4708 = vadd.f32 %v4619, %v4707
        %4709 = vmatmul.bf16.gmra.mxu0 %v3329
        %v4710 = vpop.f32.mrf.mxu0
        %v4711 = vadd.f32 %v4622, %v4710
        %v4712 = vpop.f32.mrf.mxu0
        %v4713 = vadd.f32 %v4624, %v4712
        %4714 = vmatmul.bf16.gmra.mxu0 %v3338
        %v4715 = vpop.f32.mrf.mxu0
        %v4716 = vadd.f32 %v4627, %v4715
        %v4717 = vpop.f32.mrf.mxu0
        %v4718 = vadd.f32 %v4629, %v4717
        %4719 = vmatmul.bf16.gmra.mxu0 %v3347
        %v4720 = vpop.f32.mrf.mxu0
        %v4721 = vadd.f32 %v4632, %v4720
        %v4722 = vpop.f32.mrf.mxu0
        %v4723 = vadd.f32 %v4634, %v4722
        %4724 = vdwg.mxu0
        %v4725 = vmax.f32 %v4646, 0.0
        %v4726 = vmax.f32 %v4648, 0.0
        %v4727 = vmax.f32 %v4651, 0.0
        %v4728 = vmax.f32 %v4653, 0.0
        %v4729 = vmax.f32 %v4656, 0.0
        %v4730 = vmax.f32 %v4658, 0.0
        %v4731 = vmax.f32 %v4661, 0.0
        %v4732 = vmax.f32 %v4663, 0.0
        %v4733 = vmax.f32 %v4666, 0.0
        %v4734 = vmax.f32 %v4668, 0.0
        %v4735 = vmax.f32 %v4671, 0.0
        %v4736 = vmax.f32 %v4673, 0.0
        %v4737 = vmax.f32 %v4676, 0.0
        %v4738 = vmax.f32 %v4678, 0.0
        %v4739 = vmax.f32 %v4681, 0.0
        %v4740 = vmax.f32 %v4683, 0.0
        %v4741 = vmax.f32 %v4686, 0.0
        %v4742 = vmax.f32 %v4688, 0.0
        %v4743 = vmax.f32 %v4691, 0.0
        %v4744 = vmax.f32 %v4693, 0.0
        %v4745 = vmax.f32 %v4696, 0.0
        %v4746 = vmax.f32 %v4698, 0.0
        %v4747 = vmax.f32 %v4701, 0.0
        %v4748 = vmax.f32 %v4703, 0.0
        %v4749 = vmax.f32 %v4706, 0.0
        %v4750 = vmax.f32 %v4708, 0.0
        %v4751 = vmax.f32 %v4711, 0.0
        %v4752 = vmax.f32 %v4713, 0.0
        %v4753 = vmax.f32 %v4716, 0.0
        %v4754 = vmax.f32 %v4718, 0.0
        %v4755 = vmax.f32 %v4721, 0.0
        %v4756 = vmax.f32 %v4723, 0.0
        %v4757 = vpack.c.bf16 %v4726, %v4725
        %v4758 = vpack.c.bf16 %v4728, %v4727
        %v4759 = vpack.c.bf16 %v4730, %v4729
        %v4760 = vpack.c.bf16 %v4732, %v4731
        %v4761 = vpack.c.bf16 %v4734, %v4733
        %v4762 = vpack.c.bf16 %v4736, %v4735
        %v4763 = vpack.c.bf16 %v4738, %v4737
        %v4764 = vpack.c.bf16 %v4740, %v4739
        %v4765 = vpack.c.bf16 %v4742, %v4741
        %v4766 = vpack.c.bf16 %v4744, %v4743
        %v4767 = vpack.c.bf16 %v4746, %v4745
        %v4768 = vpack.c.bf16 %v4748, %v4747
        %v4769 = vpack.c.bf16 %v4750, %v4749
        %v4770 = vpack.c.bf16 %v4752, %v4751
        %v4771 = vpack.c.bf16 %v4754, %v4753
        %v4772 = vpack.c.bf16 %v4756, %v4755
        %v4773 = vld [vmem:[%s5] sm:$0xff]
        %v4774 = vld [vmem:[%s5 + $0x8] sm:$0xff]
        %v4775 = vld [vmem:[%s5 + $0x10] sm:$0xff]
        %v4776 = vld [vmem:[%s5 + $0x18] sm:$0xff]
        %v4777 = vld [vmem:[%s5 + $0x20] sm:$0xff]
        %v4778 = vld [vmem:[%s5 + $0x28] sm:$0xff]
        %v4779 = vld [vmem:[%s5 + $0x30] sm:$0xff]
        %v4780 = vld [vmem:[%s5 + $0x38] sm:$0xff]
        %v4781 = vld [vmem:[%s5 + $0x40] sm:$0xff]
        %v4782 = vld [vmem:[%s5 + $0x48] sm:$0xff]
        %v4783 = vld [vmem:[%s5 + $0x50] sm:$0xff]
        %v4784 = vld [vmem:[%s5 + $0x58] sm:$0xff]
        %v4785 = vld [vmem:[%s5 + $0x60] sm:$0xff]
        %v4786 = vld [vmem:[%s5 + $0x68] sm:$0xff]
        %v4787 = vld [vmem:[%s5 + $0x70] sm:$0xff]
        %v4788 = vld [vmem:[%s5 + $0x78] sm:$0xff]
        %v4789 = vld [vmem:[%s5 + $0x80] sm:$0xff]
        %v4790 = vld [vmem:[%s5 + $0x88] sm:$0xff]
        %v4791 = vld [vmem:[%s5 + $0x90] sm:$0xff]
        %v4792 = vld [vmem:[%s5 + $0x98] sm:$0xff]
        %v4793 = vld [vmem:[%s5 + $0xa0] sm:$0xff]
        %v4794 = vld [vmem:[%s5 + $0xa8] sm:$0xff]
        %v4795 = vld [vmem:[%s5 + $0xb0] sm:$0xff]
        %v4796 = vld [vmem:[%s5 + $0xb8] sm:$0xff]
        %v4797 = vld [vmem:[%s5 + $0xc0] sm:$0xff]
        %v4798 = vld [vmem:[%s5 + $0xc8] sm:$0xff]
        %v4799 = vld [vmem:[%s5 + $0xd0] sm:$0xff]
        %v4800 = vld [vmem:[%s5 + $0xd8] sm:$0xff]
        %v4801 = vld [vmem:[%s5 + $0xe0] sm:$0xff]
        %v4802 = vld [vmem:[%s5 + $0xe8] sm:$0xff]
        %v4803 = vld [vmem:[%s5 + $0xf0] sm:$0xff]
        %v4804 = vld [vmem:[%s5 + $0xf8] sm:$0xff]
        %v4805 = vld [vmem:[%s6] sm:$0xf]
        %v4807 = vperm.slane %v4805, 0
        %v4808 = vperm.slane %v4805, 1
        %v4809 = vperm.slane %v4805, 2
        %v4810 = vperm.slane %v4805, 3
        %v4847 = vunpack.c.l.b16 %v4773
        %v4848 = vunpack.c.h.b16 %v4773
        %v4849 = vunpack.c.l.b16 %v4774
        %v4850 = vunpack.c.h.b16 %v4774
        %v4851 = vunpack.c.l.b16 %v4775
        %v4852 = vunpack.c.h.b16 %v4775
        %v4853 = vunpack.c.l.b16 %v4776
        %v4854 = vunpack.c.h.b16 %v4776
        %v4855 = vunpack.c.l.b16 %v4777
        %v4856 = vunpack.c.h.b16 %v4777
        %v4857 = vunpack.c.l.b16 %v4778
        %v4858 = vunpack.c.h.b16 %v4778
        %v4859 = vunpack.c.l.b16 %v4779
        %v4860 = vunpack.c.h.b16 %v4779
        %v4861 = vunpack.c.l.b16 %v4780
        %v4862 = vunpack.c.h.b16 %v4780
        %v4863 = vunpack.c.l.b16 %v4781
        %v4864 = vunpack.c.h.b16 %v4781
        %v4865 = vunpack.c.l.b16 %v4782
        %v4866 = vunpack.c.h.b16 %v4782
        %v4867 = vunpack.c.l.b16 %v4783
        %v4868 = vunpack.c.h.b16 %v4783
        %v4869 = vunpack.c.l.b16 %v4784
        %v4870 = vunpack.c.h.b16 %v4784
        %v4871 = vunpack.c.l.b16 %v4785
        %v4872 = vunpack.c.h.b16 %v4785
        %v4873 = vunpack.c.l.b16 %v4786
        %v4874 = vunpack.c.h.b16 %v4786
        %v4875 = vunpack.c.l.b16 %v4787
        %v4876 = vunpack.c.h.b16 %v4787
        %v4877 = vunpack.c.l.b16 %v4788
        %v4878 = vunpack.c.h.b16 %v4788
        %v4879 = vunpack.c.l.b16 %v4789
        %v4880 = vunpack.c.h.b16 %v4789
        %v4881 = vunpack.c.l.b16 %v4790
        %v4882 = vunpack.c.h.b16 %v4790
        %v4883 = vunpack.c.l.b16 %v4791
        %v4884 = vunpack.c.h.b16 %v4791
        %v4885 = vunpack.c.l.b16 %v4792
        %v4886 = vunpack.c.h.b16 %v4792
        %v4887 = vunpack.c.l.b16 %v4793
        %v4888 = vunpack.c.h.b16 %v4793
        %v4889 = vunpack.c.l.b16 %v4794
        %v4890 = vunpack.c.h.b16 %v4794
        %v4891 = vunpack.c.l.b16 %v4795
        %v4892 = vunpack.c.h.b16 %v4795
        %v4893 = vunpack.c.l.b16 %v4796
        %v4894 = vunpack.c.h.b16 %v4796
        %v4895 = vunpack.c.l.b16 %v4797
        %v4896 = vunpack.c.h.b16 %v4797
        %v4897 = vunpack.c.l.b16 %v4798
        %v4898 = vunpack.c.h.b16 %v4798
        %v4899 = vunpack.c.l.b16 %v4799
        %v4900 = vunpack.c.h.b16 %v4799
        %v4901 = vunpack.c.l.b16 %v4800
        %v4902 = vunpack.c.h.b16 %v4800
        %v4903 = vunpack.c.l.b16 %v4801
        %v4904 = vunpack.c.h.b16 %v4801
        %v4905 = vunpack.c.l.b16 %v4802
        %v4906 = vunpack.c.h.b16 %v4802
        %v4907 = vunpack.c.l.b16 %v4803
        %v4908 = vunpack.c.h.b16 %v4803
        %v4909 = vunpack.c.l.b16 %v4804
        %v4910 = vunpack.c.h.b16 %v4804
        %v4911 = vpack.c.b16 %v4851, %v4847
        %v4912 = vpack.c.b16 %v4852, %v4848
        %v4913 = vpack.c.b16 %v4853, %v4849
        %v4914 = vpack.c.b16 %v4854, %v4850
        %v4915 = vpack.c.b16 %v4859, %v4855
        %v4916 = vpack.c.b16 %v4860, %v4856
        %v4917 = vpack.c.b16 %v4861, %v4857
        %v4918 = vpack.c.b16 %v4862, %v4858
        %v4919 = vpack.c.b16 %v4867, %v4863
        %v4920 = vpack.c.b16 %v4868, %v4864
        %v4921 = vpack.c.b16 %v4869, %v4865
        %v4922 = vpack.c.b16 %v4870, %v4866
        %v4923 = vpack.c.b16 %v4875, %v4871
        %v4924 = vpack.c.b16 %v4876, %v4872
        %v4925 = vpack.c.b16 %v4877, %v4873
        %v4926 = vpack.c.b16 %v4878, %v4874
        %v4927 = vpack.c.b16 %v4883, %v4879
        %v4928 = vpack.c.b16 %v4884, %v4880
        %v4929 = vpack.c.b16 %v4885, %v4881
        %v4930 = vpack.c.b16 %v4886, %v4882
        %v4931 = vpack.c.b16 %v4891, %v4887
        %v4932 = vpack.c.b16 %v4892, %v4888
        %v4933 = vpack.c.b16 %v4893, %v4889
        %v4934 = vpack.c.b16 %v4894, %v4890
        %v4935 = vpack.c.b16 %v4899, %v4895
        %v4936 = vpack.c.b16 %v4900, %v4896
        %v4937 = vpack.c.b16 %v4901, %v4897
        %v4938 = vpack.c.b16 %v4902, %v4898
        %v4939 = vpack.c.b16 %v4907, %v4903
        %v4940 = vpack.c.b16 %v4908, %v4904
        %v4941 = vpack.c.b16 %v4909, %v4905
        %v4942 = vpack.c.b16 %v4910, %v4906
        %4975 = vmatpush.bf16.msra.mxu0 %v4939
        %4976 = vmatpush.bf16.msra.mxu0 %v4935
        %4977 = vmatpush.bf16.msra.mxu0 %v4931
        %4978 = vmatpush.bf16.msra.mxu0 %v4927
        %4979 = vmatpush.bf16.msra.mxu0 %v4923
        %4980 = vmatpush.bf16.msra.mxu0 %v4919
        %4981 = vmatpush.bf16.msra.mxu0 %v4915
        %4982 = vmatpush.bf16.msra.mxu0 %v4911
        %4983 = vmatmul.bf16.gmra.mxu0 %v4757
        %v4984 = vpop.f32.mrf.mxu0
        %v4985 = vadd.f32 %v4807, %v4984
        %v4986 = vpop.f32.mrf.mxu0
        %v4987 = vadd.f32 %v4807, %v4986
        %4988 = vmatmul.bf16.gmra.mxu0 %v4758
        %v4989 = vpop.f32.mrf.mxu0
        %v4990 = vadd.f32 %v4807, %v4989
        %v4991 = vpop.f32.mrf.mxu0
        %v4992 = vadd.f32 %v4807, %v4991
        %4993 = vmatmul.bf16.gmra.mxu0 %v4759
        %v4994 = vpop.f32.mrf.mxu0
        %v4995 = vadd.f32 %v4807, %v4994
        %v4996 = vpop.f32.mrf.mxu0
        %v4997 = vadd.f32 %v4807, %v4996
        %4998 = vmatmul.bf16.gmra.mxu0 %v4760
        %v4999 = vpop.f32.mrf.mxu0
        %v5000 = vadd.f32 %v4807, %v4999
        %v5001 = vpop.f32.mrf.mxu0
        %v5002 = vadd.f32 %v4807, %v5001
        %5003 = vmatmul.bf16.gmra.mxu0 %v4761
        %v5004 = vpop.f32.mrf.mxu0
        %v5005 = vadd.f32 %v4807, %v5004
        %v5006 = vpop.f32.mrf.mxu0
        %v5007 = vadd.f32 %v4807, %v5006
        %5008 = vmatmul.bf16.gmra.mxu0 %v4762
        %v5009 = vpop.f32.mrf.mxu0
        %v5010 = vadd.f32 %v4807, %v5009
        %v5011 = vpop.f32.mrf.mxu0
        %v5012 = vadd.f32 %v4807, %v5011
        %5013 = vmatmul.bf16.gmra.mxu0 %v4763
        %v5014 = vpop.f32.mrf.mxu0
        %v5015 = vadd.f32 %v4807, %v5014
        %v5016 = vpop.f32.mrf.mxu0
        %v5017 = vadd.f32 %v4807, %v5016
        %5018 = vmatmul.bf16.gmra.mxu0 %v4764
        %v5019 = vpop.f32.mrf.mxu0
        %v5020 = vadd.f32 %v4807, %v5019
        %v5021 = vpop.f32.mrf.mxu0
        %v5022 = vadd.f32 %v4807, %v5021
        %5023 = vmatmul.bf16.gmra.mxu0 %v4765
        %v5024 = vpop.f32.mrf.mxu0
        %v5025 = vadd.f32 %v4807, %v5024
        %v5026 = vpop.f32.mrf.mxu0
        %v5027 = vadd.f32 %v4807, %v5026
        %5028 = vmatmul.bf16.gmra.mxu0 %v4766
        %v5029 = vpop.f32.mrf.mxu0
        %v5030 = vadd.f32 %v4807, %v5029
        %v5031 = vpop.f32.mrf.mxu0
        %v5032 = vadd.f32 %v4807, %v5031
        %5033 = vmatmul.bf16.gmra.mxu0 %v4767
        %v5034 = vpop.f32.mrf.mxu0
        %v5035 = vadd.f32 %v4807, %v5034
        %v5036 = vpop.f32.mrf.mxu0
        %v5037 = vadd.f32 %v4807, %v5036
        %5038 = vmatmul.bf16.gmra.mxu0 %v4768
        %v5039 = vpop.f32.mrf.mxu0
        %v5040 = vadd.f32 %v4807, %v5039
        %v5041 = vpop.f32.mrf.mxu0
        %v5042 = vadd.f32 %v4807, %v5041
        %5043 = vmatmul.bf16.gmra.mxu0 %v4769
        %v5044 = vpop.f32.mrf.mxu0
        %v5045 = vadd.f32 %v4807, %v5044
        %v5046 = vpop.f32.mrf.mxu0
        %v5047 = vadd.f32 %v4807, %v5046
        %5048 = vmatmul.bf16.gmra.mxu0 %v4770
        %v5049 = vpop.f32.mrf.mxu0
        %v5050 = vadd.f32 %v4807, %v5049
        %v5051 = vpop.f32.mrf.mxu0
        %v5052 = vadd.f32 %v4807, %v5051
        %5053 = vmatmul.bf16.gmra.mxu0 %v4771
        %v5054 = vpop.f32.mrf.mxu0
        %v5055 = vadd.f32 %v4807, %v5054
        %v5056 = vpop.f32.mrf.mxu0
        %v5057 = vadd.f32 %v4807, %v5056
        %5058 = vmatmul.bf16.gmra.mxu0 %v4772
        %v5059 = vpop.f32.mrf.mxu0
        %v5060 = vadd.f32 %v4807, %v5059
        %v5061 = vpop.f32.mrf.mxu0
        %v5062 = vadd.f32 %v4807, %v5061
        %5063 = vdwg.mxu0
        %5064 = vmatpush.bf16.msra.mxu0 %v4940
        %5065 = vmatpush.bf16.msra.mxu0 %v4936
        %5066 = vmatpush.bf16.msra.mxu0 %v4932
        %5067 = vmatpush.bf16.msra.mxu0 %v4928
        %5068 = vmatpush.bf16.msra.mxu0 %v4924
        %5069 = vmatpush.bf16.msra.mxu0 %v4920
        %5070 = vmatpush.bf16.msra.mxu0 %v4916
        %5071 = vmatpush.bf16.msra.mxu0 %v4912
        %5072 = vmatmul.bf16.gmra.mxu0 %v4757
        %v5073 = vpop.f32.mrf.mxu0
        %v5074 = vadd.f32 %v4808, %v5073
        %v5075 = vpop.f32.mrf.mxu0
        %v5076 = vadd.f32 %v4808, %v5075
        %5077 = vmatmul.bf16.gmra.mxu0 %v4758
        %v5078 = vpop.f32.mrf.mxu0
        %v5079 = vadd.f32 %v4808, %v5078
        %v5080 = vpop.f32.mrf.mxu0
        %v5081 = vadd.f32 %v4808, %v5080
        %5082 = vmatmul.bf16.gmra.mxu0 %v4759
        %v5083 = vpop.f32.mrf.mxu0
        %v5084 = vadd.f32 %v4808, %v5083
        %v5085 = vpop.f32.mrf.mxu0
        %v5086 = vadd.f32 %v4808, %v5085
        %5087 = vmatmul.bf16.gmra.mxu0 %v4760
        %v5088 = vpop.f32.mrf.mxu0
        %v5089 = vadd.f32 %v4808, %v5088
        %v5090 = vpop.f32.mrf.mxu0
        %v5091 = vadd.f32 %v4808, %v5090
        %5092 = vmatmul.bf16.gmra.mxu0 %v4761
        %v5093 = vpop.f32.mrf.mxu0
        %v5094 = vadd.f32 %v4808, %v5093
        %v5095 = vpop.f32.mrf.mxu0
        %v5096 = vadd.f32 %v4808, %v5095
        %5097 = vmatmul.bf16.gmra.mxu0 %v4762
        %v5098 = vpop.f32.mrf.mxu0
        %v5099 = vadd.f32 %v4808, %v5098
        %v5100 = vpop.f32.mrf.mxu0
        %v5101 = vadd.f32 %v4808, %v5100
        %5102 = vmatmul.bf16.gmra.mxu0 %v4763
        %v5103 = vpop.f32.mrf.mxu0
        %v5104 = vadd.f32 %v4808, %v5103
        %v5105 = vpop.f32.mrf.mxu0
        %v5106 = vadd.f32 %v4808, %v5105
        %5107 = vmatmul.bf16.gmra.mxu0 %v4764
        %v5108 = vpop.f32.mrf.mxu0
        %v5109 = vadd.f32 %v4808, %v5108
        %v5110 = vpop.f32.mrf.mxu0
        %v5111 = vadd.f32 %v4808, %v5110
        %5112 = vmatmul.bf16.gmra.mxu0 %v4765
        %v5113 = vpop.f32.mrf.mxu0
        %v5114 = vadd.f32 %v4808, %v5113
        %v5115 = vpop.f32.mrf.mxu0
        %v5116 = vadd.f32 %v4808, %v5115
        %5117 = vmatmul.bf16.gmra.mxu0 %v4766
        %v5118 = vpop.f32.mrf.mxu0
        %v5119 = vadd.f32 %v4808, %v5118
        %v5120 = vpop.f32.mrf.mxu0
        %v5121 = vadd.f32 %v4808, %v5120
        %5122 = vmatmul.bf16.gmra.mxu0 %v4767
        %v5123 = vpop.f32.mrf.mxu0
        %v5124 = vadd.f32 %v4808, %v5123
        %v5125 = vpop.f32.mrf.mxu0
        %v5126 = vadd.f32 %v4808, %v5125
        %5127 = vmatmul.bf16.gmra.mxu0 %v4768
        %v5128 = vpop.f32.mrf.mxu0
        %v5129 = vadd.f32 %v4808, %v5128
        %v5130 = vpop.f32.mrf.mxu0
        %v5131 = vadd.f32 %v4808, %v5130
        %5132 = vmatmul.bf16.gmra.mxu0 %v4769
        %v5133 = vpop.f32.mrf.mxu0
        %v5134 = vadd.f32 %v4808, %v5133
        %v5135 = vpop.f32.mrf.mxu0
        %v5136 = vadd.f32 %v4808, %v5135
        %5137 = vmatmul.bf16.gmra.mxu0 %v4770
        %v5138 = vpop.f32.mrf.mxu0
        %v5139 = vadd.f32 %v4808, %v5138
        %v5140 = vpop.f32.mrf.mxu0
        %v5141 = vadd.f32 %v4808, %v5140
        %5142 = vmatmul.bf16.gmra.mxu0 %v4771
        %v5143 = vpop.f32.mrf.mxu0
        %v5144 = vadd.f32 %v4808, %v5143
        %v5145 = vpop.f32.mrf.mxu0
        %v5146 = vadd.f32 %v4808, %v5145
        %5147 = vmatmul.bf16.gmra.mxu0 %v4772
        %v5148 = vpop.f32.mrf.mxu0
        %v5149 = vadd.f32 %v4808, %v5148
        %v5150 = vpop.f32.mrf.mxu0
        %v5151 = vadd.f32 %v4808, %v5150
        %5152 = vdwg.mxu0
        %5153 = vmatpush.bf16.msra.mxu0 %v4941
        %5154 = vmatpush.bf16.msra.mxu0 %v4937
        %5155 = vmatpush.bf16.msra.mxu0 %v4933
        %5156 = vmatpush.bf16.msra.mxu0 %v4929
        %5157 = vmatpush.bf16.msra.mxu0 %v4925
        %5158 = vmatpush.bf16.msra.mxu0 %v4921
        %5159 = vmatpush.bf16.msra.mxu0 %v4917
        %5160 = vmatpush.bf16.msra.mxu0 %v4913
        %5161 = vmatmul.bf16.gmra.mxu0 %v4757
        %v5162 = vpop.f32.mrf.mxu0
        %v5163 = vadd.f32 %v4809, %v5162
        %v5164 = vpop.f32.mrf.mxu0
        %v5165 = vadd.f32 %v4809, %v5164
        %5166 = vmatmul.bf16.gmra.mxu0 %v4758
        %v5167 = vpop.f32.mrf.mxu0
        %v5168 = vadd.f32 %v4809, %v5167
        %v5169 = vpop.f32.mrf.mxu0
        %v5170 = vadd.f32 %v4809, %v5169
        %5171 = vmatmul.bf16.gmra.mxu0 %v4759
        %v5172 = vpop.f32.mrf.mxu0
        %v5173 = vadd.f32 %v4809, %v5172
        %v5174 = vpop.f32.mrf.mxu0
        %v5175 = vadd.f32 %v4809, %v5174
        %5176 = vmatmul.bf16.gmra.mxu0 %v4760
        %v5177 = vpop.f32.mrf.mxu0
        %v5178 = vadd.f32 %v4809, %v5177
        %v5179 = vpop.f32.mrf.mxu0
        %v5180 = vadd.f32 %v4809, %v5179
        %5181 = vmatmul.bf16.gmra.mxu0 %v4761
        %v5182 = vpop.f32.mrf.mxu0
        %v5183 = vadd.f32 %v4809, %v5182
        %v5184 = vpop.f32.mrf.mxu0
        %v5185 = vadd.f32 %v4809, %v5184
        %5186 = vmatmul.bf16.gmra.mxu0 %v4762
        %v5187 = vpop.f32.mrf.mxu0
        %v5188 = vadd.f32 %v4809, %v5187
        %v5189 = vpop.f32.mrf.mxu0
        %v5190 = vadd.f32 %v4809, %v5189
        %5191 = vmatmul.bf16.gmra.mxu0 %v4763
        %v5192 = vpop.f32.mrf.mxu0
        %v5193 = vadd.f32 %v4809, %v5192
        %v5194 = vpop.f32.mrf.mxu0
        %v5195 = vadd.f32 %v4809, %v5194
        %5196 = vmatmul.bf16.gmra.mxu0 %v4764
        %v5197 = vpop.f32.mrf.mxu0
        %v5198 = vadd.f32 %v4809, %v5197
        %v5199 = vpop.f32.mrf.mxu0
        %v5200 = vadd.f32 %v4809, %v5199
        %5201 = vmatmul.bf16.gmra.mxu0 %v4765
        %v5202 = vpop.f32.mrf.mxu0
        %v5203 = vadd.f32 %v4809, %v5202
        %v5204 = vpop.f32.mrf.mxu0
        %v5205 = vadd.f32 %v4809, %v5204
        %5206 = vmatmul.bf16.gmra.mxu0 %v4766
        %v5207 = vpop.f32.mrf.mxu0
        %v5208 = vadd.f32 %v4809, %v5207
        %v5209 = vpop.f32.mrf.mxu0
        %v5210 = vadd.f32 %v4809, %v5209
        %5211 = vmatmul.bf16.gmra.mxu0 %v4767
        %v5212 = vpop.f32.mrf.mxu0
        %v5213 = vadd.f32 %v4809, %v5212
        %v5214 = vpop.f32.mrf.mxu0
        %v5215 = vadd.f32 %v4809, %v5214
        %5216 = vmatmul.bf16.gmra.mxu0 %v4768
        %v5217 = vpop.f32.mrf.mxu0
        %v5218 = vadd.f32 %v4809, %v5217
        %v5219 = vpop.f32.mrf.mxu0
        %v5220 = vadd.f32 %v4809, %v5219
        %5221 = vmatmul.bf16.gmra.mxu0 %v4769
        %v5222 = vpop.f32.mrf.mxu0
        %v5223 = vadd.f32 %v4809, %v5222
        %v5224 = vpop.f32.mrf.mxu0
        %v5225 = vadd.f32 %v4809, %v5224
        %5226 = vmatmul.bf16.gmra.mxu0 %v4770
        %v5227 = vpop.f32.mrf.mxu0
        %v5228 = vadd.f32 %v4809, %v5227
        %v5229 = vpop.f32.mrf.mxu0
        %v5230 = vadd.f32 %v4809, %v5229
        %5231 = vmatmul.bf16.gmra.mxu0 %v4771
        %v5232 = vpop.f32.mrf.mxu0
        %v5233 = vadd.f32 %v4809, %v5232
        %v5234 = vpop.f32.mrf.mxu0
        %v5235 = vadd.f32 %v4809, %v5234
        %5236 = vmatmul.bf16.gmra.mxu0 %v4772
        %v5237 = vpop.f32.mrf.mxu0
        %v5238 = vadd.f32 %v4809, %v5237
        %v5239 = vpop.f32.mrf.mxu0
        %v5240 = vadd.f32 %v4809, %v5239
        %5241 = vdwg.mxu0
        %5242 = vmatpush.bf16.msra.mxu0 %v4942
        %5243 = vmatpush.bf16.msra.mxu0 %v4938
        %5244 = vmatpush.bf16.msra.mxu0 %v4934
        %5245 = vmatpush.bf16.msra.mxu0 %v4930
        %5246 = vmatpush.bf16.msra.mxu0 %v4926
        %5247 = vmatpush.bf16.msra.mxu0 %v4922
        %5248 = vmatpush.bf16.msra.mxu0 %v4918
        %5249 = vmatpush.bf16.msra.mxu0 %v4914
        %5250 = vmatmul.bf16.gmra.mxu0 %v4757
        %v5251 = vpop.f32.mrf.mxu0
        %v5252 = vadd.f32 %v4810, %v5251
        %v5253 = vpop.f32.mrf.mxu0
        %v5254 = vadd.f32 %v4810, %v5253
        %5255 = vmatmul.bf16.gmra.mxu0 %v4758
        %v5256 = vpop.f32.mrf.mxu0
        %v5257 = vadd.f32 %v4810, %v5256
        %v5258 = vpop.f32.mrf.mxu0
        %v5259 = vadd.f32 %v4810, %v5258
        %5260 = vmatmul.bf16.gmra.mxu0 %v4759
        %v5261 = vpop.f32.mrf.mxu0
        %v5262 = vadd.f32 %v4810, %v5261
        %v5263 = vpop.f32.mrf.mxu0
        %v5264 = vadd.f32 %v4810, %v5263
        %5265 = vmatmul.bf16.gmra.mxu0 %v4760
        %v5266 = vpop.f32.mrf.mxu0
        %v5267 = vadd.f32 %v4810, %v5266
        %v5268 = vpop.f32.mrf.mxu0
        %v5269 = vadd.f32 %v4810, %v5268
        %5270 = vmatmul.bf16.gmra.mxu0 %v4761
        %v5271 = vpop.f32.mrf.mxu0
        %v5272 = vadd.f32 %v4810, %v5271
        %v5273 = vpop.f32.mrf.mxu0
        %v5274 = vadd.f32 %v4810, %v5273
        %5275 = vmatmul.bf16.gmra.mxu0 %v4762
        %v5276 = vpop.f32.mrf.mxu0
        %v5277 = vadd.f32 %v4810, %v5276
        %v5278 = vpop.f32.mrf.mxu0
        %v5279 = vadd.f32 %v4810, %v5278
        %5280 = vmatmul.bf16.gmra.mxu0 %v4763
        %v5281 = vpop.f32.mrf.mxu0
        %v5282 = vadd.f32 %v4810, %v5281
        %v5283 = vpop.f32.mrf.mxu0
        %v5284 = vadd.f32 %v4810, %v5283
        %5285 = vmatmul.bf16.gmra.mxu0 %v4764
        %v5286 = vpop.f32.mrf.mxu0
        %v5287 = vadd.f32 %v4810, %v5286
        %v5288 = vpop.f32.mrf.mxu0
        %v5289 = vadd.f32 %v4810, %v5288
        %5290 = vmatmul.bf16.gmra.mxu0 %v4765
        %v5291 = vpop.f32.mrf.mxu0
        %v5292 = vadd.f32 %v4810, %v5291
        %v5293 = vpop.f32.mrf.mxu0
        %v5294 = vadd.f32 %v4810, %v5293
        %5295 = vmatmul.bf16.gmra.mxu0 %v4766
        %v5296 = vpop.f32.mrf.mxu0
        %v5297 = vadd.f32 %v4810, %v5296
        %v5298 = vpop.f32.mrf.mxu0
        %v5299 = vadd.f32 %v4810, %v5298
        %5300 = vmatmul.bf16.gmra.mxu0 %v4767
        %v5301 = vpop.f32.mrf.mxu0
        %v5302 = vadd.f32 %v4810, %v5301
        %v5303 = vpop.f32.mrf.mxu0
        %v5304 = vadd.f32 %v4810, %v5303
        %5305 = vmatmul.bf16.gmra.mxu0 %v4768
        %v5306 = vpop.f32.mrf.mxu0
        %v5307 = vadd.f32 %v4810, %v5306
        %v5308 = vpop.f32.mrf.mxu0
        %v5309 = vadd.f32 %v4810, %v5308
        %5310 = vmatmul.bf16.gmra.mxu0 %v4769
        %v5311 = vpop.f32.mrf.mxu0
        %v5312 = vadd.f32 %v4810, %v5311
        %v5313 = vpop.f32.mrf.mxu0
        %v5314 = vadd.f32 %v4810, %v5313
        %5315 = vmatmul.bf16.gmra.mxu0 %v4770
        %v5316 = vpop.f32.mrf.mxu0
        %v5317 = vadd.f32 %v4810, %v5316
        %v5318 = vpop.f32.mrf.mxu0
        %v5319 = vadd.f32 %v4810, %v5318
        %5320 = vmatmul.bf16.gmra.mxu0 %v4771
        %v5321 = vpop.f32.mrf.mxu0
        %v5322 = vadd.f32 %v4810, %v5321
        %v5323 = vpop.f32.mrf.mxu0
        %v5324 = vadd.f32 %v4810, %v5323
        %5325 = vmatmul.bf16.gmra.mxu0 %v4772
        %v5326 = vpop.f32.mrf.mxu0
        %v5327 = vadd.f32 %v4810, %v5326
        %v5328 = vpop.f32.mrf.mxu0
        %v5329 = vadd.f32 %v4810, %v5328
        %5330 = vdwg.mxu0
        %v5331 = vadd.f32 %v4985, %v277
        %v5332 = vadd.f32 %v5074, %v278
        %v5333 = vadd.f32 %v5163, %v279
        %v5334 = vadd.f32 %v5252, %v280
        %v5335 = vadd.f32 %v4987, %v281
        %v5336 = vadd.f32 %v5076, %v282
        %v5337 = vadd.f32 %v5165, %v283
        %v5338 = vadd.f32 %v5254, %v284
        %v5339 = vadd.f32 %v4990, %v285
        %v5340 = vadd.f32 %v5079, %v286
        %v5341 = vadd.f32 %v5168, %v287
        %v5342 = vadd.f32 %v5257, %v288
        %v5343 = vadd.f32 %v4992, %v289
        %v5344 = vadd.f32 %v5081, %v290
        %v5345 = vadd.f32 %v5170, %v291
        %v5346 = vadd.f32 %v5259, %v292
        %v5347 = vadd.f32 %v4995, %v293
        %v5348 = vadd.f32 %v5084, %v294
        %v5349 = vadd.f32 %v5173, %v295
        %v5350 = vadd.f32 %v5262, %v296
        %v5351 = vadd.f32 %v4997, %v297
        %v5352 = vadd.f32 %v5086, %v298
        %v5353 = vadd.f32 %v5175, %v299
        %v5354 = vadd.f32 %v5264, %v300
        %v5355 = vadd.f32 %v5000, %v301
        %v5356 = vadd.f32 %v5089, %v302
        %v5357 = vadd.f32 %v5178, %v303
        %v5358 = vadd.f32 %v5267, %v304
        %v5359 = vadd.f32 %v5002, %v305
        %v5360 = vadd.f32 %v5091, %v306
        %v5361 = vadd.f32 %v5180, %v307
        %v5362 = vadd.f32 %v5269, %v308
        %v5363 = vadd.f32 %v5005, %v309
        %v5364 = vadd.f32 %v5094, %v310
        %v5365 = vadd.f32 %v5183, %v311
        %v5366 = vadd.f32 %v5272, %v312
        %v5367 = vadd.f32 %v5007, %v313
        %v5368 = vadd.f32 %v5096, %v314
        %v5369 = vadd.f32 %v5185, %v315
        %v5370 = vadd.f32 %v5274, %v316
        %v5371 = vadd.f32 %v5010, %v317
        %v5372 = vadd.f32 %v5099, %v318
        %v5373 = vadd.f32 %v5188, %v319
        %v5374 = vadd.f32 %v5277, %v320
        %v5375 = vadd.f32 %v5012, %v321
        %v5376 = vadd.f32 %v5101, %v322
        %v5377 = vadd.f32 %v5190, %v323
        %v5378 = vadd.f32 %v5279, %v324
        %v5379 = vadd.f32 %v5015, %v325
        %v5380 = vadd.f32 %v5104, %v326
        %v5381 = vadd.f32 %v5193, %v327
        %v5382 = vadd.f32 %v5282, %v328
        %v5383 = vadd.f32 %v5017, %v329
        %v5384 = vadd.f32 %v5106, %v330
        %v5385 = vadd.f32 %v5195, %v331
        %v5386 = vadd.f32 %v5284, %v332
        %v5387 = vadd.f32 %v5020, %v333
        %v5388 = vadd.f32 %v5109, %v334
        %v5389 = vadd.f32 %v5198, %v335
        %v5390 = vadd.f32 %v5287, %v336
        %v5391 = vadd.f32 %v5022, %v337
        %v5392 = vadd.f32 %v5111, %v338
        %v5393 = vadd.f32 %v5200, %v339
        %v5394 = vadd.f32 %v5289, %v340
        %v5395 = vadd.f32 %v5025, %v341
        %v5396 = vadd.f32 %v5114, %v342
        %v5397 = vadd.f32 %v5203, %v343
        %v5398 = vadd.f32 %v5292, %v344
        %v5399 = vadd.f32 %v5027, %v345
        %v5400 = vadd.f32 %v5116, %v346
        %v5401 = vadd.f32 %v5205, %v347
        %v5402 = vadd.f32 %v5294, %v348
        %v5403 = vadd.f32 %v5030, %v349
        %v5404 = vadd.f32 %v5119, %v350
        %v5405 = vadd.f32 %v5208, %v351
        %v5406 = vadd.f32 %v5297, %v352
        %v5407 = vadd.f32 %v5032, %v353
        %v5408 = vadd.f32 %v5121, %v354
        %v5409 = vadd.f32 %v5210, %v355
        %v5410 = vadd.f32 %v5299, %v356
        %v5411 = vadd.f32 %v5035, %v357
        %v5412 = vadd.f32 %v5124, %v358
        %v5413 = vadd.f32 %v5213, %v359
        %v5414 = vadd.f32 %v5302, %v360
        %v5415 = vadd.f32 %v5037, %v361
        %v5416 = vadd.f32 %v5126, %v362
        %v5417 = vadd.f32 %v5215, %v363
        %v5418 = vadd.f32 %v5304, %v364
        %v5419 = vadd.f32 %v5040, %v365
        %v5420 = vadd.f32 %v5129, %v366
        %v5421 = vadd.f32 %v5218, %v367
        %v5422 = vadd.f32 %v5307, %v368
        %v5423 = vadd.f32 %v5042, %v369
        %v5424 = vadd.f32 %v5131, %v370
        %v5425 = vadd.f32 %v5220, %v371
        %v5426 = vadd.f32 %v5309, %v372
        %v5427 = vadd.f32 %v5045, %v373
        %v5428 = vadd.f32 %v5134, %v374
        %v5429 = vadd.f32 %v5223, %v375
        %v5430 = vadd.f32 %v5312, %v376
        %v5431 = vadd.f32 %v5047, %v377
        %v5432 = vadd.f32 %v5136, %v378
        %v5433 = vadd.f32 %v5225, %v379
        %v5434 = vadd.f32 %v5314, %v380
        %v5435 = vadd.f32 %v5050, %v381
        %v5436 = vadd.f32 %v5139, %v382
        %v5437 = vadd.f32 %v5228, %v383
        %v5438 = vadd.f32 %v5317, %v384
        %v5439 = vadd.f32 %v5052, %v385
        %v5440 = vadd.f32 %v5141, %v386
        %v5441 = vadd.f32 %v5230, %v387
        %v5442 = vadd.f32 %v5319, %v388
        %v5443 = vadd.f32 %v5055, %v389
        %v5444 = vadd.f32 %v5144, %v390
        %v5445 = vadd.f32 %v5233, %v391
        %v5446 = vadd.f32 %v5322, %v392
        %v5447 = vadd.f32 %v5057, %v393
        %v5448 = vadd.f32 %v5146, %v394
        %v5449 = vadd.f32 %v5235, %v395
        %v5450 = vadd.f32 %v5324, %v396
        %v5451 = vadd.f32 %v5060, %v397
        %v5452 = vadd.f32 %v5149, %v398
        %v5453 = vadd.f32 %v5238, %v399
        %v5454 = vadd.f32 %v5327, %v400
        %v5455 = vadd.f32 %v5062, %v401
        %v5456 = vadd.f32 %v5151, %v402
        %v5457 = vadd.f32 %v5240, %v403
        %v5458 = vadd.f32 %v5329, %v404
        %v5459 = vmax.f32 %v5331, 0.0
        %v5460 = vmax.f32 %v5332, 0.0
        %v5461 = vmax.f32 %v5333, 0.0
        %v5462 = vmax.f32 %v5334, 0.0
        %v5463 = vmax.f32 %v5335, 0.0
        %v5464 = vmax.f32 %v5336, 0.0
        %v5465 = vmax.f32 %v5337, 0.0
        %v5466 = vmax.f32 %v5338, 0.0
        %v5467 = vmax.f32 %v5339, 0.0
        %v5468 = vmax.f32 %v5340, 0.0
        %v5469 = vmax.f32 %v5341, 0.0
        %v5470 = vmax.f32 %v5342, 0.0
        %v5471 = vmax.f32 %v5343, 0.0
        %v5472 = vmax.f32 %v5344, 0.0
        %v5473 = vmax.f32 %v5345, 0.0
        %v5474 = vmax.f32 %v5346, 0.0
        %v5475 = vmax.f32 %v5347, 0.0
        %v5476 = vmax.f32 %v5348, 0.0
        %v5477 = vmax.f32 %v5349, 0.0
        %v5478 = vmax.f32 %v5350, 0.0
        %v5479 = vmax.f32 %v5351, 0.0
        %v5480 = vmax.f32 %v5352, 0.0
        %v5481 = vmax.f32 %v5353, 0.0
        %v5482 = vmax.f32 %v5354, 0.0
        %v5483 = vmax.f32 %v5355, 0.0
        %v5484 = vmax.f32 %v5356, 0.0
        %v5485 = vmax.f32 %v5357, 0.0
        %v5486 = vmax.f32 %v5358, 0.0
        %v5487 = vmax.f32 %v5359, 0.0
        %v5488 = vmax.f32 %v5360, 0.0
        %v5489 = vmax.f32 %v5361, 0.0
        %v5490 = vmax.f32 %v5362, 0.0
        %v5491 = vmax.f32 %v5363, 0.0
        %v5492 = vmax.f32 %v5364, 0.0
        %v5493 = vmax.f32 %v5365, 0.0
        %v5494 = vmax.f32 %v5366, 0.0
        %v5495 = vmax.f32 %v5367, 0.0
        %v5496 = vmax.f32 %v5368, 0.0
        %v5497 = vmax.f32 %v5369, 0.0
        %v5498 = vmax.f32 %v5370, 0.0
        %v5499 = vmax.f32 %v5371, 0.0
        %v5500 = vmax.f32 %v5372, 0.0
        %v5501 = vmax.f32 %v5373, 0.0
        %v5502 = vmax.f32 %v5374, 0.0
        %v5503 = vmax.f32 %v5375, 0.0
        %v5504 = vmax.f32 %v5376, 0.0
        %v5505 = vmax.f32 %v5377, 0.0
        %v5506 = vmax.f32 %v5378, 0.0
        %v5507 = vmax.f32 %v5379, 0.0
        %v5508 = vmax.f32 %v5380, 0.0
        %v5509 = vmax.f32 %v5381, 0.0
        %v5510 = vmax.f32 %v5382, 0.0
        %v5511 = vmax.f32 %v5383, 0.0
        %v5512 = vmax.f32 %v5384, 0.0
        %v5513 = vmax.f32 %v5385, 0.0
        %v5514 = vmax.f32 %v5386, 0.0
        %v5515 = vmax.f32 %v5387, 0.0
        %v5516 = vmax.f32 %v5388, 0.0
        %v5517 = vmax.f32 %v5389, 0.0
        %v5518 = vmax.f32 %v5390, 0.0
        %v5519 = vmax.f32 %v5391, 0.0
        %v5520 = vmax.f32 %v5392, 0.0
        %v5521 = vmax.f32 %v5393, 0.0
        %v5522 = vmax.f32 %v5394, 0.0
        %v5523 = vmax.f32 %v5395, 0.0
        %v5524 = vmax.f32 %v5396, 0.0
        %v5525 = vmax.f32 %v5397, 0.0
        %v5526 = vmax.f32 %v5398, 0.0
        %v5527 = vmax.f32 %v5399, 0.0
        %v5528 = vmax.f32 %v5400, 0.0
        %v5529 = vmax.f32 %v5401, 0.0
        %v5530 = vmax.f32 %v5402, 0.0
        %v5531 = vmax.f32 %v5403, 0.0
        %v5532 = vmax.f32 %v5404, 0.0
        %v5533 = vmax.f32 %v5405, 0.0
        %v5534 = vmax.f32 %v5406, 0.0
        %v5535 = vmax.f32 %v5407, 0.0
        %v5536 = vmax.f32 %v5408, 0.0
        %v5537 = vmax.f32 %v5409, 0.0
        %v5538 = vmax.f32 %v5410, 0.0
        %v5539 = vmax.f32 %v5411, 0.0
        %v5540 = vmax.f32 %v5412, 0.0
        %v5541 = vmax.f32 %v5413, 0.0
        %v5542 = vmax.f32 %v5414, 0.0
        %v5543 = vmax.f32 %v5415, 0.0
        %v5544 = vmax.f32 %v5416, 0.0
        %v5545 = vmax.f32 %v5417, 0.0
        %v5546 = vmax.f32 %v5418, 0.0
        %v5547 = vmax.f32 %v5419, 0.0
        %v5548 = vmax.f32 %v5420, 0.0
        %v5549 = vmax.f32 %v5421, 0.0
        %v5550 = vmax.f32 %v5422, 0.0
        %v5551 = vmax.f32 %v5423, 0.0
        %v5552 = vmax.f32 %v5424, 0.0
        %v5553 = vmax.f32 %v5425, 0.0
        %v5554 = vmax.f32 %v5426, 0.0
        %v5555 = vmax.f32 %v5427, 0.0
        %v5556 = vmax.f32 %v5428, 0.0
        %v5557 = vmax.f32 %v5429, 0.0
        %v5558 = vmax.f32 %v5430, 0.0
        %v5559 = vmax.f32 %v5431, 0.0
        %v5560 = vmax.f32 %v5432, 0.0
        %v5561 = vmax.f32 %v5433, 0.0
        %v5562 = vmax.f32 %v5434, 0.0
        %v5563 = vmax.f32 %v5435, 0.0
        %v5564 = vmax.f32 %v5436, 0.0
        %v5565 = vmax.f32 %v5437, 0.0
        %v5566 = vmax.f32 %v5438, 0.0
        %v5567 = vmax.f32 %v5439, 0.0
        %v5568 = vmax.f32 %v5440, 0.0
        %v5569 = vmax.f32 %v5441, 0.0
        %v5570 = vmax.f32 %v5442, 0.0
        %v5571 = vmax.f32 %v5443, 0.0
        %v5572 = vmax.f32 %v5444, 0.0
        %v5573 = vmax.f32 %v5445, 0.0
        %v5574 = vmax.f32 %v5446, 0.0
        %v5575 = vmax.f32 %v5447, 0.0
        %v5576 = vmax.f32 %v5448, 0.0
        %v5577 = vmax.f32 %v5449, 0.0
        %v5578 = vmax.f32 %v5450, 0.0
        %v5579 = vmax.f32 %v5451, 0.0
        %v5580 = vmax.f32 %v5452, 0.0
        %v5581 = vmax.f32 %v5453, 0.0
        %v5582 = vmax.f32 %v5454, 0.0
        %v5583 = vmax.f32 %v5455, 0.0
        %v5584 = vmax.f32 %v5456, 0.0
        %v5585 = vmax.f32 %v5457, 0.0
        %v5586 = vmax.f32 %v5458, 0.0
        %5587 = vst [vmem:[%s271] sm:$0xff] %v5459
        %5588 = vst [vmem:[%s271 + $0x8] sm:$0xff] %v5460
        %5589 = vst [vmem:[%s271 + $0x10] sm:$0xff] %v5461
        %5590 = vst [vmem:[%s271 + $0x18] sm:$0xff] %v5462
        %5591 = vst [vmem:[%s271 + $0x20] sm:$0xff] %v5463
        %5592 = vst [vmem:[%s271 + $0x28] sm:$0xff] %v5464
        %5593 = vst [vmem:[%s271 + $0x30] sm:$0xff] %v5465
        %5594 = vst [vmem:[%s271 + $0x38] sm:$0xff] %v5466
        %5595 = vst [vmem:[%s271 + $0x40] sm:$0xff] %v5467
        %5596 = vst [vmem:[%s271 + $0x48] sm:$0xff] %v5468
        %5597 = vst [vmem:[%s271 + $0x50] sm:$0xff] %v5469
        %5598 = vst [vmem:[%s271 + $0x58] sm:$0xff] %v5470
        %5599 = vst [vmem:[%s271 + $0x60] sm:$0xff] %v5471
        %5600 = vst [vmem:[%s271 + $0x68] sm:$0xff] %v5472
        %5601 = vst [vmem:[%s271 + $0x70] sm:$0xff] %v5473
        %5602 = vst [vmem:[%s271 + $0x78] sm:$0xff] %v5474
        %5603 = vst [vmem:[%s271 + $0x80] sm:$0xff] %v5475
        %5604 = vst [vmem:[%s271 + $0x88] sm:$0xff] %v5476
        %5605 = vst [vmem:[%s271 + $0x90] sm:$0xff] %v5477
        %5606 = vst [vmem:[%s271 + $0x98] sm:$0xff] %v5478
        %5607 = vst [vmem:[%s271 + $0xa0] sm:$0xff] %v5479
        %5608 = vst [vmem:[%s271 + $0xa8] sm:$0xff] %v5480
        %5609 = vst [vmem:[%s271 + $0xb0] sm:$0xff] %v5481
        %5610 = vst [vmem:[%s271 + $0xb8] sm:$0xff] %v5482
        %5611 = vst [vmem:[%s271 + $0xc0] sm:$0xff] %v5483
        %5612 = vst [vmem:[%s271 + $0xc8] sm:$0xff] %v5484
        %5613 = vst [vmem:[%s271 + $0xd0] sm:$0xff] %v5485
        %5614 = vst [vmem:[%s271 + $0xd8] sm:$0xff] %v5486
        %5615 = vst [vmem:[%s271 + $0xe0] sm:$0xff] %v5487
        %5616 = vst [vmem:[%s271 + $0xe8] sm:$0xff] %v5488
        %5617 = vst [vmem:[%s271 + $0xf0] sm:$0xff] %v5489
        %5618 = vst [vmem:[%s271 + $0xf8] sm:$0xff] %v5490
        %5619 = vst [vmem:[%s271 + $0x100] sm:$0xff] %v5491
        %5620 = vst [vmem:[%s271 + $0x108] sm:$0xff] %v5492
        %5621 = vst [vmem:[%s271 + $0x110] sm:$0xff] %v5493
        %5622 = vst [vmem:[%s271 + $0x118] sm:$0xff] %v5494
        %5623 = vst [vmem:[%s271 + $0x120] sm:$0xff] %v5495
        %5624 = vst [vmem:[%s271 + $0x128] sm:$0xff] %v5496
        %5625 = vst [vmem:[%s271 + $0x130] sm:$0xff] %v5497
        %5626 = vst [vmem:[%s271 + $0x138] sm:$0xff] %v5498
        %5627 = vst [vmem:[%s271 + $0x140] sm:$0xff] %v5499
        %5628 = vst [vmem:[%s271 + $0x148] sm:$0xff] %v5500
        %5629 = vst [vmem:[%s271 + $0x150] sm:$0xff] %v5501
        %5630 = vst [vmem:[%s271 + $0x158] sm:$0xff] %v5502
        %5631 = vst [vmem:[%s271 + $0x160] sm:$0xff] %v5503
        %5632 = vst [vmem:[%s271 + $0x168] sm:$0xff] %v5504
        %5633 = vst [vmem:[%s271 + $0x170] sm:$0xff] %v5505
        %5634 = vst [vmem:[%s271 + $0x178] sm:$0xff] %v5506
        %5635 = vst [vmem:[%s271 + $0x180] sm:$0xff] %v5507
        %5636 = vst [vmem:[%s271 + $0x188] sm:$0xff] %v5508
        %5637 = vst [vmem:[%s271 + $0x190] sm:$0xff] %v5509
        %5638 = vst [vmem:[%s271 + $0x198] sm:$0xff] %v5510
        %5639 = vst [vmem:[%s271 + $0x1a0] sm:$0xff] %v5511
        %5640 = vst [vmem:[%s271 + $0x1a8] sm:$0xff] %v5512
        %5641 = vst [vmem:[%s271 + $0x1b0] sm:$0xff] %v5513
        %5642 = vst [vmem:[%s271 + $0x1b8] sm:$0xff] %v5514
        %5643 = vst [vmem:[%s271 + $0x1c0] sm:$0xff] %v5515
        %5644 = vst [vmem:[%s271 + $0x1c8] sm:$0xff] %v5516
        %5645 = vst [vmem:[%s271 + $0x1d0] sm:$0xff] %v5517
        %5646 = vst [vmem:[%s271 + $0x1d8] sm:$0xff] %v5518
        %5647 = vst [vmem:[%s271 + $0x1e0] sm:$0xff] %v5519
        %5648 = vst [vmem:[%s271 + $0x1e8] sm:$0xff] %v5520
        %5649 = vst [vmem:[%s271 + $0x1f0] sm:$0xff] %v5521
        %5650 = vst [vmem:[%s271 + $0x1f8] sm:$0xff] %v5522
        %5651 = vst [vmem:[%s271 + $0x200] sm:$0xff] %v5523
        %5652 = vst [vmem:[%s271 + $0x208] sm:$0xff] %v5524
        %5653 = vst [vmem:[%s271 + $0x210] sm:$0xff] %v5525
        %5654 = vst [vmem:[%s271 + $0x218] sm:$0xff] %v5526
        %5655 = vst [vmem:[%s271 + $0x220] sm:$0xff] %v5527
        %5656 = vst [vmem:[%s271 + $0x228] sm:$0xff] %v5528
        %5657 = vst [vmem:[%s271 + $0x230] sm:$0xff] %v5529
        %5658 = vst [vmem:[%s271 + $0x238] sm:$0xff] %v5530
        %5659 = vst [vmem:[%s271 + $0x240] sm:$0xff] %v5531
        %5660 = vst [vmem:[%s271 + $0x248] sm:$0xff] %v5532
        %5661 = vst [vmem:[%s271 + $0x250] sm:$0xff] %v5533
        %5662 = vst [vmem:[%s271 + $0x258] sm:$0xff] %v5534
        %5663 = vst [vmem:[%s271 + $0x260] sm:$0xff] %v5535
        %5664 = vst [vmem:[%s271 + $0x268] sm:$0xff] %v5536
        %5665 = vst [vmem:[%s271 + $0x270] sm:$0xff] %v5537
        %5666 = vst [vmem:[%s271 + $0x278] sm:$0xff] %v5538
        %5667 = vst [vmem:[%s271 + $0x280] sm:$0xff] %v5539
        %5668 = vst [vmem:[%s271 + $0x288] sm:$0xff] %v5540
        %5669 = vst [vmem:[%s271 + $0x290] sm:$0xff] %v5541
        %5670 = vst [vmem:[%s271 + $0x298] sm:$0xff] %v5542
        %5671 = vst [vmem:[%s271 + $0x2a0] sm:$0xff] %v5543
        %5672 = vst [vmem:[%s271 + $0x2a8] sm:$0xff] %v5544
        %5673 = vst [vmem:[%s271 + $0x2b0] sm:$0xff] %v5545
        %5674 = vst [vmem:[%s271 + $0x2b8] sm:$0xff] %v5546
        %5675 = vst [vmem:[%s271 + $0x2c0] sm:$0xff] %v5547
        %5676 = vst [vmem:[%s271 + $0x2c8] sm:$0xff] %v5548
        %5677 = vst [vmem:[%s271 + $0x2d0] sm:$0xff] %v5549
        %5678 = vst [vmem:[%s271 + $0x2d8] sm:$0xff] %v5550
        %5679 = vst [vmem:[%s271 + $0x2e0] sm:$0xff] %v5551
        %5680 = vst [vmem:[%s271 + $0x2e8] sm:$0xff] %v5552
        %5681 = vst [vmem:[%s271 + $0x2f0] sm:$0xff] %v5553
        %5682 = vst [vmem:[%s271 + $0x2f8] sm:$0xff] %v5554
        %5683 = vst [vmem:[%s271 + $0x300] sm:$0xff] %v5555
        %5684 = vst [vmem:[%s271 + $0x308] sm:$0xff] %v5556
        %5685 = vst [vmem:[%s271 + $0x310] sm:$0xff] %v5557
        %5686 = vst [vmem:[%s271 + $0x318] sm:$0xff] %v5558
        %5687 = vst [vmem:[%s271 + $0x320] sm:$0xff] %v5559
        %5688 = vst [vmem:[%s271 + $0x328] sm:$0xff] %v5560
        %5689 = vst [vmem:[%s271 + $0x330] sm:$0xff] %v5561
        %5690 = vst [vmem:[%s271 + $0x338] sm:$0xff] %v5562
        %5691 = vst [vmem:[%s271 + $0x340] sm:$0xff] %v5563
        %5692 = vst [vmem:[%s271 + $0x348] sm:$0xff] %v5564
        %5693 = vst [vmem:[%s271 + $0x350] sm:$0xff] %v5565
        %5694 = vst [vmem:[%s271 + $0x358] sm:$0xff] %v5566
        %5695 = vst [vmem:[%s271 + $0x360] sm:$0xff] %v5567
        %5696 = vst [vmem:[%s271 + $0x368] sm:$0xff] %v5568
        %5697 = vst [vmem:[%s271 + $0x370] sm:$0xff] %v5569
        %5698 = vst [vmem:[%s271 + $0x378] sm:$0xff] %v5570
        %5699 = vst [vmem:[%s271 + $0x380] sm:$0xff] %v5571
        %5700 = vst [vmem:[%s271 + $0x388] sm:$0xff] %v5572
        %5701 = vst [vmem:[%s271 + $0x390] sm:$0xff] %v5573
        %5702 = vst [vmem:[%s271 + $0x398] sm:$0xff] %v5574
        %5703 = vst [vmem:[%s271 + $0x3a0] sm:$0xff] %v5575
        %5704 = vst [vmem:[%s271 + $0x3a8] sm:$0xff] %v5576
        %5705 = vst [vmem:[%s271 + $0x3b0] sm:$0xff] %v5577
        %5706 = vst [vmem:[%s271 + $0x3b8] sm:$0xff] %v5578
        %5707 = vst [vmem:[%s271 + $0x3c0] sm:$0xff] %v5579
        %5708 = vst [vmem:[%s271 + $0x3c8] sm:$0xff] %v5580
        %5709 = vst [vmem:[%s271 + $0x3d0] sm:$0xff] %v5581
        %5710 = vst [vmem:[%s271 + $0x3d8] sm:$0xff] %v5582
        %5711 = vst [vmem:[%s271 + $0x3e0] sm:$0xff] %v5583
        %5712 = vst [vmem:[%s271 + $0x3e8] sm:$0xff] %v5584
        %5713 = vst [vmem:[%s271 + $0x3f0] sm:$0xff] %v5585
        %5714 = vst [vmem:[%s271 + $0x3f8] sm:$0xff] %v5586
        %s5715 = sand.u32 %s181, 1
        %s5716 = scalar_lea.sflag [#allocation5], %s5715
        %s5717 = sand.u32 %s181, 1
        %s5718 = smul.addr %s5717, 1024
        %s5719 = scalar_lea.vmem [#allocation4], %s5718
        // Predicated region
        $region49: #{bottleneck_forward.1} parent=47 // pred_check
          %p5720 = pneg %p191
        $region50: #{bottleneck_forward.1} parent=47 // pred_check_branch
          %5722 = sbr.rel (%p5720) target = $region52
        $region51: #{bottleneck_forward.1} parent=47 // pred_region
          %5724 = vsyncadd %s5716, 0
          %s5725 = smul.addr %s21, 128
          %s5726 = smul.addr %s5725, 8
          %s5727 = scalar_lea.hbm %s7, %s5726
          %s5728 = sshll.u32 %s5719, 4
          %s5729 = int_to_ptr.vmem [resolvable:$true] %s5728
          %s5730 = sshll.u32 %s5727, 4
          %s5731 = int_to_ptr.hbm [resolvable:$true] %s5730
          %5736 = dma.vmem_to_hbm [thread:$0]  %s5729, 16384, %s5731, %s5716, 512, 512, 32
        $region52: #{bottleneck_forward.1} parent=47 // pred_fallthru
          _
      $region48: #{bottleneck_forward.1} parent=5 // pred_fallthru
        _
      %p5737 = scmp.le.s32.totalorder 2, %s16
      // Predicated region
      $region53: #{bottleneck_forward.1} parent=5 // pred_check
        %p5738 = pneg %p5737
      $region54: #{bottleneck_forward.1} parent=5 // pred_check_branch
        %5740 = sbr.rel (%p5738) target = $region56
      $region55: #{bottleneck_forward.1} parent=5 // pred_region
        %s5741 = ssub.s32 %s16, 2
        // Predicated region
        $region57: #{bottleneck_forward.1} parent=55 // pred_check
          %p5742 = pneg %p197
        $region58: #{bottleneck_forward.1} parent=55 // pred_check_branch
          %5744 = sbr.rel (%p5742) target = $region60
        $region59: #{bottleneck_forward.1} parent=55 // pred_region
          %s5745 = sand.u32 %s182, 1
          %s5746 = scalar_lea.sflag [#allocation5], %s5745
          %s5747 = sand.u32 %s182, 1
          %s5748 = smul.addr %s5747, 1024
          %s5749 = scalar_lea.vmem [#allocation4], %s5748
          %5751 = dma.done %s5746, 16384
        $region60: #{bottleneck_forward.1} parent=55 // pred_fallthru
          _
      $region56: #{bottleneck_forward.1} parent=5 // pred_fallthru
        _
    $region6: #{bottleneck_forward.1} parent=1 // loop_footer
      %s20 = sadd.s32 1, %s16
    $region7: #{bottleneck_forward.1} parent=1 // loop_footer_branch
      %15 = sbr.rel target = $region3
    $region8: #{bottleneck_forward.1} parent=1 // loop_exit
      _
    %5752 = vsyncpa [#allocation5], 1
    %s5753 = scalar_lea.sflag [#allocation5], 1
    %5754 = vsyncpa %s5753, 1

</llo_original>
